<compile_context>
chip_gen: v7x
topology: tpu7x:2x2x1
jax: 0.10.0
libtpu: 0.0.40
codegen_flags: <defaults>
</compile_context>

<pallas_src>
import functools

import jax
import jax.numpy as jnp
import numpy as np
from jax import lax
from jax.experimental import pallas as pl
from jax.experimental.pallas import tpu as pltpu

BN_EPS = 1e-5
_LEAD = 7        # leading slack rows: makes the interior store offset (lead+wi_r+1)
                 # and the centre-tap load offsets multiples of 8
_TAIL = 9        # trailing slack: >=2 rows of OOB cover for overhanging tap reads,
                 # and keeps the flat buffer length a multiple of 8


# ------------------------------------------------------------------ utilities
def _round_up(v, m):
    return -(-v // m) * m


def _fold_bn(gamma, beta, mean, var):
    scale = gamma / jnp.sqrt(var + BN_EPS)
    shift = beta - mean * scale
    return scale.astype(jnp.float32), shift.astype(jnp.float32)


def _compiler_params(block_bytes):
    # request only what the per-step blocks need (plus headroom); cap at 48 MiB so
    # v7x (64 MiB physical) keeps room for compiler scratch / spill.
    limit = int(min(48 * 2**20, max(32 * 2**20, 2 * block_bytes)))
    return pltpu.CompilerParams(dimension_semantics=("parallel",),
                                vmem_limit_bytes=limit)


_BUFFERED_OK = None


def _buffered_supported():
    """Probe whether this JAX build supports pipeline_mode=pl.Buffered(1)."""
    global _BUFFERED_OK
    if _BUFFERED_OK is not None:
        return _BUFFERED_OK
    try:
        spec = pl.BlockSpec((8, 128), lambda i: (0, 0), pipeline_mode=pl.Buffered(1))

        def _k(x_ref, o_ref):
            o_ref[...] = x_ref[...] * 2.0

        fn = pl.pallas_call(
            _k, out_shape=jax.ShapeDtypeStruct((16, 128), jnp.float32),
            grid=(2,),
            in_specs=[spec],
            out_specs=pl.BlockSpec((8, 128), lambda i: (i, 0)))
        jax.block_until_ready(fn(jnp.ones((8, 128), jnp.float32)))
        _BUFFERED_OK = True
    except Exception:
        _BUFFERED_OK = False
    return _BUFFERED_OK


def _const_spec(block_shape):
    """BlockSpec for a grid-invariant operand; single-buffered when supported."""
    idx = lambda i: (0,) * len(block_shape)
    if _buffered_supported():
        return pl.BlockSpec(block_shape, idx, pipeline_mode=pl.Buffered(1))
    return pl.BlockSpec(block_shape, idx)


# ------------------------------------------------------------------ kernels
def _stage1_kernel(xf_ref, w1_ref, alpha_ref, o_ref, *, h, w, wi_r, lead):
    """BatchNorm(in) [folded in wrapper] -> Conv3x3(stride 1, pad 1) -> PReLU.

    xf_ref : (1, Lf, Cin) bf16  zero-padded input, spatial flattened as (H+2)*Wr
    w1_ref : (3, 3*Cin, D) bf16 conv1 weights grouped by dy (tap-major, chan-minor)
    o_ref  : (1, Lf, D)   bf16  padded stage-1 output in the same flat raster
    """
    d = o_ref.shape[2]
    lf = o_ref.shape[1]
    rows = h * wi_r
    acc = None
    for dy in range(3):                                      # 3 accumulating matmuls
        taps = [xf_ref[0, pl.ds(lead + dy * wi_r + dx, rows), :] for dx in range(3)]
        patch = jnp.concatenate(taps, axis=-1)               # (rows, 3*Cin) bf16
        part = jnp.dot(patch, w1_ref[dy], preferred_element_type=jnp.float32)
        acc = part if acc is None else acc + part
    y = jnp.where(acc > 0, acc, acc * alpha_ref[...])        # PReLU (per channel)
    # raster columns >= w are wrap-around junk -> they land on zero-padding
    # positions of the padded output, so mask them to zero.
    col = lax.broadcasted_iota(jnp.int32, (rows, 1), 0) % wi_r
    y = jnp.where(col < w, y, 0.0).astype(o_ref.dtype)
    # border-only zeroing (no full-raster clear); all offsets/lengths are
    # multiples of 8 (lead == 7, wi_r % 8 == 0) -> dense, unmasked stores.
    front = lead + wi_r + 1
    o_ref[0, pl.ds(0, front), :] = jnp.zeros((front, d), o_ref.dtype)
    o_ref[0, pl.ds(front, rows), :] = y
    back = lf - front - rows
    o_ref[0, pl.ds(front + rows, back), :] = jnp.zeros((back, d), o_ref.dtype)


def _stage2_kernel(*refs, stride, ho, wo, wp_r, lead, identity):
    """Conv3x3(stride, pad 1) -> BatchNorm -> SEModule -> + shortcut.

    phases ref : (1, nph, Lf2, D) bf16 - for stride 1 this is the stage-1 buffer
    itself; for stride>1 it is the phase-decomposed padded stage-1 output so
    every tap stays a contiguous slice. Output raster is (Ho, Wr) with Wr-Wo
    junk columns (masked out of the SE pool, dropped by the wrapper).
    """
    if identity:
        (ph_ref, w2_ref, s2_ref, b2_ref, fc1_ref, fc2_ref, sc_ref, o_ref) = refs
    else:
        (ph_ref, w2_ref, s2_ref, b2_ref, fc1_ref, fc2_ref, sc_ref,
         wsc_ref, ssc_ref, bsc_ref, o_ref) = refs

    rows = ho * wp_r
    acc = None
    for dy in range(3):
        taps = []
        for dx in range(3):
            p = (dy % stride) * stride + (dx % stride)
            off = lead + (dy // stride) * wp_r + (dx // stride)
            taps.append(ph_ref[0, p, pl.ds(off, rows), :])
        patch = jnp.concatenate(taps, axis=-1)               # (rows, 3*D) bf16
        part = jnp.dot(patch, w2_ref[dy], preferred_element_type=jnp.float32)
        acc = part if acc is None else acc + part
    r = acc * s2_ref[...] + b2_ref[...]                      # folded BatchNorm2d

    # junk-column mask applied once; reused for the SE pool and the stored output
    col = lax.broadcasted_iota(jnp.int32, (rows, 1), 0) % wp_r
    r = jnp.where(col < wo, r, 0.0)

    # ---- SEModule(depth, 16): global average pool over the Ho*Wo valid cells
    pooled = jnp.sum(r, axis=0, keepdims=True) * (1.0 / (ho * wo))
    hmid = jnp.maximum(
        jnp.dot(pooled, fc1_ref[...], preferred_element_type=jnp.float32), 0.0)
    g = jax.nn.sigmoid(
        jnp.dot(hmid, fc2_ref[...], preferred_element_type=jnp.float32))
    r = r * g                                                 # channel re-weighting

    # ---- shortcut
    if identity:                               # MaxPool2d(1, stride) == strided identity
        r = r + sc_ref[0]
    else:                                      # 1x1 conv (stride) + BatchNorm projection
        sc = jnp.dot(sc_ref[0], wsc_ref[...], preferred_element_type=jnp.float32)
        r = r + (sc * ssc_ref[...] + bsc_ref[...])
    o_ref[0] = r


# ------------------------------------------------------------------ forward
def bottleneck_ir_se_forward(x_nchw, params, stride):
    in_ch = x_nchw.shape[1]
    depth = params["w1"].shape[0]
    mid = depth // 16
    x = jnp.transpose(x_nchw, (0, 2, 3, 1)).astype(jnp.float32)     # NHWC (raw, shortcut)
    n, h, w, _ = x.shape
    hi = h + 2
    wi_r = _round_up(w + 2, 8)                # sublane-aligned raster width
    lf1 = _LEAD + hi * wi_r + _TAIL
    rows1 = h * wi_r

    a1, b1 = _fold_bn(params["bn1_gamma"], params["bn1_beta"],
                      params["bn1_mean"], params["bn1_var"])
    a2, b2 = _fold_bn(params["bn2_gamma"], params["bn2_beta"],
                      params["bn2_mean"], params["bn2_var"])

    # ---- stage 1: BN1 folded into the input (so the conv's zero padding stays
    #      exact), then a single bf16 padded, row-flattened activation in HBM.
    xbn = (x * a1 + b1).astype(jnp.bfloat16)
    xp = jnp.pad(xbn, ((0, 0), (1, 1), (1, wi_r - 1 - w), (0, 0)))  # (n, hi, wi_r, Cin)
    xf = jnp.pad(xp.reshape(n, hi * wi_r, in_ch),
                 ((0, 0), (_LEAD, _TAIL), (0, 0)))
    w1p = jnp.transpose(params["w1"], (2, 3, 1, 0)).reshape(3, 3 * in_ch, depth)
    w1p = w1p.astype(jnp.bfloat16)
    alpha = params["prelu_alpha"].astype(jnp.float32)[None, :]

    s1_bytes = (2 * lf1 * in_ch * 2 + 2 * lf1 * depth * 2
                + 9 * in_ch * depth * 2 + 6 * rows1 * depth * 4)
    y1f = pl.pallas_call(
        functools.partial(_stage1_kernel, h=h, w=w, wi_r=wi_r, lead=_LEAD),
        out_shape=jax.ShapeDtypeStruct((n, lf1, depth), jnp.bfloat16),
        grid=(n,),
        in_specs=[
            pl.BlockSpec((1, lf1, in_ch), lambda i: (i, 0, 0)),
            _const_spec((3, 3 * in_ch, depth)),      # weights: single-buffered
            _const_spec((1, depth)),
        ],
        out_specs=pl.BlockSpec((1, lf1, depth), lambda i: (i, 0, 0)),
        compiler_params=_compiler_params(s1_bytes),
    )(xf, w1p, alpha)

    # ---- stage 2 geometry
    ho = (h - 1) // stride + 1
    wo = (w - 1) // stride + 1
    if stride == 1:
        nph, wp_r, lf2, lead2 = 1, wi_r, lf1, _LEAD
        phases = y1f.reshape(n, 1, lf1, depth)       # no inter-stage HBM pass
    else:
        ext = -(-2 // stride)                        # halo rows/cols per phase plane
        hp = ho + ext
        wp_r = _round_up(wo + ext, 8)                # aligned phase-plane width
        nph = stride * stride
        lf2 = hp * wp_r + 8
        lead2 = 0
        y1r = y1f[:, _LEAD:_LEAD + hi * wi_r, :].reshape(n, hi, wi_r, depth)
        th, tw = stride * hp, stride * wp_r
        y1r = jnp.pad(y1r, ((0, 0), (0, max(0, th - hi)),
                            (0, max(0, tw - wi_r)), (0, 0)))[:, :th, :tw, :]
        phases = jnp.stack([y1r[:, py::stride, px::stride, :]
                            for py in range(stride) for px in range(stride)], axis=1)
        phases = phases.reshape(n, nph, hp * wp_r, depth)
        phases = jnp.pad(phases, ((0, 0), (0, 0), (0, lf2 - hp * wp_r), (0, 0)))
    rows2 = ho * wp_r

    w2p = jnp.transpose(params["w2"], (2, 3, 1, 0)).reshape(3, 3 * depth, depth)
    w2p = w2p.astype(jnp.bfloat16)
    fc1 = params["se_fc1"][:, :, 0, 0].T.astype(jnp.float32)        # (D, D//16)
    fc2 = params["se_fc2"][:, :, 0, 0].T.astype(jnp.float32)        # (D//16, D)

    identity = (in_ch == depth)
    # shortcut input (raw x, strided) on the (Ho, Wr) raster with zeroed junk cols
    xs = x[:, ::stride, ::stride, :]
    xs = jnp.pad(xs, ((0, 0), (0, 0), (0, wp_r - wo), (0, 0))).reshape(n, rows2, in_ch)
    xs = xs.astype(jnp.float32 if identity else jnp.bfloat16)

    in_specs = [
        pl.BlockSpec((1, nph, lf2, depth), lambda i: (i, 0, 0, 0)),
        _const_spec((3, 3 * depth, depth)),
        _const_spec((1, depth)),
        _const_spec((1, depth)),
        _const_spec((depth, mid)),
        _const_spec((mid, depth)),
        pl.BlockSpec((1, rows2, in_ch), lambda i: (i, 0, 0)),
    ]
    args = [phases, w2p, a2[None, :], b2[None, :], fc1, fc2, xs]
    if not identity:
        wsc = params["w_sc"][:, :, 0, 0].T.astype(jnp.bfloat16)     # (Cin, D)
        asc, bsc = _fold_bn(params["bnsc_gamma"], params["bnsc_beta"],
                            params["bnsc_mean"], params["bnsc_var"])
        in_specs += [_const_spec((in_ch, depth)),
                     _const_spec((1, depth)),
                     _const_spec((1, depth))]
        args += [wsc, asc[None, :], bsc[None, :]]

    s2_bytes = (2 * nph * lf2 * depth * 2
                + 2 * rows2 * in_ch * (4 if identity else 2)
                + 2 * rows2 * depth * 4
                + 9 * depth * depth * 2 + 6 * rows2 * depth * 4)
    out = pl.pallas_call(
        functools.partial(_stage2_kernel, stride=stride, ho=ho, wo=wo,
                          wp_r=wp_r, lead=lead2, identity=identity),
        out_shape=jax.ShapeDtypeStruct((n, rows2, depth), jnp.float32),
        grid=(n,),
        in_specs=in_specs,
        out_specs=pl.BlockSpec((1, rows2, depth), lambda i: (i, 0, 0)),
        compiler_params=_compiler_params(s2_bytes),
    )(*args)

    out = out.reshape(n, ho, wp_r, depth)[:, :, :wo, :]             # drop junk columns
    return jnp.transpose(out, (0, 3, 1, 2))                         # back to NCHW


# ------------------------------------------------------------------ reference (pure JAX, f32)
def _ref_forward(x_nchw, params, stride):
    in_ch = x_nchw.shape[1]
    depth = params["w1"].shape[0]
    x = jnp.transpose(x_nchw, (0, 2, 3, 1)).astype(jnp.float32)

    def conv3x3(z, w_oihw, s):
        wh = jnp.transpose(w_oihw, (2, 3, 1, 0))
        return lax.conv_general_dilated(z, wh, (s, s), ((1, 1), (1, 1)),
                                        dimension_numbers=("NHWC", "HWIO", "NHWC"))

    a1, b1 = _fold_bn(params["bn1_gamma"], params["bn1_beta"],
                      params["bn1_mean"], params["bn1_var"])
    a2, b2 = _fold_bn(params["bn2_gamma"], params["bn2_beta"],
                      params["bn2_mean"], params["bn2_var"])

    r = x * a1 + b1
    r = conv3x3(r, params["w1"], 1)
    r = jnp.where(r > 0, r, r * params["prelu_alpha"])
    r = conv3x3(r, params["w2"], stride)
    r = r * a2 + b2
    pooled = jnp.mean(r, axis=(1, 2), keepdims=True)
    fc1 = params["se_fc1"][:, :, 0, 0].T
    fc2 = params["se_fc2"][:, :, 0, 0].T
    hmid = jnp.maximum(jnp.einsum("nhwc,cm->nhwm", pooled, fc1), 0.0)
    g = jax.nn.sigmoid(jnp.einsum("nhwm,mc->nhwc", hmid, fc2))
    r = r * g
    xs = x[:, ::stride, ::stride, :]
    if in_ch == depth:
        sc = xs
    else:
        asc, bsc = _fold_bn(params["bnsc_gamma"], params["bnsc_beta"],
                            params["bnsc_mean"], params["bnsc_var"])
        sc = jnp.einsum("nhwc,cd->nhwd", xs, params["w_sc"][:, :, 0, 0].T) * asc + bsc
    return jnp.transpose(r + sc, (0, 3, 1, 2))


# ------------------------------------------------------------------ params
def init_params(key, in_ch, depth):
    mid = depth // 16
    ks = jax.random.split(key, 20)
    u = lambda k, s: jax.random.uniform(k, s, jnp.float32, 0.5, 1.5)
    nrm = lambda k, s, sc=0.1: jax.random.normal(k, s, jnp.float32) * sc
    p = {
        "bn1_gamma": u(ks[0], (in_ch,)), "bn1_beta": nrm(ks[1], (in_ch,)),
        "bn1_mean": nrm(ks[2], (in_ch,)), "bn1_var": u(ks[3], (in_ch,)),
        "w1": nrm(ks[4], (depth, in_ch, 3, 3)),
        "prelu_alpha": 0.25 + nrm(ks[5], (depth,), 0.05),
        "w2": nrm(ks[6], (depth, depth, 3, 3)),
        "bn2_gamma": u(ks[7], (depth,)), "bn2_beta": nrm(ks[8], (depth,)),
        "bn2_mean": nrm(ks[9], (depth,)), "bn2_var": u(ks[10], (depth,)),
        "se_fc1": nrm(ks[11], (mid, depth, 1, 1)),
        "se_fc2": nrm(ks[12], (depth, mid, 1, 1)),
    }
    if in_ch != depth:
        p.update({
            "w_sc": nrm(ks[13], (depth, in_ch, 1, 1)),
            "bnsc_gamma": u(ks[14], (depth,)), "bnsc_beta": nrm(ks[15], (depth,)),
            "bnsc_mean": nrm(ks[16], (depth,)), "bnsc_var": u(ks[17], (depth,)),
        })
    return p


# ------------------------------------------------------------------ main
if __name__ == "__main__":
    key = jax.random.PRNGKey(0)
    configs = [
        (16, 32, 2),   # projection shortcut (1x1 conv + BN), stride 2
        (32, 32, 1),   # identity shortcut (MaxPool2d(1, 1)), stride 1
    ]
    n, hw_size = 2, 16
    for idx, (in_ch, depth, stride) in enumerate(configs):
        kx, kp = jax.random.split(jax.random.fold_in(key, idx))
        x = jax.random.normal(kx, (n, in_ch, hw_size, hw_size), jnp.float32)
        params = init_params(kp, in_ch, depth)
        out = jax.block_until_ready(bottleneck_ir_se_forward(x, params, stride))
        ref = jax.block_until_ready(_ref_forward(x, params, stride))
        assert out.shape == ref.shape, (out.shape, ref.shape)
        # tolerance accounts for bf16 activations / MXU operands in the two 3x3
        # convs and the projection shortcut (all f32 accumulate); any structural
        # bug (wrong tap / phase / mask) would be O(0.1-1), far above this.
        np.testing.assert_allclose(np.asarray(out), np.asarray(ref),
                                   rtol=3e-2, atol=3e-2)
    print("KERNEL_OK")
</pallas_src>

<mosaic_0001>
module attributes {stable_mosaic.version = 11 : i64} {
  func.func @_k(%arg0: i32, %arg1: memref<8x128xf32, #tpu.memory_space<vmem>>, %arg2: memref<8x128xf32, #tpu.memory_space<vmem>>) attributes {dimension_semantics = [#tpu.dimension_semantics<arbitrary>], iteration_bounds = array<i64: 2>, scalar_prefetch = 0 : i64, scratch_operands = 0 : i64, tpu.core_type = #tpu.core_type<tc>, window_params = [{pipeline_mode = #tpu.pipeline_mode<synchronous>, transform_indices = @transform_0, window_bounds = array<i64: 8, 128>}, {transform_indices = @transform_1, window_bounds = array<i64: 8, 128>}]} {
    %c0 = arith.constant 0 : index
    %c0_0 = arith.constant 0 : index
    %0 = vector.load %arg1[%c0, %c0_0] : memref<8x128xf32, #tpu.memory_space<vmem>>, vector<8x128xf32>
    %cst = arith.constant 2.000000e+00 : f32
    %1 = vector.broadcast %cst : f32 to vector<8x128xf32>
    %2 = arith.mulf %0, %1 : vector<8x128xf32>
    %c0_1 = arith.constant 0 : index
    %c0_2 = arith.constant 0 : index
    %3 = vector.load %arg2[%c0_1, %c0_2] : memref<8x128xf32, #tpu.memory_space<vmem>>, vector<8x128xf32>
    tpu.vector_store %arg2[%c0_1, %c0_2], %2 {strides = array<i32>} : memref<8x128xf32, #tpu.memory_space<vmem>>, vector<8x128xf32>,
    return
  }
  func.func @transform_0(%arg0: i32) -> (i32, i32) {
    %c0_i32 = arith.constant 0 : i32
    %c0_i32_0 = arith.constant 0 : i32
    %c0_i32_1 = arith.constant 0 : i32
    return %c0_i32, %c0_i32_0 : i32, i32
  }
  func.func @transform_1(%arg0: i32) -> (i32, i32) {
    %c0_i32 = arith.constant 0 : i32
    %c0_i32_0 = arith.constant 0 : i32
    return %arg0, %c0_i32 : i32, i32
  }
}

module attributes {stable_mosaic.version = 11 : i64} {
  func.func @_stage1_kernel(%arg0: i32, %arg1: memref<1x448x16xbf16, #tpu.memory_space<vmem>>, %arg2: memref<3x48x32xbf16, #tpu.memory_space<vmem>>, %arg3: memref<1x32xf32, #tpu.memory_space<vmem>>, %arg4: memref<1x448x32xbf16, #tpu.memory_space<vmem>>) attributes {dimension_semantics = [#tpu.dimension_semantics<parallel>], iteration_bounds = array<i64: 2>, scalar_prefetch = 0 : i64, scratch_operands = 0 : i64, tpu.core_type = #tpu.core_type<tc>, window_params = [{transform_indices = @transform_0, window_bounds = array<i64: 1, 448, 16>}, {pipeline_mode = #tpu.pipeline_mode<synchronous>, transform_indices = @transform_1, window_bounds = array<i64: 3, 48, 32>}, {pipeline_mode = #tpu.pipeline_mode<synchronous>, transform_indices = @transform_2, window_bounds = array<i64: 1, 32>}, {transform_indices = @transform_3, window_bounds = array<i64: 1, 448, 32>}]} {
    %c0 = arith.constant 0 : index
    %c7 = arith.constant 7 : index
    %c0_0 = arith.constant 0 : index
    %0 = vector.load %arg1[%c0, %c7, %c0_0] : memref<1x448x16xbf16, #tpu.memory_space<vmem>>, vector<1x384x16xbf16>
    %1 = vector.shape_cast %0 : vector<1x384x16xbf16> to vector<384x16xbf16>
    %c0_1 = arith.constant 0 : index
    %c8 = arith.constant 8 : index
    %c0_2 = arith.constant 0 : index
    %2 = vector.load %arg1[%c0_1, %c8, %c0_2] : memref<1x448x16xbf16, #tpu.memory_space<vmem>>, vector<1x384x16xbf16>
    %3 = vector.shape_cast %2 : vector<1x384x16xbf16> to vector<384x16xbf16>
    %c0_3 = arith.constant 0 : index
    %c9 = arith.constant 9 : index
    %c0_4 = arith.constant 0 : index
    %4 = vector.load %arg1[%c0_3, %c9, %c0_4] : memref<1x448x16xbf16, #tpu.memory_space<vmem>>, vector<1x384x16xbf16>
    %5 = vector.shape_cast %4 : vector<1x384x16xbf16> to vector<384x16xbf16>
    %6 = tpu.concatenate %1, %3, %5 in 1 : vector<384x16xbf16>, vector<384x16xbf16>, vector<384x16xbf16> -> vector<384x48xbf16>
    %c0_5 = arith.constant 0 : index
    %c0_6 = arith.constant 0 : index
    %c0_7 = arith.constant 0 : index
    %7 = vector.load %arg2[%c0_5, %c0_6, %c0_7] : memref<3x48x32xbf16, #tpu.memory_space<vmem>>, vector<1x48x32xbf16>
    %8 = vector.shape_cast %7 : vector<1x48x32xbf16> to vector<48x32xbf16>
    %cst = arith.constant dense<0.000000e+00> : vector<384x32xf32>
    %9 = tpu.matmul %6, %8, %cst {dimension_numbers = #tpu.dot_dimension_numbers<[1], [0], [0], [1], [0, 0, 1, 1], [], []>} : vector<384x48xbf16>, vector<48x32xbf16>, vector<384x32xf32> -> vector<384x32xf32>
    %c0_8 = arith.constant 0 : index
    %c31 = arith.constant 31 : index
    %c0_9 = arith.constant 0 : index
    %10 = vector.load %arg1[%c0_8, %c31, %c0_9] : memref<1x448x16xbf16, #tpu.memory_space<vmem>>, vector<1x384x16xbf16>
    %11 = vector.shape_cast %10 : vector<1x384x16xbf16> to vector<384x16xbf16>
    %c0_10 = arith.constant 0 : index
    %c32 = arith.constant 32 : index
    %c0_11 = arith.constant 0 : index
    %12 = vector.load %arg1[%c0_10, %c32, %c0_11] : memref<1x448x16xbf16, #tpu.memory_space<vmem>>, vector<1x384x16xbf16>
    %13 = vector.shape_cast %12 : vector<1x384x16xbf16> to vector<384x16xbf16>
    %c0_12 = arith.constant 0 : index
    %c33 = arith.constant 33 : index
    %c0_13 = arith.constant 0 : index
    %14 = vector.load %arg1[%c0_12, %c33, %c0_13] : memref<1x448x16xbf16, #tpu.memory_space<vmem>>, vector<1x384x16xbf16>
    %15 = vector.shape_cast %14 : vector<1x384x16xbf16> to vector<384x16xbf16>
    %16 = tpu.concatenate %11, %13, %15 in 1 : vector<384x16xbf16>, vector<384x16xbf16>, vector<384x16xbf16> -> vector<384x48xbf16>
    %c1 = arith.constant 1 : index
    %c0_14 = arith.constant 0 : index
    %c0_15 = arith.constant 0 : index
    %17 = vector.load %arg2[%c1, %c0_14, %c0_15] : memref<3x48x32xbf16, #tpu.memory_space<vmem>>, vector<1x48x32xbf16>
    %18 = vector.shape_cast %17 : vector<1x48x32xbf16> to vector<48x32xbf16>
    %cst_16 = arith.constant dense<0.000000e+00> : vector<384x32xf32>
    %19 = tpu.matmul %16, %18, %cst_16 {dimension_numbers = #tpu.dot_dimension_numbers<[1], [0], [0], [1], [0, 0, 1, 1], [], []>} : vector<384x48xbf16>, vector<48x32xbf16>, vector<384x32xf32> -> vector<384x32xf32>
    %20 = arith.addf %9, %19 : vector<384x32xf32>
    %c0_17 = arith.constant 0 : index
    %c55 = arith.constant 55 : index
    %c0_18 = arith.constant 0 : index
    %21 = vector.load %arg1[%c0_17, %c55, %c0_18] : memref<1x448x16xbf16, #tpu.memory_space<vmem>>, vector<1x384x16xbf16>
    %22 = vector.shape_cast %21 : vector<1x384x16xbf16> to vector<384x16xbf16>
    %c0_19 = arith.constant 0 : index
    %c56 = arith.constant 56 : index
    %c0_20 = arith.constant 0 : index
    %23 = vector.load %arg1[%c0_19, %c56, %c0_20] : memref<1x448x16xbf16, #tpu.memory_space<vmem>>, vector<1x384x16xbf16>
    %24 = vector.shape_cast %23 : vector<1x384x16xbf16> to vector<384x16xbf16>
    %c0_21 = arith.constant 0 : index
    %c57 = arith.constant 57 : index
    %c0_22 = arith.constant 0 : index
    %25 = vector.load %arg1[%c0_21, %c57, %c0_22] : memref<1x448x16xbf16, #tpu.memory_space<vmem>>, vector<1x384x16xbf16>
    %26 = vector.shape_cast %25 : vector<1x384x16xbf16> to vector<384x16xbf16>
    %27 = tpu.concatenate %22, %24, %26 in 1 : vector<384x16xbf16>, vector<384x16xbf16>, vector<384x16xbf16> -> vector<384x48xbf16>
    %c2 = arith.constant 2 : index
    %c0_23 = arith.constant 0 : index
    %c0_24 = arith.constant 0 : index
    %28 = vector.load %arg2[%c2, %c0_23, %c0_24] : memref<3x48x32xbf16, #tpu.memory_space<vmem>>, vector<1x48x32xbf16>
    %29 = vector.shape_cast %28 : vector<1x48x32xbf16> to vector<48x32xbf16>
    %cst_25 = arith.constant dense<0.000000e+00> : vector<384x32xf32>
    %30 = tpu.matmul %27, %29, %cst_25 {dimension_numbers = #tpu.dot_dimension_numbers<[1], [0], [0], [1], [0, 0, 1, 1], [], []>} : vector<384x48xbf16>, vector<48x32xbf16>, vector<384x32xf32> -> vector<384x32xf32>
    %31 = arith.addf %20, %30 : vector<384x32xf32>
    %cst_26 = arith.constant 0.000000e+00 : f32
    %32 = vector.broadcast %cst_26 : f32 to vector<384x32xf32>
    %33 = arith.cmpf ogt, %31, %32 : vector<384x32xf32>
    %c0_27 = arith.constant 0 : index
    %c0_28 = arith.constant 0 : index
    %34 = vector.load %arg3[%c0_27, %c0_28] : memref<1x32xf32, #tpu.memory_space<vmem>>, vector<1x32xf32>
    %35 = vector.broadcast %34 : vector<1x32xf32> to vector<384x32xf32>
    %36 = arith.mulf %31, %35 : vector<384x32xf32>
    %37 = arith.select %33, %31, %36 : vector<384x32xi1>, vector<384x32xf32>
    %38 = tpu.iota {dimensions = array<i32: 0>} : vector<384x1xi32>
    %c24_i32 = arith.constant 24 : i32
    %c0_i32 = arith.constant 0 : i32
    %39 = arith.cmpi eq, %c24_i32, %c0_i32 : i32
    %c1_i32 = arith.constant 1 : i32
    %40 = arith.select %39, %c1_i32, %c24_i32 : i32
    %41 = vector.broadcast %40 : i32 to vector<384x1xi32>
    %42 = arith.remsi %38, %41 : vector<384x1xi32>
    %c0_i32_29 = arith.constant 0 : i32
    %43 = vector.broadcast %c0_i32_29 : i32 to vector<384x1xi32>
    %44 = arith.cmpi ne, %42, %43 : vector<384x1xi32>
    %c0_i32_30 = arith.constant 0 : i32
    %45 = vector.broadcast %c0_i32_30 : i32 to vector<384x1xi32>
    %46 = arith.cmpi slt, %42, %45 : vector<384x1xi32>
    %c0_i32_31 = arith.constant 0 : i32
    %47 = arith.cmpi slt, %40, %c0_i32_31 : i32
    %48 = vector.broadcast %47 : i1 to vector<384x1xi1>
    %49 = vector.broadcast %48 : vector<384x1xi1> to vector<384x1xi1>
    %50 = arith.xori %46, %49 : vector<384x1xi1>
    %51 = arith.andi %50, %44 : vector<384x1xi1>
    %52 = vector.broadcast %40 : i32 to vector<384x1xi32>
    %53 = arith.addi %42, %52 : vector<384x1xi32>
    %54 = arith.select %51, %53, %42 : vector<384x1xi1>, vector<384x1xi32>
    %c16_i32 = arith.constant 16 : i32
    %55 = vector.broadcast %c16_i32 : i32 to vector<384x1xi32>
    %56 = arith.cmpi slt, %54, %55 : vector<384x1xi32>
    %cst_32 = arith.constant 0.000000e+00 : f32
    %57 = vector.shape_cast %56 : vector<384x1xi1> to vector<384x1xi1>
    %58 = vector.broadcast %57 : vector<384x1xi1> to vector<384x32xi1>
    %59 = vector.broadcast %cst_32 : f32 to vector<384x32xf32>
    %60 = arith.select %58, %37, %59 : vector<384x32xi1>, vector<384x32xf32>
    %61 = arith.truncf %60 : vector<384x32xf32> to vector<384x32xbf16>
    %cst_33 = arith.constant 0.000000e+00 : bf16
    %62 = vector.broadcast %cst_33 : bf16 to vector<32x32xbf16>
    %c0_34 = arith.constant 0 : index
    %c0_35 = arith.constant 0 : index
    %c0_36 = arith.constant 0 : index
    %63 = vector.load %arg4[%c0_34, %c0_35, %c0_36] : memref<1x448x32xbf16, #tpu.memory_space<vmem>>, vector<1x32x32xbf16>
    %64 = vector.shape_cast %63 : vector<1x32x32xbf16> to vector<32x32xbf16>
    %65 = vector.shape_cast %62 : vector<32x32xbf16> to vector<1x32x32xbf16>
    tpu.vector_store %arg4[%c0_34, %c0_35, %c0_36], %65 {strides = array<i32>} : memref<1x448x32xbf16, #tpu.memory_space<vmem>>, vector<1x32x32xbf16>,
    %c0_37 = arith.constant 0 : index
    %c32_38 = arith.constant 32 : index
    %c0_39 = arith.constant 0 : index
    %66 = vector.load %arg4[%c0_37, %c32_38, %c0_39] : memref<1x448x32xbf16, #tpu.memory_space<vmem>>, vector<1x384x32xbf16>
    %67 = vector.shape_cast %66 : vector<1x384x32xbf16> to vector<384x32xbf16>
    %68 = vector.shape_cast %61 : vector<384x32xbf16> to vector<1x384x32xbf16>
    tpu.vector_store %arg4[%c0_37, %c32_38, %c0_39], %68 {strides = array<i32>} : memref<1x448x32xbf16, #tpu.memory_space<vmem>>, vector<1x384x32xbf16>,
    %cst_40 = arith.constant 0.000000e+00 : bf16
    %69 = vector.broadcast %cst_40 : bf16 to vector<32x32xbf16>
    %c0_41 = arith.constant 0 : index
    %c416 = arith.constant 416 : index
    %c0_42 = arith.constant 0 : index
    %70 = vector.load %arg4[%c0_41, %c416, %c0_42] : memref<1x448x32xbf16, #tpu.memory_space<vmem>>, vector<1x32x32xbf16>
    %71 = vector.shape_cast %70 : vector<1x32x32xbf16> to vector<32x32xbf16>
    %72 = vector.shape_cast %69 : vector<32x32xbf16> to vector<1x32x32xbf16>
    tpu.vector_store %arg4[%c0_41, %c416, %c0_42], %72 {strides = array<i32>} : memref<1x448x32xbf16, #tpu.memory_space<vmem>>, vector<1x32x32xbf16>,
    return
  }
  func.func @transform_0(%arg0: i32) -> (i32, i32, i32) {
    %c0_i32 = arith.constant 0 : i32
    %c0_i32_0 = arith.constant 0 : i32
    %c0_i32_1 = arith.constant 0 : i32
    return %arg0, %c0_i32, %c0_i32_0 : i32, i32, i32
  }
  func.func @transform_1(%arg0: i32) -> (i32, i32, i32) {
    %c0_i32 = arith.constant 0 : i32
    %c0_i32_0 = arith.constant 0 : i32
    %c0_i32_1 = arith.constant 0 : i32
    %c0_i32_2 = arith.constant 0 : i32
    return %c0_i32, %c0_i32_0, %c0_i32_1 : i32, i32, i32
  }
  func.func @transform_2(%arg0: i32) -> (i32, i32) {
    %c0_i32 = arith.constant 0 : i32
    %c0_i32_0 = arith.constant 0 : i32
    %c0_i32_1 = arith.constant 0 : i32
    return %c0_i32, %c0_i32_0 : i32, i32
  }
  func.func @transform_3(%arg0: i32) -> (i32, i32, i32) {
    %c0_i32 = arith.constant 0 : i32
    %c0_i32_0 = arith.constant 0 : i32
    %c0_i32_1 = arith.constant 0 : i32
    return %arg0, %c0_i32, %c0_i32_0 : i32, i32, i32
  }
}

</mosaic_0001>

<llo_original>
// kernel: tpu_custom_call.1
$region0: #{tpu_custom_call.1}
  #allocation0 [shape = 'u32[]', space=smem, size = 0x4, offset = 0x4, fixed_abs, tag = 'smem constant byte address 0x4 - core index']
  #allocation1 [shape = 'u32[144,128]{1,0:T(1,128)}', space=vmem, size = 0x12000, scoped, tag = 'internal scratch']
  %s0 = inlined_call_operand.hbm [shape: f32[8,128], index: 0, kind: input, shape index: {}]
  %s1 = inlined_call_operand.hbm [shape: f32[16,128], index: 1, kind: output, shape index: {}]
  %s2 = sld [smem:[#allocation0]]
  $region41: #{tpu_custom_call.1} parent=0
    _
  %s4 = ssub.s32 1, %s2
  %s5 = scalar_select 0, %s4, %s2
  $region1: #{tpu_custom_call.1} parent=0
    #allocation2 [shape = 'u8[4096]{0}', space=vmem, size = 0x1000, scoped, tag = 'input window, operand 0, single buffered']
    #allocation3 [shape = 's32[2]{0}', space=sflag, size = 0x8, scoped, tag = 'scoped memory for tpu_custom_call.1']
    #allocation4 [shape = 's32[2]{0}', space=sflag, size = 0x8, scoped, tag = 'scoped memory for tpu_custom_call.1']
    #allocation5 [shape = 'u8[8192]{0}', space=vmem, size = 0x2000, scoped, tag = 'output window, operand 0']
    %6 = vsyncpa [#allocation3], 0
    %7 = vsyncpa [#allocation4], 0
    %s8 = scalar_lea.sflag [#allocation4], 1
    %9 = vsyncpa %s8, 0
    loop: start=0, step=1, limit=4
    $region2: #{tpu_custom_call.1} parent=1 // loop_pre_header
      _
    $region3: #{tpu_custom_call.1} parent=1 // loop_header
      %s11 = sphi 0, %s15
      %p12 = scmp.ge.s32.totalorder %s11, 4
      %s19 = sphi 0, %s19
      %s21 = sphi 0, %s19
      %s22 = sphi 0, %s21
      %s36 = sphi 0, %s22
      %s42 = sphi 0, %s44
      %s45 = sphi 0, %s42
      %s46 = sphi 0, %s45
      %s62 = sphi 0, %s46
    $region4: #{tpu_custom_call.1} parent=1 // loop_header_branch
      %14 = sbr.rel (%p12) target = $region8
    $region5: #{tpu_custom_call.1} parent=1 // loop_body
      %s16 = ssub.s32 %s11, 1
      %s17 = ssub.s32 %s11, 2
      %s18 = sadd.s32 %s11, 1
      %s20 = sadd.s32 %s19, 1
      %p23 = scmp.eq.s32.totalorder %s11, 1
      %p24 = scmp.ne.s32.totalorder %s19, %s21
      %p25 = scmp.eq.s32.totalorder %s11, 0
      %p26 = por %p24, %p25
      %p27 = scmp.ne.s32.totalorder %s19, %s21
      %p28 = scmp.eq.s32.totalorder %s16, 1
      %p29 = por %p27, %p28
      %p30 = scmp.ne.s32.totalorder %s21, %s22
      %p31 = scmp.eq.s32.totalorder %s16, 0
      %p32 = por %p30, %p31
      %p33 = scmp.ne.s32.totalorder %s21, %s22
      %p34 = scmp.eq.s32.totalorder %s17, 1
      %p35 = por %p33, %p34
      %p37 = scmp.ne.s32.totalorder %s22, %s36
      %p38 = scmp.eq.s32.totalorder %s17, 0
      %p39 = por %p37, %p38
      %s40 = ssub.s32 %s11, %s18
      %p41 = scmp.eq.s32.totalorder %s40, 0
      %s43 = sadd.s32 %s42, 1
      %s44 = scalar_select %p41, %s42, %s43
      %p47 = pneg %p41
      %p48 = scmp.eq.s32.totalorder %s11, 1
      %p49 = por %p47, %p48
      %p50 = scmp.ne.s32.totalorder %s42, %s45
      %p51 = scmp.eq.s32.totalorder %s11, 0
      %p52 = por %p50, %p51
      %p53 = scmp.ne.s32.totalorder %s42, %s45
      %p54 = scmp.eq.s32.totalorder %s16, 1
      %p55 = por %p53, %p54
      %p56 = scmp.ne.s32.totalorder %s45, %s46
      %p57 = scmp.eq.s32.totalorder %s16, 0
      %p58 = por %p56, %p57
      %p59 = scmp.ne.s32.totalorder %s45, %s46
      %p60 = scmp.eq.s32.totalorder %s17, 1
      %p61 = por %p59, %p60
      %p63 = scmp.ne.s32.totalorder %s46, %s62
      %p64 = scmp.eq.s32.totalorder %s17, 0
      %p65 = por %p63, %p64
      %p66 = scmp.le.s32.totalorder 1, %s11
      %p67 = scmp.lt.s32.totalorder %s11, 3
      %p68 = pnand %p66, %p67
      %p69 = pneg %p68
      // Predicated region
      $region9: #{tpu_custom_call.1} parent=5 // pred_check
        _
      $region10: #{tpu_custom_call.1} parent=5 // pred_check_branch
        %71 = sbr.rel (%p68) target = $region12
      $region11: #{tpu_custom_call.1} parent=5 // pred_region
        %s72 = ssub.s32 %s11, 1
        // Predicated region
        $region13: #{tpu_custom_call.1} parent=11 // pred_check
          %p73 = pneg %p32
        $region14: #{tpu_custom_call.1} parent=11 // pred_check_branch
          %75 = sbr.rel (%p73) target = $region16
        $region15: #{tpu_custom_call.1} parent=11 // pred_region
          %s77 = ssub.s32 128, 128
          %78 = vsyncadd [#allocation3], %s77
          %s80 = sshll.u32 [#allocation2], 4
          %s81 = int_to_ptr.vmem [resolvable:$true] %s80
          %83 = dma.hbm_to_vmem [thread:$0]  %s0, 128, %s81, [#allocation3]
        $region16: #{tpu_custom_call.1} parent=11 // pred_fallthru
          _
      $region12: #{tpu_custom_call.1} parent=5 // pred_fallthru
        _
      %p84 = scmp.lt.s32.totalorder %s11, 2
      // Predicated region
      $region17: #{tpu_custom_call.1} parent=5 // pred_check
        %p85 = pneg %p84
      $region18: #{tpu_custom_call.1} parent=5 // pred_check_branch
        %87 = sbr.rel (%p85) target = $region20
      $region19: #{tpu_custom_call.1} parent=5 // pred_region
        _
      $region20: #{tpu_custom_call.1} parent=5 // pred_fallthru
        _
      %p88 = scmp.le.s32.totalorder 1, %s11
      %p89 = scmp.lt.s32.totalorder %s11, 3
      %p90 = pnand %p88, %p89
      %p91 = pneg %p90
      // Predicated region
      $region21: #{tpu_custom_call.1} parent=5 // pred_check
        _
      $region22: #{tpu_custom_call.1} parent=5 // pred_check_branch
        %93 = sbr.rel (%p90) target = $region24
      $region23: #{tpu_custom_call.1} parent=5 // pred_region
        %s94 = ssub.s32 %s11, 1
        // Predicated region
        $region25: #{tpu_custom_call.1} parent=23 // pred_check
          %p95 = pneg %p32
        $region26: #{tpu_custom_call.1} parent=23 // pred_check_branch
          %97 = sbr.rel (%p95) target = $region28
        $region27: #{tpu_custom_call.1} parent=23 // pred_region
          %98 = dma.done [#allocation3], 128
        $region28: #{tpu_custom_call.1} parent=23 // pred_fallthru
          _
        %p99 = pneg %p32
        %p100 = pneg %p29
        %p101 = pneg %p58
        %p102 = pneg %p55
        %s103 = sand.u32 %s45, 1
        %s104 = scalar_lea.sflag [#allocation4], %s103
        %s105 = sand.u32 %s45, 1
        %s106 = smul.addr %s105, 8
        %s107 = scalar_lea.vmem [#allocation5], %s106
        %v108 = vld [vmem:[#allocation2] sm:$0xff]
        %v109 = vmul.f32 %v108, 2.0
        %110 = vst [vmem:[%s107] sm:$0xff] %v109
        %s111 = sand.u32 %s45, 1
        %s112 = scalar_lea.sflag [#allocation4], %s111
        %s113 = sand.u32 %s45, 1
        %s114 = smul.addr %s113, 8
        %s115 = scalar_lea.vmem [#allocation5], %s114
        // Predicated region
        $region29: #{tpu_custom_call.1} parent=23 // pred_check
          %p116 = pneg %p55
        $region30: #{tpu_custom_call.1} parent=23 // pred_check_branch
          %118 = sbr.rel (%p116) target = $region32
        $region31: #{tpu_custom_call.1} parent=23 // pred_region
          %s120 = ssub.s32 128, 128
          %121 = vsyncadd %s112, %s120
          %s122 = smul.addr %s16, 128
          %s123 = scalar_lea.hbm %s1, %s122
          %s125 = sshll.u32 %s115, 4
          %s126 = int_to_ptr.vmem [resolvable:$true] %s125
          %128 = dma.vmem_to_hbm [thread:$0]  %s126, 128, %s123, %s112
        $region32: #{tpu_custom_call.1} parent=23 // pred_fallthru
          _
      $region24: #{tpu_custom_call.1} parent=5 // pred_fallthru
        _
      %p129 = scmp.le.s32.totalorder 2, %s11
      // Predicated region
      $region33: #{tpu_custom_call.1} parent=5 // pred_check
        %p130 = pneg %p129
      $region34: #{tpu_custom_call.1} parent=5 // pred_check_branch
        %132 = sbr.rel (%p130) target = $region36
      $region35: #{tpu_custom_call.1} parent=5 // pred_region
        %s133 = ssub.s32 %s11, 2
        // Predicated region
        $region37: #{tpu_custom_call.1} parent=35 // pred_check
          %p134 = pneg %p61
        $region38: #{tpu_custom_call.1} parent=35 // pred_check_branch
          %136 = sbr.rel (%p134) target = $region40
        $region39: #{tpu_custom_call.1} parent=35 // pred_region
          %s137 = sand.u32 %s46, 1
          %s138 = scalar_lea.sflag [#allocation4], %s137
          %s139 = sand.u32 %s46, 1
          %s140 = smul.addr %s139, 8
          %s141 = scalar_lea.vmem [#allocation5], %s140
          %142 = dma.done %s138, 128
        $region40: #{tpu_custom_call.1} parent=35 // pred_fallthru
          _
      $region36: #{tpu_custom_call.1} parent=5 // pred_fallthru
        _
    $region6: #{tpu_custom_call.1} parent=1 // loop_footer
      %s15 = sadd.s32 1, %s11
    $region7: #{tpu_custom_call.1} parent=1 // loop_footer_branch
      %10 = sbr.rel target = $region3
    $region8: #{tpu_custom_call.1} parent=1 // loop_exit
      _
    %143 = vsyncpa [#allocation3], 1
    %s144 = scalar_lea.sflag [#allocation3], 1
    %145 = vsyncpa %s144, 1
    %146 = vsyncpa [#allocation4], 1
    %s147 = scalar_lea.sflag [#allocation4], 1
    %148 = vsyncpa %s147, 1

// kernel: tpu_custom_call.1
$region0: #{tpu_custom_call.1}
  #allocation0 [shape = 'u32[]', space=smem, size = 0x4, offset = 0x4, fixed_abs, tag = 'smem constant byte address 0x4 - core index']
  #allocation1 [shape = 'u32[144,128]{1,0:T(1,128)}', space=vmem, size = 0x12000, scoped, tag = 'internal scratch']
  %s0 = inlined_call_operand.vmem [shape: bf16[2,448,16], index: 0, kind: input, shape index: {}]
  %s1 = inlined_call_operand.vmem [shape: bf16[3,48,32], index: 1, kind: input, shape index: {}]
  %s2 = inlined_call_operand.vmem [shape: f32[1,32], index: 2, kind: input, shape index: {}]
  %s3 = inlined_call_operand.vmem [shape: bf16[2,448,32], index: 3, kind: output, shape index: {}]
  %s4 = sld [smem:[#allocation0]]
  $region45: #{tpu_custom_call.1} parent=0
    _
  %s6 = ssub.s32 1, %s4
  %s7 = scalar_select 0, %s6, %s4
  loop: start=0, step=1, limit=4
  $region2: #{tpu_custom_call.1} parent=0 // loop_pre_header
    _
  $region3: #{tpu_custom_call.1} parent=0 // loop_header
    %s9 = sphi 0, %s13
    %p10 = scmp.ge.s32.totalorder %s9, 4
    %s19 = sphi 0, %s21
    %s22 = sphi 0, %s19
    %s23 = sphi 0, %s22
    %s39 = sphi 0, %s23
    %s43 = sphi 0, %s43
    %s45 = sphi 0, %s43
    %s46 = sphi 0, %s45
    %s60 = sphi 0, %s46
    %s64 = sphi 0, %s64
    %s66 = sphi 0, %s64
    %s67 = sphi 0, %s66
    %s81 = sphi 0, %s67
    %s87 = sphi 0, %s89
    %s90 = sphi 0, %s87
    %s91 = sphi 0, %s90
    %s107 = sphi 0, %s91
  $region4: #{tpu_custom_call.1} parent=0 // loop_header_branch
    %12 = sbr.rel (%p10) target = $region8
  $region5: #{tpu_custom_call.1} parent=0 // loop_body
    %s14 = ssub.s32 %s9, 1
    %s15 = ssub.s32 %s9, 2
    %s16 = sadd.s32 %s9, 1
    %s17 = ssub.s32 %s9, %s16
    %p18 = scmp.eq.s32.totalorder %s17, 0
    %s20 = sadd.s32 %s19, 1
    %s21 = scalar_select %p18, %s19, %s20
    %p24 = pneg %p18
    %p25 = scmp.eq.s32.totalorder %s9, 1
    %p26 = por %p24, %p25
    %p27 = scmp.ne.s32.totalorder %s19, %s22
    %p28 = scmp.eq.s32.totalorder %s9, 0
    %p29 = por %p27, %p28
    %p30 = scmp.ne.s32.totalorder %s19, %s22
    %p31 = scmp.eq.s32.totalorder %s14, 1
    %p32 = por %p30, %p31
    %p33 = scmp.ne.s32.totalorder %s22, %s23
    %p34 = scmp.eq.s32.totalorder %s14, 0
    %p35 = por %p33, %p34
    %p36 = scmp.ne.s32.totalorder %s22, %s23
    %p37 = scmp.eq.s32.totalorder %s15, 1
    %p38 = por %p36, %p37
    %p40 = scmp.ne.s32.totalorder %s23, %s39
    %p41 = scmp.eq.s32.totalorder %s15, 0
    %p42 = por %p40, %p41
    %s44 = sadd.s32 %s43, 1
    %p47 = scmp.eq.s32.totalorder %s9, 1
    %p48 = scmp.ne.s32.totalorder %s43, %s45
    %p49 = scmp.eq.s32.totalorder %s9, 0
    %p50 = por %p48, %p49
    %p51 = scmp.ne.s32.totalorder %s43, %s45
    %p52 = scmp.eq.s32.totalorder %s14, 1
    %p53 = por %p51, %p52
    %p54 = scmp.ne.s32.totalorder %s45, %s46
    %p55 = scmp.eq.s32.totalorder %s14, 0
    %p56 = por %p54, %p55
    %p57 = scmp.ne.s32.totalorder %s45, %s46
    %p58 = scmp.eq.s32.totalorder %s15, 1
    %p59 = por %p57, %p58
    %p61 = scmp.ne.s32.totalorder %s46, %s60
    %p62 = scmp.eq.s32.totalorder %s15, 0
    %p63 = por %p61, %p62
    %s65 = sadd.s32 %s64, 1
    %p68 = scmp.eq.s32.totalorder %s9, 1
    %p69 = scmp.ne.s32.totalorder %s64, %s66
    %p70 = scmp.eq.s32.totalorder %s9, 0
    %p71 = por %p69, %p70
    %p72 = scmp.ne.s32.totalorder %s64, %s66
    %p73 = scmp.eq.s32.totalorder %s14, 1
    %p74 = por %p72, %p73
    %p75 = scmp.ne.s32.totalorder %s66, %s67
    %p76 = scmp.eq.s32.totalorder %s14, 0
    %p77 = por %p75, %p76
    %p78 = scmp.ne.s32.totalorder %s66, %s67
    %p79 = scmp.eq.s32.totalorder %s15, 1
    %p80 = por %p78, %p79
    %p82 = scmp.ne.s32.totalorder %s67, %s81
    %p83 = scmp.eq.s32.totalorder %s15, 0
    %p84 = por %p82, %p83
    %s85 = ssub.s32 %s9, %s16
    %p86 = scmp.eq.s32.totalorder %s85, 0
    %s88 = sadd.s32 %s87, 1
    %s89 = scalar_select %p86, %s87, %s88
    %p92 = pneg %p86
    %p93 = scmp.eq.s32.totalorder %s9, 1
    %p94 = por %p92, %p93
    %p95 = scmp.ne.s32.totalorder %s87, %s90
    %p96 = scmp.eq.s32.totalorder %s9, 0
    %p97 = por %p95, %p96
    %p98 = scmp.ne.s32.totalorder %s87, %s90
    %p99 = scmp.eq.s32.totalorder %s14, 1
    %p100 = por %p98, %p99
    %p101 = scmp.ne.s32.totalorder %s90, %s91
    %p102 = scmp.eq.s32.totalorder %s14, 0
    %p103 = por %p101, %p102
    %p104 = scmp.ne.s32.totalorder %s90, %s91
    %p105 = scmp.eq.s32.totalorder %s15, 1
    %p106 = por %p104, %p105
    %p108 = scmp.ne.s32.totalorder %s91, %s107
    %p109 = scmp.eq.s32.totalorder %s15, 0
    %p110 = por %p108, %p109
    %p111 = scmp.le.s32.totalorder 1, %s9
    %p112 = scmp.lt.s32.totalorder %s9, 3
    %p113 = pnand %p111, %p112
    %p114 = pneg %p113
    // Predicated region
    $region9: #{tpu_custom_call.1} parent=5 // pred_check
      _
    $region10: #{tpu_custom_call.1} parent=5 // pred_check_branch
      %116 = sbr.rel (%p113) target = $region12
    $region11: #{tpu_custom_call.1} parent=5 // pred_region
      %s117 = ssub.s32 %s9, 1
      // Predicated region
      $region13: #{tpu_custom_call.1} parent=11 // pred_check
        %p118 = pneg %p56
      $region14: #{tpu_custom_call.1} parent=11 // pred_check_branch
        %120 = sbr.rel (%p118) target = $region16
      $region15: #{tpu_custom_call.1} parent=11 // pred_region
        _
      $region16: #{tpu_custom_call.1} parent=11 // pred_fallthru
        _
      // Predicated region
      $region17: #{tpu_custom_call.1} parent=11 // pred_check
        %p121 = pneg %p77
      $region18: #{tpu_custom_call.1} parent=11 // pred_check_branch
        %123 = sbr.rel (%p121) target = $region20
      $region19: #{tpu_custom_call.1} parent=11 // pred_region
        _
      $region20: #{tpu_custom_call.1} parent=11 // pred_fallthru
        _
    $region12: #{tpu_custom_call.1} parent=5 // pred_fallthru
      _
    %p124 = scmp.lt.s32.totalorder %s9, 2
    // Predicated region
    $region21: #{tpu_custom_call.1} parent=5 // pred_check
      %p125 = pneg %p124
    $region22: #{tpu_custom_call.1} parent=5 // pred_check_branch
      %127 = sbr.rel (%p125) target = $region24
    $region23: #{tpu_custom_call.1} parent=5 // pred_region
      // Predicated region
      $region25: #{tpu_custom_call.1} parent=23 // pred_check
        %p128 = pneg %p29
      $region26: #{tpu_custom_call.1} parent=23 // pred_check_branch
        %130 = sbr.rel (%p128) target = $region28
      $region27: #{tpu_custom_call.1} parent=23 // pred_region
        %p131 = scmp.lt.s32.totalorder %s9, 1
        %s132 = scalar_select %p131, %s9, 1
        %s133 = smul.addr %s132, 56
        %s134 = smul.addr %s133, 4
        %s135 = scalar_lea.vmem %s0, %s134
      $region28: #{tpu_custom_call.1} parent=23 // pred_fallthru
        _
    $region24: #{tpu_custom_call.1} parent=5 // pred_fallthru
      _
    %p136 = scmp.le.s32.totalorder 1, %s9
    %p137 = scmp.lt.s32.totalorder %s9, 3
    %p138 = pnand %p136, %p137
    %p139 = pneg %p138
    // Predicated region
    $region29: #{tpu_custom_call.1} parent=5 // pred_check
      _
    $region30: #{tpu_custom_call.1} parent=5 // pred_check_branch
      %141 = sbr.rel (%p138) target = $region32
    $region31: #{tpu_custom_call.1} parent=5 // pred_region
      %s142 = ssub.s32 %s9, 1
      %p143 = scmp.lt.s32.totalorder %s14, 1
      %s144 = scalar_select %p143, %s14, 1
      %s145 = smul.addr %s144, 56
      %s146 = smul.addr %s145, 4
      %s147 = scalar_lea.vmem %s0, %s146
      %p148 = pneg %p35
      %p149 = pneg %p32
      %p150 = pneg %p56
      %p151 = pneg %p53
      %p152 = pneg %p77
      %p153 = pneg %p74
      %p154 = pneg %p103
      %p155 = pneg %p100
      %p156 = scmp.lt.s32.totalorder %s14, 1
      %s157 = scalar_select %p156, %s14, 1
      %s158 = smul.addr %s157, 56
      %s159 = smul.addr %s158, 4
      %s160 = scalar_lea.vmem %s3, %s159
      %p161 = scmp.lt.s32.totalorder %s14, 1
      %s162 = scalar_select %p161, %s14, 1
      %s163 = smul.addr %s162, 56
      %s164 = smul.addr %s163, 4
      %s165 = scalar_lea.vmem %s0, %s164
      %p166 = scmp.lt.s32.totalorder %s14, 1
      %s167 = scalar_select %p166, %s14, 1
      %s168 = smul.addr %s167, 56
      %s169 = smul.addr %s168, 4
      %s170 = scalar_lea.vmem %s3, %s169
      %v172 = vld [vmem:[%s165] sm:$0x8]
      %v173 = vld [vmem:[%s165 + $0x4] sm:$0xf]
      %v174 = vld [vmem:[%s165 + $0x8] sm:$0xf]
      %v175 = vld [vmem:[%s165 + $0xc] sm:$0xf]
      %v176 = vld [vmem:[%s165 + $0x10] sm:$0xf]
      %v177 = vld [vmem:[%s165 + $0x14] sm:$0xf]
      %v178 = vld [vmem:[%s165 + $0x18] sm:$0xf]
      %v179 = vld [vmem:[%s165 + $0x1c] sm:$0xf]
      %v180 = vld [vmem:[%s165 + $0x20] sm:$0xf]
      %v181 = vld [vmem:[%s165 + $0x24] sm:$0xf]
      %v182 = vld [vmem:[%s165 + $0x28] sm:$0xf]
      %v183 = vld [vmem:[%s165 + $0x2c] sm:$0xf]
      %v184 = vld [vmem:[%s165 + $0x30] sm:$0xf]
      %v185 = vld [vmem:[%s165 + $0x34] sm:$0xf]
      %v186 = vld [vmem:[%s165 + $0x38] sm:$0xf]
      %v187 = vld [vmem:[%s165 + $0x3c] sm:$0xf]
      %v188 = vld [vmem:[%s165 + $0x40] sm:$0xf]
      %v189 = vld [vmem:[%s165 + $0x44] sm:$0xf]
      %v190 = vld [vmem:[%s165 + $0x48] sm:$0xf]
      %v191 = vld [vmem:[%s165 + $0x4c] sm:$0xf]
      %v192 = vld [vmem:[%s165 + $0x50] sm:$0xf]
      %v193 = vld [vmem:[%s165 + $0x54] sm:$0xf]
      %v194 = vld [vmem:[%s165 + $0x58] sm:$0xf]
      %v195 = vld [vmem:[%s165 + $0x5c] sm:$0xf]
      %v196 = vld [vmem:[%s165 + $0x60] sm:$0xf]
      %v197 = vld [vmem:[%s165 + $0x64] sm:$0xf]
      %v198 = vld [vmem:[%s165 + $0x68] sm:$0xf]
      %v199 = vld [vmem:[%s165 + $0x6c] sm:$0xf]
      %v200 = vld [vmem:[%s165 + $0x70] sm:$0xf]
      %v201 = vld [vmem:[%s165 + $0x74] sm:$0xf]
      %v202 = vld [vmem:[%s165 + $0x78] sm:$0xf]
      %v203 = vld [vmem:[%s165 + $0x7c] sm:$0xf]
      %v204 = vld [vmem:[%s165 + $0x80] sm:$0xf]
      %v205 = vld [vmem:[%s165 + $0x84] sm:$0xf]
      %v206 = vld [vmem:[%s165 + $0x88] sm:$0xf]
      %v207 = vld [vmem:[%s165 + $0x8c] sm:$0xf]
      %v208 = vld [vmem:[%s165 + $0x90] sm:$0xf]
      %v209 = vld [vmem:[%s165 + $0x94] sm:$0xf]
      %v210 = vld [vmem:[%s165 + $0x98] sm:$0xf]
      %v211 = vld [vmem:[%s165 + $0x9c] sm:$0xf]
      %v212 = vld [vmem:[%s165 + $0xa0] sm:$0xf]
      %v213 = vld [vmem:[%s165 + $0xa4] sm:$0xf]
      %v214 = vld [vmem:[%s165 + $0xa8] sm:$0xf]
      %v215 = vld [vmem:[%s165 + $0xac] sm:$0xf]
      %v216 = vld [vmem:[%s165 + $0xb0] sm:$0xf]
      %v217 = vld [vmem:[%s165 + $0xb4] sm:$0xf]
      %v218 = vld [vmem:[%s165 + $0xb8] sm:$0xf]
      %v219 = vld [vmem:[%s165 + $0xbc] sm:$0xf]
      %v220 = vld [vmem:[%s165 + $0xc0] sm:$0xf]
      %v221 = vld [vmem:[%s165 + $0xc4] sm:$0x1]
      %v271 = vunpack.c.l.b16 %v172
      %v272 = vunpack.c.l.b16 %v173
      %v273 = vunpack.c.l.b16 %v174
      %v274 = vunpack.c.l.b16 %v175
      %v275 = vunpack.c.l.b16 %v176
      %v276 = vunpack.c.l.b16 %v177
      %v277 = vunpack.c.l.b16 %v178
      %v278 = vunpack.c.l.b16 %v179
      %v279 = vunpack.c.l.b16 %v180
      %v280 = vunpack.c.l.b16 %v181
      %v281 = vunpack.c.l.b16 %v182
      %v282 = vunpack.c.l.b16 %v183
      %v283 = vunpack.c.l.b16 %v184
      %v284 = vunpack.c.l.b16 %v185
      %v285 = vunpack.c.l.b16 %v186
      %v286 = vunpack.c.l.b16 %v187
      %v287 = vunpack.c.l.b16 %v188
      %v288 = vunpack.c.l.b16 %v189
      %v289 = vunpack.c.l.b16 %v190
      %v290 = vunpack.c.l.b16 %v191
      %v291 = vunpack.c.l.b16 %v192
      %v292 = vunpack.c.l.b16 %v193
      %v293 = vunpack.c.l.b16 %v194
      %v294 = vunpack.c.l.b16 %v195
      %v295 = vunpack.c.l.b16 %v196
      %v296 = vunpack.c.l.b16 %v197
      %v297 = vunpack.c.l.b16 %v198
      %v298 = vunpack.c.l.b16 %v199
      %v299 = vunpack.c.l.b16 %v200
      %v300 = vunpack.c.l.b16 %v201
      %v301 = vunpack.c.l.b16 %v202
      %v302 = vunpack.c.l.b16 %v203
      %v303 = vunpack.c.l.b16 %v204
      %v304 = vunpack.c.l.b16 %v205
      %v305 = vunpack.c.l.b16 %v206
      %v306 = vunpack.c.l.b16 %v207
      %v307 = vunpack.c.l.b16 %v208
      %v308 = vunpack.c.l.b16 %v209
      %v309 = vunpack.c.l.b16 %v210
      %v310 = vunpack.c.l.b16 %v211
      %v311 = vunpack.c.l.b16 %v212
      %v312 = vunpack.c.l.b16 %v213
      %v313 = vunpack.c.l.b16 %v214
      %v314 = vunpack.c.l.b16 %v215
      %v315 = vunpack.c.l.b16 %v216
      %v316 = vunpack.c.l.b16 %v217
      %v317 = vunpack.c.l.b16 %v218
      %v318 = vunpack.c.l.b16 %v219
      %v319 = vunpack.c.l.b16 %v220
      %v320 = vpack.c.b16 %v272, %v271
      %v321 = vpack.c.b16 %v274, %v273
      %v322 = vpack.c.b16 %v276, %v275
      %v323 = vpack.c.b16 %v278, %v277
      %v324 = vpack.c.b16 %v280, %v279
      %v325 = vpack.c.b16 %v282, %v281
      %v326 = vpack.c.b16 %v284, %v283
      %v327 = vpack.c.b16 %v286, %v285
      %v328 = vpack.c.b16 %v288, %v287
      %v329 = vpack.c.b16 %v290, %v289
      %v330 = vpack.c.b16 %v292, %v291
      %v331 = vpack.c.b16 %v294, %v293
      %v332 = vpack.c.b16 %v296, %v295
      %v333 = vpack.c.b16 %v298, %v297
      %v334 = vpack.c.b16 %v300, %v299
      %v335 = vpack.c.b16 %v302, %v301
      %v336 = vpack.c.b16 %v304, %v303
      %v337 = vpack.c.b16 %v306, %v305
      %v338 = vpack.c.b16 %v308, %v307
      %v339 = vpack.c.b16 %v310, %v309
      %v340 = vpack.c.b16 %v312, %v311
      %v341 = vpack.c.b16 %v314, %v313
      %v342 = vpack.c.b16 %v316, %v315
      %v343 = vpack.c.b16 %v318, %v317
      %v344 = vpack.c.b16 %v319, %v319
      %v345 = vpack.c.b16 %v273, %v272
      %v346 = vpack.c.b16 %v275, %v274
      %v347 = vpack.c.b16 %v277, %v276
      %v348 = vpack.c.b16 %v279, %v278
      %v349 = vpack.c.b16 %v281, %v280
      %v350 = vpack.c.b16 %v283, %v282
      %v351 = vpack.c.b16 %v285, %v284
      %v352 = vpack.c.b16 %v287, %v286
      %v353 = vpack.c.b16 %v289, %v288
      %v354 = vpack.c.b16 %v291, %v290
      %v355 = vpack.c.b16 %v293, %v292
      %v356 = vpack.c.b16 %v295, %v294
      %v357 = vpack.c.b16 %v297, %v296
      %v358 = vpack.c.b16 %v299, %v298
      %v359 = vpack.c.b16 %v301, %v300
      %v360 = vpack.c.b16 %v303, %v302
      %v361 = vpack.c.b16 %v305, %v304
      %v362 = vpack.c.b16 %v307, %v306
      %v363 = vpack.c.b16 %v309, %v308
      %v364 = vpack.c.b16 %v311, %v310
      %v365 = vpack.c.b16 %v313, %v312
      %v366 = vpack.c.b16 %v315, %v314
      %v367 = vpack.c.b16 %v317, %v316
      %v368 = vpack.c.b16 %v319, %v318
      %vm369 = vsmask.f32 3328
      %v371 = vshrl.u32 %v345, 16
      %v373 = vrot.slane %v371, 4
      %v374 = vshll.u32 %v345, 16
      %v376 = vrot.slane %v374, 5
      %v377 = vor.u32 %v373, %v376
      %v379 = vshrl.u32 %v346, 16
      %v381 = vrot.slane %v379, 4
      %v382 = vshll.u32 %v346, 16
      %v384 = vrot.slane %v382, 5
      %v385 = vor.u32 %v381, %v384
      %v386 = vsel %vm369, %v377, %v385
      %v388 = vshrl.u32 %v347, 16
      %v390 = vrot.slane %v388, 4
      %v391 = vshll.u32 %v347, 16
      %v393 = vrot.slane %v391, 5
      %v394 = vor.u32 %v390, %v393
      %v395 = vsel %vm369, %v385, %v394
      %v397 = vshrl.u32 %v348, 16
      %v399 = vrot.slane %v397, 4
      %v400 = vshll.u32 %v348, 16
      %v402 = vrot.slane %v400, 5
      %v403 = vor.u32 %v399, %v402
      %v404 = vsel %vm369, %v394, %v403
      %v406 = vshrl.u32 %v349, 16
      %v408 = vrot.slane %v406, 4
      %v409 = vshll.u32 %v349, 16
      %v411 = vrot.slane %v409, 5
      %v412 = vor.u32 %v408, %v411
      %v413 = vsel %vm369, %v403, %v412
      %v415 = vshrl.u32 %v350, 16
      %v417 = vrot.slane %v415, 4
      %v418 = vshll.u32 %v350, 16
      %v420 = vrot.slane %v418, 5
      %v421 = vor.u32 %v417, %v420
      %v422 = vsel %vm369, %v412, %v421
      %v424 = vshrl.u32 %v351, 16
      %v426 = vrot.slane %v424, 4
      %v427 = vshll.u32 %v351, 16
      %v429 = vrot.slane %v427, 5
      %v430 = vor.u32 %v426, %v429
      %v431 = vsel %vm369, %v421, %v430
      %v433 = vshrl.u32 %v352, 16
      %v435 = vrot.slane %v433, 4
      %v436 = vshll.u32 %v352, 16
      %v438 = vrot.slane %v436, 5
      %v439 = vor.u32 %v435, %v438
      %v440 = vsel %vm369, %v430, %v439
      %v442 = vshrl.u32 %v353, 16
      %v444 = vrot.slane %v442, 4
      %v445 = vshll.u32 %v353, 16
      %v447 = vrot.slane %v445, 5
      %v448 = vor.u32 %v444, %v447
      %v449 = vsel %vm369, %v439, %v448
      %v451 = vshrl.u32 %v354, 16
      %v453 = vrot.slane %v451, 4
      %v454 = vshll.u32 %v354, 16
      %v456 = vrot.slane %v454, 5
      %v457 = vor.u32 %v453, %v456
      %v458 = vsel %vm369, %v448, %v457
      %v460 = vshrl.u32 %v355, 16
      %v462 = vrot.slane %v460, 4
      %v463 = vshll.u32 %v355, 16
      %v465 = vrot.slane %v463, 5
      %v466 = vor.u32 %v462, %v465
      %v467 = vsel %vm369, %v457, %v466
      %v469 = vshrl.u32 %v356, 16
      %v471 = vrot.slane %v469, 4
      %v472 = vshll.u32 %v356, 16
      %v474 = vrot.slane %v472, 5
      %v475 = vor.u32 %v471, %v474
      %v476 = vsel %vm369, %v466, %v475
      %v478 = vshrl.u32 %v357, 16
      %v480 = vrot.slane %v478, 4
      %v481 = vshll.u32 %v357, 16
      %v483 = vrot.slane %v481, 5
      %v484 = vor.u32 %v480, %v483
      %v485 = vsel %vm369, %v475, %v484
      %v487 = vshrl.u32 %v358, 16
      %v489 = vrot.slane %v487, 4
      %v490 = vshll.u32 %v358, 16
      %v492 = vrot.slane %v490, 5
      %v493 = vor.u32 %v489, %v492
      %v494 = vsel %vm369, %v484, %v493
      %v496 = vshrl.u32 %v359, 16
      %v498 = vrot.slane %v496, 4
      %v499 = vshll.u32 %v359, 16
      %v501 = vrot.slane %v499, 5
      %v502 = vor.u32 %v498, %v501
      %v503 = vsel %vm369, %v493, %v502
      %v505 = vshrl.u32 %v360, 16
      %v507 = vrot.slane %v505, 4
      %v508 = vshll.u32 %v360, 16
      %v510 = vrot.slane %v508, 5
      %v511 = vor.u32 %v507, %v510
      %v512 = vsel %vm369, %v502, %v511
      %v514 = vshrl.u32 %v361, 16
      %v516 = vrot.slane %v514, 4
      %v517 = vshll.u32 %v361, 16
      %v519 = vrot.slane %v517, 5
      %v520 = vor.u32 %v516, %v519
      %v521 = vsel %vm369, %v511, %v520
      %v523 = vshrl.u32 %v362, 16
      %v525 = vrot.slane %v523, 4
      %v526 = vshll.u32 %v362, 16
      %v528 = vrot.slane %v526, 5
      %v529 = vor.u32 %v525, %v528
      %v530 = vsel %vm369, %v520, %v529
      %v532 = vshrl.u32 %v363, 16
      %v534 = vrot.slane %v532, 4
      %v535 = vshll.u32 %v363, 16
      %v537 = vrot.slane %v535, 5
      %v538 = vor.u32 %v534, %v537
      %v539 = vsel %vm369, %v529, %v538
      %v541 = vshrl.u32 %v364, 16
      %v543 = vrot.slane %v541, 4
      %v544 = vshll.u32 %v364, 16
      %v546 = vrot.slane %v544, 5
      %v547 = vor.u32 %v543, %v546
      %v548 = vsel %vm369, %v538, %v547
      %v550 = vshrl.u32 %v365, 16
      %v552 = vrot.slane %v550, 4
      %v553 = vshll.u32 %v365, 16
      %v555 = vrot.slane %v553, 5
      %v556 = vor.u32 %v552, %v555
      %v557 = vsel %vm369, %v547, %v556
      %v559 = vshrl.u32 %v366, 16
      %v561 = vrot.slane %v559, 4
      %v562 = vshll.u32 %v366, 16
      %v564 = vrot.slane %v562, 5
      %v565 = vor.u32 %v561, %v564
      %v566 = vsel %vm369, %v556, %v565
      %v568 = vshrl.u32 %v367, 16
      %v570 = vrot.slane %v568, 4
      %v571 = vshll.u32 %v367, 16
      %v573 = vrot.slane %v571, 5
      %v574 = vor.u32 %v570, %v573
      %v575 = vsel %vm369, %v565, %v574
      %v577 = vshrl.u32 %v368, 16
      %v579 = vrot.slane %v577, 4
      %v580 = vshll.u32 %v368, 16
      %v582 = vrot.slane %v580, 5
      %v583 = vor.u32 %v579, %v582
      %v584 = vsel %vm369, %v574, %v583
      %585 = vrot.lane.b32.xlu0 %v377, 16
      %v586 = vpop.permute.xlu0 %585
      %587 = vrot.lane.b32.xlu0 %v386, 16
      %v588 = vpop.permute.xlu0 %587
      %589 = vrot.lane.b32.xlu0 %v395, 16
      %v590 = vpop.permute.xlu0 %589
      %591 = vrot.lane.b32.xlu0 %v404, 16
      %v592 = vpop.permute.xlu0 %591
      %593 = vrot.lane.b32.xlu0 %v413, 16
      %v594 = vpop.permute.xlu0 %593
      %595 = vrot.lane.b32.xlu0 %v422, 16
      %v596 = vpop.permute.xlu0 %595
      %597 = vrot.lane.b32.xlu0 %v431, 16
      %v598 = vpop.permute.xlu0 %597
      %599 = vrot.lane.b32.xlu0 %v440, 16
      %v600 = vpop.permute.xlu0 %599
      %601 = vrot.lane.b32.xlu0 %v449, 16
      %v602 = vpop.permute.xlu0 %601
      %603 = vrot.lane.b32.xlu0 %v458, 16
      %v604 = vpop.permute.xlu0 %603
      %605 = vrot.lane.b32.xlu0 %v467, 16
      %v606 = vpop.permute.xlu0 %605
      %607 = vrot.lane.b32.xlu0 %v476, 16
      %v608 = vpop.permute.xlu0 %607
      %609 = vrot.lane.b32.xlu0 %v485, 16
      %v610 = vpop.permute.xlu0 %609
      %611 = vrot.lane.b32.xlu0 %v494, 16
      %v612 = vpop.permute.xlu0 %611
      %613 = vrot.lane.b32.xlu0 %v503, 16
      %v614 = vpop.permute.xlu0 %613
      %615 = vrot.lane.b32.xlu0 %v512, 16
      %v616 = vpop.permute.xlu0 %615
      %617 = vrot.lane.b32.xlu0 %v521, 16
      %v618 = vpop.permute.xlu0 %617
      %619 = vrot.lane.b32.xlu0 %v530, 16
      %v620 = vpop.permute.xlu0 %619
      %621 = vrot.lane.b32.xlu0 %v539, 16
      %v622 = vpop.permute.xlu0 %621
      %623 = vrot.lane.b32.xlu0 %v548, 16
      %v624 = vpop.permute.xlu0 %623
      %625 = vrot.lane.b32.xlu0 %v557, 16
      %v626 = vpop.permute.xlu0 %625
      %627 = vrot.lane.b32.xlu0 %v566, 16
      %v628 = vpop.permute.xlu0 %627
      %629 = vrot.lane.b32.xlu0 %v575, 16
      %v630 = vpop.permute.xlu0 %629
      %631 = vrot.lane.b32.xlu0 %v584, 16
      %v632 = vpop.permute.xlu0 %631
      %633 = vrot.lane.b32.xlu0 %v583, 16
      %v634 = vpop.permute.xlu0 %633
      %v636 = vunpack.c.l.b16 %v221
      %v637 = vpack.c.b16 %v636, %v636
      %vm638 = vcmask 1042432
      %v639 = vrot.slane %v345, 5
      %v640 = vrot.slane %v346, 5
      %v641 = vsel %vm638, %v639, %v640
      %v642 = vrot.slane %v347, 5
      %v643 = vsel %vm638, %v640, %v642
      %v644 = vrot.slane %v348, 5
      %v645 = vsel %vm638, %v642, %v644
      %v646 = vrot.slane %v349, 5
      %v647 = vsel %vm638, %v644, %v646
      %v648 = vrot.slane %v350, 5
      %v649 = vsel %vm638, %v646, %v648
      %v650 = vrot.slane %v351, 5
      %v651 = vsel %vm638, %v648, %v650
      %v652 = vrot.slane %v352, 5
      %v653 = vsel %vm638, %v650, %v652
      %v654 = vrot.slane %v353, 5
      %v655 = vsel %vm638, %v652, %v654
      %v656 = vrot.slane %v354, 5
      %v657 = vsel %vm638, %v654, %v656
      %v658 = vrot.slane %v355, 5
      %v659 = vsel %vm638, %v656, %v658
      %v660 = vrot.slane %v356, 5
      %v661 = vsel %vm638, %v658, %v660
      %v662 = vrot.slane %v357, 5
      %v663 = vsel %vm638, %v660, %v662
      %v664 = vrot.slane %v358, 5
      %v665 = vsel %vm638, %v662, %v664
      %v666 = vrot.slane %v359, 5
      %v667 = vsel %vm638, %v664, %v666
      %v668 = vrot.slane %v360, 5
      %v669 = vsel %vm638, %v666, %v668
      %v670 = vrot.slane %v361, 5
      %v671 = vsel %vm638, %v668, %v670
      %v672 = vrot.slane %v362, 5
      %v673 = vsel %vm638, %v670, %v672
      %v674 = vrot.slane %v363, 5
      %v675 = vsel %vm638, %v672, %v674
      %v676 = vrot.slane %v364, 5
      %v677 = vsel %vm638, %v674, %v676
      %v678 = vrot.slane %v365, 5
      %v679 = vsel %vm638, %v676, %v678
      %v680 = vrot.slane %v366, 5
      %v681 = vsel %vm638, %v678, %v680
      %v682 = vrot.slane %v367, 5
      %v683 = vsel %vm638, %v680, %v682
      %v684 = vrot.slane %v368, 5
      %v685 = vsel %vm638, %v682, %v684
      %v686 = vrot.slane %v637, 5
      %v687 = vsel %vm638, %v684, %v686
      %688 = vrot.lane.b32.xlu0 %v639, 32
      %v689 = vpop.permute.xlu0 %688
      %690 = vrot.lane.b32.xlu0 %v641, 32
      %v691 = vpop.permute.xlu0 %690
      %692 = vrot.lane.b32.xlu0 %v643, 32
      %v693 = vpop.permute.xlu0 %692
      %694 = vrot.lane.b32.xlu0 %v645, 32
      %v695 = vpop.permute.xlu0 %694
      %696 = vrot.lane.b32.xlu0 %v647, 32
      %v697 = vpop.permute.xlu0 %696
      %698 = vrot.lane.b32.xlu0 %v649, 32
      %v699 = vpop.permute.xlu0 %698
      %700 = vrot.lane.b32.xlu0 %v651, 32
      %v701 = vpop.permute.xlu0 %700
      %702 = vrot.lane.b32.xlu0 %v653, 32
      %v703 = vpop.permute.xlu0 %702
      %704 = vrot.lane.b32.xlu0 %v655, 32
      %v705 = vpop.permute.xlu0 %704
      %706 = vrot.lane.b32.xlu0 %v657, 32
      %v707 = vpop.permute.xlu0 %706
      %708 = vrot.lane.b32.xlu0 %v659, 32
      %v709 = vpop.permute.xlu0 %708
      %710 = vrot.lane.b32.xlu0 %v661, 32
      %v711 = vpop.permute.xlu0 %710
      %712 = vrot.lane.b32.xlu0 %v663, 32
      %v713 = vpop.permute.xlu0 %712
      %714 = vrot.lane.b32.xlu0 %v665, 32
      %v715 = vpop.permute.xlu0 %714
      %716 = vrot.lane.b32.xlu0 %v667, 32
      %v717 = vpop.permute.xlu0 %716
      %718 = vrot.lane.b32.xlu0 %v669, 32
      %v719 = vpop.permute.xlu0 %718
      %720 = vrot.lane.b32.xlu0 %v671, 32
      %v721 = vpop.permute.xlu0 %720
      %722 = vrot.lane.b32.xlu0 %v673, 32
      %v723 = vpop.permute.xlu0 %722
      %724 = vrot.lane.b32.xlu0 %v675, 32
      %v725 = vpop.permute.xlu0 %724
      %726 = vrot.lane.b32.xlu0 %v677, 32
      %v727 = vpop.permute.xlu0 %726
      %728 = vrot.lane.b32.xlu0 %v679, 32
      %v729 = vpop.permute.xlu0 %728
      %730 = vrot.lane.b32.xlu0 %v681, 32
      %v731 = vpop.permute.xlu0 %730
      %732 = vrot.lane.b32.xlu0 %v683, 32
      %v733 = vpop.permute.xlu0 %732
      %734 = vrot.lane.b32.xlu0 %v685, 32
      %v735 = vpop.permute.xlu0 %734
      %736 = vrot.lane.b32.xlu0 %v687, 32
      %v737 = vpop.permute.xlu0 %736
      %vm738 = vcmask 130048
      %v741 = vsel %vm738, %v320, %v586
      %v744 = vsel %vm738, %v321, %v588
      %v747 = vsel %vm738, %v322, %v590
      %v750 = vsel %vm738, %v323, %v592
      %v753 = vsel %vm738, %v324, %v594
      %v756 = vsel %vm738, %v325, %v596
      %v759 = vsel %vm738, %v326, %v598
      %v762 = vsel %vm738, %v327, %v600
      %v765 = vsel %vm738, %v328, %v602
      %v768 = vsel %vm738, %v329, %v604
      %v771 = vsel %vm738, %v330, %v606
      %v774 = vsel %vm738, %v331, %v608
      %v777 = vsel %vm738, %v332, %v610
      %v780 = vsel %vm738, %v333, %v612
      %v783 = vsel %vm738, %v334, %v614
      %v786 = vsel %vm738, %v335, %v616
      %v789 = vsel %vm738, %v336, %v618
      %v792 = vsel %vm738, %v337, %v620
      %v795 = vsel %vm738, %v338, %v622
      %v798 = vsel %vm738, %v339, %v624
      %v801 = vsel %vm738, %v340, %v626
      %v804 = vsel %vm738, %v341, %v628
      %v807 = vsel %vm738, %v342, %v630
      %v810 = vsel %vm738, %v343, %v632
      %v813 = vsel %vm738, %v344, %v634
      %vm814 = vcmask 261120
      %v816 = vsel %vm814, %v741, %v689
      %v818 = vsel %vm814, %v744, %v691
      %v820 = vsel %vm814, %v747, %v693
      %v822 = vsel %vm814, %v750, %v695
      %v824 = vsel %vm814, %v753, %v697
      %v826 = vsel %vm814, %v756, %v699
      %v828 = vsel %vm814, %v759, %v701
      %v830 = vsel %vm814, %v762, %v703
      %v832 = vsel %vm814, %v765, %v705
      %v834 = vsel %vm814, %v768, %v707
      %v836 = vsel %vm814, %v771, %v709
      %v838 = vsel %vm814, %v774, %v711
      %v840 = vsel %vm814, %v777, %v713
      %v842 = vsel %vm814, %v780, %v715
      %v844 = vsel %vm814, %v783, %v717
      %v846 = vsel %vm814, %v786, %v719
      %v848 = vsel %vm814, %v789, %v721
      %v850 = vsel %vm814, %v792, %v723
      %v852 = vsel %vm814, %v795, %v725
      %v854 = vsel %vm814, %v798, %v727
      %v856 = vsel %vm814, %v801, %v729
      %v858 = vsel %vm814, %v804, %v731
      %v860 = vsel %vm814, %v807, %v733
      %v862 = vsel %vm814, %v810, %v735
      %v864 = vsel %vm814, %v813, %v737
      %v865 = vld [vmem:[%s1] sm:$0xf]
      %v866 = vld [vmem:[%s1 + $0x4] sm:$0xf]
      %v867 = vld [vmem:[%s1 + $0x8] sm:$0xf]
      %v868 = vld [vmem:[%s1 + $0xc] sm:$0xf]
      %v869 = vld [vmem:[%s1 + $0x10] sm:$0xf]
      %v870 = vld [vmem:[%s1 + $0x14] sm:$0xf]
      %v871 = vld [vmem:[%s165 + $0xc] sm:$0x8]
      %v872 = vld [vmem:[%s165 + $0xc4] sm:$0xf]
      %v873 = vld [vmem:[%s165 + $0xc8] sm:$0xf]
      %v874 = vld [vmem:[%s165 + $0xcc] sm:$0xf]
      %v875 = vld [vmem:[%s165 + $0xd0] sm:$0x1]
      %v880 = vunpack.c.l.b16 %v871
      %v881 = vunpack.c.l.b16 %v872
      %v882 = vunpack.c.l.b16 %v873
      %v883 = vunpack.c.l.b16 %v874
      %v884 = vpack.c.b16 %v275, %v880
      %v885 = vpack.c.b16 %v882, %v881
      %v886 = vpack.c.b16 %v883, %v883
      %v887 = vpack.c.b16 %v881, %v319
      %v888 = vpack.c.b16 %v883, %v882
      %v889 = vshrl.u32 %v322, 16
      %v891 = vrot.slane %v889, 4
      %v892 = vshll.u32 %v322, 16
      %v894 = vrot.slane %v892, 5
      %v895 = vor.u32 %v891, %v894
      %v896 = vshrl.u32 %v323, 16
      %v898 = vrot.slane %v896, 4
      %v899 = vshll.u32 %v323, 16
      %v901 = vrot.slane %v899, 5
      %v902 = vor.u32 %v898, %v901
      %v903 = vsel %vm369, %v895, %v902
      %v904 = vshrl.u32 %v324, 16
      %v906 = vrot.slane %v904, 4
      %v907 = vshll.u32 %v324, 16
      %v909 = vrot.slane %v907, 5
      %v910 = vor.u32 %v906, %v909
      %v911 = vsel %vm369, %v902, %v910
      %v912 = vshrl.u32 %v325, 16
      %v914 = vrot.slane %v912, 4
      %v915 = vshll.u32 %v325, 16
      %v917 = vrot.slane %v915, 5
      %v918 = vor.u32 %v914, %v917
      %v919 = vsel %vm369, %v910, %v918
      %v920 = vshrl.u32 %v326, 16
      %v922 = vrot.slane %v920, 4
      %v923 = vshll.u32 %v326, 16
      %v925 = vrot.slane %v923, 5
      %v926 = vor.u32 %v922, %v925
      %v927 = vsel %vm369, %v918, %v926
      %v928 = vshrl.u32 %v327, 16
      %v930 = vrot.slane %v928, 4
      %v931 = vshll.u32 %v327, 16
      %v933 = vrot.slane %v931, 5
      %v934 = vor.u32 %v930, %v933
      %v935 = vsel %vm369, %v926, %v934
      %v936 = vshrl.u32 %v328, 16
      %v938 = vrot.slane %v936, 4
      %v939 = vshll.u32 %v328, 16
      %v941 = vrot.slane %v939, 5
      %v942 = vor.u32 %v938, %v941
      %v943 = vsel %vm369, %v934, %v942
      %v944 = vshrl.u32 %v329, 16
      %v946 = vrot.slane %v944, 4
      %v947 = vshll.u32 %v329, 16
      %v949 = vrot.slane %v947, 5
      %v950 = vor.u32 %v946, %v949
      %v951 = vsel %vm369, %v942, %v950
      %v952 = vshrl.u32 %v330, 16
      %v954 = vrot.slane %v952, 4
      %v955 = vshll.u32 %v330, 16
      %v957 = vrot.slane %v955, 5
      %v958 = vor.u32 %v954, %v957
      %v959 = vsel %vm369, %v950, %v958
      %v960 = vshrl.u32 %v331, 16
      %v962 = vrot.slane %v960, 4
      %v963 = vshll.u32 %v331, 16
      %v965 = vrot.slane %v963, 5
      %v966 = vor.u32 %v962, %v965
      %v967 = vsel %vm369, %v958, %v966
      %v968 = vshrl.u32 %v332, 16
      %v970 = vrot.slane %v968, 4
      %v971 = vshll.u32 %v332, 16
      %v973 = vrot.slane %v971, 5
      %v974 = vor.u32 %v970, %v973
      %v975 = vsel %vm369, %v966, %v974
      %v976 = vshrl.u32 %v333, 16
      %v978 = vrot.slane %v976, 4
      %v979 = vshll.u32 %v333, 16
      %v981 = vrot.slane %v979, 5
      %v982 = vor.u32 %v978, %v981
      %v983 = vsel %vm369, %v974, %v982
      %v984 = vshrl.u32 %v334, 16
      %v986 = vrot.slane %v984, 4
      %v987 = vshll.u32 %v334, 16
      %v989 = vrot.slane %v987, 5
      %v990 = vor.u32 %v986, %v989
      %v991 = vsel %vm369, %v982, %v990
      %v992 = vshrl.u32 %v335, 16
      %v994 = vrot.slane %v992, 4
      %v995 = vshll.u32 %v335, 16
      %v997 = vrot.slane %v995, 5
      %v998 = vor.u32 %v994, %v997
      %v999 = vsel %vm369, %v990, %v998
      %v1000 = vshrl.u32 %v336, 16
      %v1002 = vrot.slane %v1000, 4
      %v1003 = vshll.u32 %v336, 16
      %v1005 = vrot.slane %v1003, 5
      %v1006 = vor.u32 %v1002, %v1005
      %v1007 = vsel %vm369, %v998, %v1006
      %v1008 = vshrl.u32 %v337, 16
      %v1010 = vrot.slane %v1008, 4
      %v1011 = vshll.u32 %v337, 16
      %v1013 = vrot.slane %v1011, 5
      %v1014 = vor.u32 %v1010, %v1013
      %v1015 = vsel %vm369, %v1006, %v1014
      %v1016 = vshrl.u32 %v338, 16
      %v1018 = vrot.slane %v1016, 4
      %v1019 = vshll.u32 %v338, 16
      %v1021 = vrot.slane %v1019, 5
      %v1022 = vor.u32 %v1018, %v1021
      %v1023 = vsel %vm369, %v1014, %v1022
      %v1024 = vshrl.u32 %v339, 16
      %v1026 = vrot.slane %v1024, 4
      %v1027 = vshll.u32 %v339, 16
      %v1029 = vrot.slane %v1027, 5
      %v1030 = vor.u32 %v1026, %v1029
      %v1031 = vsel %vm369, %v1022, %v1030
      %v1032 = vshrl.u32 %v340, 16
      %v1034 = vrot.slane %v1032, 4
      %v1035 = vshll.u32 %v340, 16
      %v1037 = vrot.slane %v1035, 5
      %v1038 = vor.u32 %v1034, %v1037
      %v1039 = vsel %vm369, %v1030, %v1038
      %v1040 = vshrl.u32 %v341, 16
      %v1042 = vrot.slane %v1040, 4
      %v1043 = vshll.u32 %v341, 16
      %v1045 = vrot.slane %v1043, 5
      %v1046 = vor.u32 %v1042, %v1045
      %v1047 = vsel %vm369, %v1038, %v1046
      %v1048 = vshrl.u32 %v342, 16
      %v1050 = vrot.slane %v1048, 4
      %v1051 = vshll.u32 %v342, 16
      %v1053 = vrot.slane %v1051, 5
      %v1054 = vor.u32 %v1050, %v1053
      %v1055 = vsel %vm369, %v1046, %v1054
      %v1056 = vshrl.u32 %v343, 16
      %v1058 = vrot.slane %v1056, 4
      %v1059 = vshll.u32 %v343, 16
      %v1061 = vrot.slane %v1059, 5
      %v1062 = vor.u32 %v1058, %v1061
      %v1063 = vsel %vm369, %v1054, %v1062
      %v1065 = vshrl.u32 %v887, 16
      %v1067 = vrot.slane %v1065, 4
      %v1068 = vshll.u32 %v887, 16
      %v1070 = vrot.slane %v1068, 5
      %v1071 = vor.u32 %v1067, %v1070
      %v1072 = vsel %vm369, %v1062, %v1071
      %v1074 = vshrl.u32 %v888, 16
      %v1076 = vrot.slane %v1074, 4
      %v1077 = vshll.u32 %v888, 16
      %v1079 = vrot.slane %v1077, 5
      %v1080 = vor.u32 %v1076, %v1079
      %v1081 = vsel %vm369, %v1071, %v1080
      %1082 = vrot.lane.b32.xlu0 %v895, 16
      %v1083 = vpop.permute.xlu0 %1082
      %1084 = vrot.lane.b32.xlu0 %v903, 16
      %v1085 = vpop.permute.xlu0 %1084
      %1086 = vrot.lane.b32.xlu0 %v911, 16
      %v1087 = vpop.permute.xlu0 %1086
      %1088 = vrot.lane.b32.xlu0 %v919, 16
      %v1089 = vpop.permute.xlu0 %1088
      %1090 = vrot.lane.b32.xlu0 %v927, 16
      %v1091 = vpop.permute.xlu0 %1090
      %1092 = vrot.lane.b32.xlu0 %v935, 16
      %v1093 = vpop.permute.xlu0 %1092
      %1094 = vrot.lane.b32.xlu0 %v943, 16
      %v1095 = vpop.permute.xlu0 %1094
      %1096 = vrot.lane.b32.xlu0 %v951, 16
      %v1097 = vpop.permute.xlu0 %1096
      %1098 = vrot.lane.b32.xlu0 %v959, 16
      %v1099 = vpop.permute.xlu0 %1098
      %1100 = vrot.lane.b32.xlu0 %v967, 16
      %v1101 = vpop.permute.xlu0 %1100
      %1102 = vrot.lane.b32.xlu0 %v975, 16
      %v1103 = vpop.permute.xlu0 %1102
      %1104 = vrot.lane.b32.xlu0 %v983, 16
      %v1105 = vpop.permute.xlu0 %1104
      %1106 = vrot.lane.b32.xlu0 %v991, 16
      %v1107 = vpop.permute.xlu0 %1106
      %1108 = vrot.lane.b32.xlu0 %v999, 16
      %v1109 = vpop.permute.xlu0 %1108
      %1110 = vrot.lane.b32.xlu0 %v1007, 16
      %v1111 = vpop.permute.xlu0 %1110
      %1112 = vrot.lane.b32.xlu0 %v1015, 16
      %v1113 = vpop.permute.xlu0 %1112
      %1114 = vrot.lane.b32.xlu0 %v1023, 16
      %v1115 = vpop.permute.xlu0 %1114
      %1116 = vrot.lane.b32.xlu0 %v1031, 16
      %v1117 = vpop.permute.xlu0 %1116
      %1118 = vrot.lane.b32.xlu0 %v1039, 16
      %v1119 = vpop.permute.xlu0 %1118
      %1120 = vrot.lane.b32.xlu0 %v1047, 16
      %v1121 = vpop.permute.xlu0 %1120
      %1122 = vrot.lane.b32.xlu0 %v1055, 16
      %v1123 = vpop.permute.xlu0 %1122
      %1124 = vrot.lane.b32.xlu0 %v1063, 16
      %v1125 = vpop.permute.xlu0 %1124
      %1126 = vrot.lane.b32.xlu0 %v1072, 16
      %v1127 = vpop.permute.xlu0 %1126
      %1128 = vrot.lane.b32.xlu0 %v1081, 16
      %v1129 = vpop.permute.xlu0 %1128
      %1130 = vrot.lane.b32.xlu0 %v1080, 16
      %v1131 = vpop.permute.xlu0 %1130
      %v1133 = vunpack.c.l.b16 %v875
      %v1134 = vpack.c.b16 %v1133, %v1133
      %v1135 = vrot.slane %v322, 5
      %v1136 = vrot.slane %v323, 5
      %v1137 = vsel %vm638, %v1135, %v1136
      %v1138 = vrot.slane %v324, 5
      %v1139 = vsel %vm638, %v1136, %v1138
      %v1140 = vrot.slane %v325, 5
      %v1141 = vsel %vm638, %v1138, %v1140
      %v1142 = vrot.slane %v326, 5
      %v1143 = vsel %vm638, %v1140, %v1142
      %v1144 = vrot.slane %v327, 5
      %v1145 = vsel %vm638, %v1142, %v1144
      %v1146 = vrot.slane %v328, 5
      %v1147 = vsel %vm638, %v1144, %v1146
      %v1148 = vrot.slane %v329, 5
      %v1149 = vsel %vm638, %v1146, %v1148
      %v1150 = vrot.slane %v330, 5
      %v1151 = vsel %vm638, %v1148, %v1150
      %v1152 = vrot.slane %v331, 5
      %v1153 = vsel %vm638, %v1150, %v1152
      %v1154 = vrot.slane %v332, 5
      %v1155 = vsel %vm638, %v1152, %v1154
      %v1156 = vrot.slane %v333, 5
      %v1157 = vsel %vm638, %v1154, %v1156
      %v1158 = vrot.slane %v334, 5
      %v1159 = vsel %vm638, %v1156, %v1158
      %v1160 = vrot.slane %v335, 5
      %v1161 = vsel %vm638, %v1158, %v1160
      %v1162 = vrot.slane %v336, 5
      %v1163 = vsel %vm638, %v1160, %v1162
      %v1164 = vrot.slane %v337, 5
      %v1165 = vsel %vm638, %v1162, %v1164
      %v1166 = vrot.slane %v338, 5
      %v1167 = vsel %vm638, %v1164, %v1166
      %v1168 = vrot.slane %v339, 5
      %v1169 = vsel %vm638, %v1166, %v1168
      %v1170 = vrot.slane %v340, 5
      %v1171 = vsel %vm638, %v1168, %v1170
      %v1172 = vrot.slane %v341, 5
      %v1173 = vsel %vm638, %v1170, %v1172
      %v1174 = vrot.slane %v342, 5
      %v1175 = vsel %vm638, %v1172, %v1174
      %v1176 = vrot.slane %v343, 5
      %v1177 = vsel %vm638, %v1174, %v1176
      %v1178 = vrot.slane %v887, 5
      %v1179 = vsel %vm638, %v1176, %v1178
      %v1180 = vrot.slane %v888, 5
      %v1181 = vsel %vm638, %v1178, %v1180
      %v1182 = vrot.slane %v1134, 5
      %v1183 = vsel %vm638, %v1180, %v1182
      %1184 = vrot.lane.b32.xlu0 %v1135, 32
      %v1185 = vpop.permute.xlu0 %1184
      %1186 = vrot.lane.b32.xlu0 %v1137, 32
      %v1187 = vpop.permute.xlu0 %1186
      %1188 = vrot.lane.b32.xlu0 %v1139, 32
      %v1189 = vpop.permute.xlu0 %1188
      %1190 = vrot.lane.b32.xlu0 %v1141, 32
      %v1191 = vpop.permute.xlu0 %1190
      %1192 = vrot.lane.b32.xlu0 %v1143, 32
      %v1193 = vpop.permute.xlu0 %1192
      %1194 = vrot.lane.b32.xlu0 %v1145, 32
      %v1195 = vpop.permute.xlu0 %1194
      %1196 = vrot.lane.b32.xlu0 %v1147, 32
      %v1197 = vpop.permute.xlu0 %1196
      %1198 = vrot.lane.b32.xlu0 %v1149, 32
      %v1199 = vpop.permute.xlu0 %1198
      %1200 = vrot.lane.b32.xlu0 %v1151, 32
      %v1201 = vpop.permute.xlu0 %1200
      %1202 = vrot.lane.b32.xlu0 %v1153, 32
      %v1203 = vpop.permute.xlu0 %1202
      %1204 = vrot.lane.b32.xlu0 %v1155, 32
      %v1205 = vpop.permute.xlu0 %1204
      %1206 = vrot.lane.b32.xlu0 %v1157, 32
      %v1207 = vpop.permute.xlu0 %1206
      %1208 = vrot.lane.b32.xlu0 %v1159, 32
      %v1209 = vpop.permute.xlu0 %1208
      %1210 = vrot.lane.b32.xlu0 %v1161, 32
      %v1211 = vpop.permute.xlu0 %1210
      %1212 = vrot.lane.b32.xlu0 %v1163, 32
      %v1213 = vpop.permute.xlu0 %1212
      %1214 = vrot.lane.b32.xlu0 %v1165, 32
      %v1215 = vpop.permute.xlu0 %1214
      %1216 = vrot.lane.b32.xlu0 %v1167, 32
      %v1217 = vpop.permute.xlu0 %1216
      %1218 = vrot.lane.b32.xlu0 %v1169, 32
      %v1219 = vpop.permute.xlu0 %1218
      %1220 = vrot.lane.b32.xlu0 %v1171, 32
      %v1221 = vpop.permute.xlu0 %1220
      %1222 = vrot.lane.b32.xlu0 %v1173, 32
      %v1223 = vpop.permute.xlu0 %1222
      %1224 = vrot.lane.b32.xlu0 %v1175, 32
      %v1225 = vpop.permute.xlu0 %1224
      %1226 = vrot.lane.b32.xlu0 %v1177, 32
      %v1227 = vpop.permute.xlu0 %1226
      %1228 = vrot.lane.b32.xlu0 %v1179, 32
      %v1229 = vpop.permute.xlu0 %1228
      %1230 = vrot.lane.b32.xlu0 %v1181, 32
      %v1231 = vpop.permute.xlu0 %1230
      %1232 = vrot.lane.b32.xlu0 %v1183, 32
      %v1233 = vpop.permute.xlu0 %1232
      %v1236 = vsel %vm738, %v884, %v1083
      %v1238 = vsel %vm738, %v347, %v1085
      %v1240 = vsel %vm738, %v348, %v1087
      %v1242 = vsel %vm738, %v349, %v1089
      %v1244 = vsel %vm738, %v350, %v1091
      %v1246 = vsel %vm738, %v351, %v1093
      %v1248 = vsel %vm738, %v352, %v1095
      %v1250 = vsel %vm738, %v353, %v1097
      %v1252 = vsel %vm738, %v354, %v1099
      %v1254 = vsel %vm738, %v355, %v1101
      %v1256 = vsel %vm738, %v356, %v1103
      %v1258 = vsel %vm738, %v357, %v1105
      %v1260 = vsel %vm738, %v358, %v1107
      %v1262 = vsel %vm738, %v359, %v1109
      %v1264 = vsel %vm738, %v360, %v1111
      %v1266 = vsel %vm738, %v361, %v1113
      %v1268 = vsel %vm738, %v362, %v1115
      %v1270 = vsel %vm738, %v363, %v1117
      %v1272 = vsel %vm738, %v364, %v1119
      %v1274 = vsel %vm738, %v365, %v1121
      %v1276 = vsel %vm738, %v366, %v1123
      %v1278 = vsel %vm738, %v367, %v1125
      %v1280 = vsel %vm738, %v368, %v1127
      %v1283 = vsel %vm738, %v885, %v1129
      %v1286 = vsel %vm738, %v886, %v1131
      %v1288 = vsel %vm814, %v1236, %v1185
      %v1290 = vsel %vm814, %v1238, %v1187
      %v1292 = vsel %vm814, %v1240, %v1189
      %v1294 = vsel %vm814, %v1242, %v1191
      %v1296 = vsel %vm814, %v1244, %v1193
      %v1298 = vsel %vm814, %v1246, %v1195
      %v1300 = vsel %vm814, %v1248, %v1197
      %v1302 = vsel %vm814, %v1250, %v1199
      %v1304 = vsel %vm814, %v1252, %v1201
      %v1306 = vsel %vm814, %v1254, %v1203
      %v1308 = vsel %vm814, %v1256, %v1205
      %v1310 = vsel %vm814, %v1258, %v1207
      %v1312 = vsel %vm814, %v1260, %v1209
      %v1314 = vsel %vm814, %v1262, %v1211
      %v1316 = vsel %vm814, %v1264, %v1213
      %v1318 = vsel %vm814, %v1266, %v1215
      %v1320 = vsel %vm814, %v1268, %v1217
      %v1322 = vsel %vm814, %v1270, %v1219
      %v1324 = vsel %vm814, %v1272, %v1221
      %v1326 = vsel %vm814, %v1274, %v1223
      %v1328 = vsel %vm814, %v1276, %v1225
      %v1330 = vsel %vm814, %v1278, %v1227
      %v1332 = vsel %vm814, %v1280, %v1229
      %v1334 = vsel %vm814, %v1283, %v1231
      %v1336 = vsel %vm814, %v1286, %v1233
      %s1337 = scalar_lea.vmem %s1, 24
      %v1338 = vld [vmem:[%s1337] sm:$0xf]
      %v1339 = vld [vmem:[%s1337 + $0x4] sm:$0xf]
      %v1340 = vld [vmem:[%s1337 + $0x8] sm:$0xf]
      %v1341 = vld [vmem:[%s1337 + $0xc] sm:$0xf]
      %v1342 = vld [vmem:[%s1337 + $0x10] sm:$0xf]
      %v1343 = vld [vmem:[%s1337 + $0x14] sm:$0xf]
      %vm1344 = vsmask.f32 4352
      %v1345 = vshrl.u32 %v1288, 16
      %v1347 = vrot.slane %v1345, 3
      %v1348 = vshll.u32 %v1288, 16
      %v1350 = vrot.slane %v1348, 4
      %v1351 = vor.u32 %v1347, %v1350
      %v1352 = vshrl.u32 %v1290, 16
      %v1354 = vrot.slane %v1352, 3
      %v1355 = vshll.u32 %v1290, 16
      %v1357 = vrot.slane %v1355, 4
      %v1358 = vor.u32 %v1354, %v1357
      %v1359 = vsel %vm1344, %v1351, %v1358
      %v1360 = vshrl.u32 %v1292, 16
      %v1362 = vrot.slane %v1360, 3
      %v1363 = vshll.u32 %v1292, 16
      %v1365 = vrot.slane %v1363, 4
      %v1366 = vor.u32 %v1362, %v1365
      %v1367 = vsel %vm1344, %v1358, %v1366
      %v1368 = vshrl.u32 %v1294, 16
      %v1370 = vrot.slane %v1368, 3
      %v1371 = vshll.u32 %v1294, 16
      %v1373 = vrot.slane %v1371, 4
      %v1374 = vor.u32 %v1370, %v1373
      %v1375 = vsel %vm1344, %v1366, %v1374
      %v1376 = vshrl.u32 %v1296, 16
      %v1378 = vrot.slane %v1376, 3
      %v1379 = vshll.u32 %v1296, 16
      %v1381 = vrot.slane %v1379, 4
      %v1382 = vor.u32 %v1378, %v1381
      %v1383 = vsel %vm1344, %v1374, %v1382
      %v1384 = vshrl.u32 %v1298, 16
      %v1386 = vrot.slane %v1384, 3
      %v1387 = vshll.u32 %v1298, 16
      %v1389 = vrot.slane %v1387, 4
      %v1390 = vor.u32 %v1386, %v1389
      %v1391 = vsel %vm1344, %v1382, %v1390
      %v1392 = vshrl.u32 %v1300, 16
      %v1394 = vrot.slane %v1392, 3
      %v1395 = vshll.u32 %v1300, 16
      %v1397 = vrot.slane %v1395, 4
      %v1398 = vor.u32 %v1394, %v1397
      %v1399 = vsel %vm1344, %v1390, %v1398
      %v1400 = vshrl.u32 %v1302, 16
      %v1402 = vrot.slane %v1400, 3
      %v1403 = vshll.u32 %v1302, 16
      %v1405 = vrot.slane %v1403, 4
      %v1406 = vor.u32 %v1402, %v1405
      %v1407 = vsel %vm1344, %v1398, %v1406
      %v1408 = vshrl.u32 %v1304, 16
      %v1410 = vrot.slane %v1408, 3
      %v1411 = vshll.u32 %v1304, 16
      %v1413 = vrot.slane %v1411, 4
      %v1414 = vor.u32 %v1410, %v1413
      %v1415 = vsel %vm1344, %v1406, %v1414
      %v1416 = vshrl.u32 %v1306, 16
      %v1418 = vrot.slane %v1416, 3
      %v1419 = vshll.u32 %v1306, 16
      %v1421 = vrot.slane %v1419, 4
      %v1422 = vor.u32 %v1418, %v1421
      %v1423 = vsel %vm1344, %v1414, %v1422
      %v1424 = vshrl.u32 %v1308, 16
      %v1426 = vrot.slane %v1424, 3
      %v1427 = vshll.u32 %v1308, 16
      %v1429 = vrot.slane %v1427, 4
      %v1430 = vor.u32 %v1426, %v1429
      %v1431 = vsel %vm1344, %v1422, %v1430
      %v1432 = vshrl.u32 %v1310, 16
      %v1434 = vrot.slane %v1432, 3
      %v1435 = vshll.u32 %v1310, 16
      %v1437 = vrot.slane %v1435, 4
      %v1438 = vor.u32 %v1434, %v1437
      %v1439 = vsel %vm1344, %v1430, %v1438
      %v1440 = vshrl.u32 %v1312, 16
      %v1442 = vrot.slane %v1440, 3
      %v1443 = vshll.u32 %v1312, 16
      %v1445 = vrot.slane %v1443, 4
      %v1446 = vor.u32 %v1442, %v1445
      %v1447 = vsel %vm1344, %v1438, %v1446
      %v1448 = vshrl.u32 %v1314, 16
      %v1450 = vrot.slane %v1448, 3
      %v1451 = vshll.u32 %v1314, 16
      %v1453 = vrot.slane %v1451, 4
      %v1454 = vor.u32 %v1450, %v1453
      %v1455 = vsel %vm1344, %v1446, %v1454
      %v1456 = vshrl.u32 %v1316, 16
      %v1458 = vrot.slane %v1456, 3
      %v1459 = vshll.u32 %v1316, 16
      %v1461 = vrot.slane %v1459, 4
      %v1462 = vor.u32 %v1458, %v1461
      %v1463 = vsel %vm1344, %v1454, %v1462
      %v1464 = vshrl.u32 %v1318, 16
      %v1466 = vrot.slane %v1464, 3
      %v1467 = vshll.u32 %v1318, 16
      %v1469 = vrot.slane %v1467, 4
      %v1470 = vor.u32 %v1466, %v1469
      %v1471 = vsel %vm1344, %v1462, %v1470
      %v1472 = vshrl.u32 %v1320, 16
      %v1474 = vrot.slane %v1472, 3
      %v1475 = vshll.u32 %v1320, 16
      %v1477 = vrot.slane %v1475, 4
      %v1478 = vor.u32 %v1474, %v1477
      %v1479 = vsel %vm1344, %v1470, %v1478
      %v1480 = vshrl.u32 %v1322, 16
      %v1482 = vrot.slane %v1480, 3
      %v1483 = vshll.u32 %v1322, 16
      %v1485 = vrot.slane %v1483, 4
      %v1486 = vor.u32 %v1482, %v1485
      %v1487 = vsel %vm1344, %v1478, %v1486
      %v1488 = vshrl.u32 %v1324, 16
      %v1490 = vrot.slane %v1488, 3
      %v1491 = vshll.u32 %v1324, 16
      %v1493 = vrot.slane %v1491, 4
      %v1494 = vor.u32 %v1490, %v1493
      %v1495 = vsel %vm1344, %v1486, %v1494
      %v1496 = vshrl.u32 %v1326, 16
      %v1498 = vrot.slane %v1496, 3
      %v1499 = vshll.u32 %v1326, 16
      %v1501 = vrot.slane %v1499, 4
      %v1502 = vor.u32 %v1498, %v1501
      %v1503 = vsel %vm1344, %v1494, %v1502
      %v1504 = vshrl.u32 %v1328, 16
      %v1506 = vrot.slane %v1504, 3
      %v1507 = vshll.u32 %v1328, 16
      %v1509 = vrot.slane %v1507, 4
      %v1510 = vor.u32 %v1506, %v1509
      %v1511 = vsel %vm1344, %v1502, %v1510
      %v1512 = vshrl.u32 %v1330, 16
      %v1514 = vrot.slane %v1512, 3
      %v1515 = vshll.u32 %v1330, 16
      %v1517 = vrot.slane %v1515, 4
      %v1518 = vor.u32 %v1514, %v1517
      %v1519 = vsel %vm1344, %v1510, %v1518
      %v1520 = vshrl.u32 %v1332, 16
      %v1522 = vrot.slane %v1520, 3
      %v1523 = vshll.u32 %v1332, 16
      %v1525 = vrot.slane %v1523, 4
      %v1526 = vor.u32 %v1522, %v1525
      %v1527 = vsel %vm1344, %v1518, %v1526
      %v1528 = vshrl.u32 %v1334, 16
      %v1530 = vrot.slane %v1528, 3
      %v1531 = vshll.u32 %v1334, 16
      %v1533 = vrot.slane %v1531, 4
      %v1534 = vor.u32 %v1530, %v1533
      %v1535 = vsel %vm1344, %v1526, %v1534
      %v1536 = vshrl.u32 %v1336, 16
      %v1538 = vrot.slane %v1536, 3
      %v1539 = vshll.u32 %v1336, 16
      %v1541 = vrot.slane %v1539, 4
      %v1542 = vor.u32 %v1538, %v1541
      %v1543 = vsel %vm1344, %v1534, %v1542
      %v1550 = vunpack.c.l.b16 %v1338
      %v1551 = vunpack.c.l.b16 %v1339
      %v1552 = vunpack.c.l.b16 %v1340
      %v1553 = vunpack.c.l.b16 %v1341
      %v1554 = vunpack.c.l.b16 %v1342
      %v1555 = vunpack.c.l.b16 %v1343
      %v1556 = vpack.c.b16 %v1551, %v1550
      %v1557 = vpack.c.b16 %v1553, %v1552
      %v1558 = vpack.c.b16 %v1555, %v1554
      %vm1562 = vcmask 392192
      %v1564 = vsel %vm1562, %v1359, 0
      %v1567 = vsel %vm1562, %v1367, 0
      %v1570 = vsel %vm1562, %v1375, 0
      %v1573 = vsel %vm1562, %v1383, 0
      %v1576 = vsel %vm1562, %v1391, 0
      %v1579 = vsel %vm1562, %v1399, 0
      %v1582 = vsel %vm1562, %v1407, 0
      %v1585 = vsel %vm1562, %v1415, 0
      %v1588 = vsel %vm1562, %v1423, 0
      %v1591 = vsel %vm1562, %v1431, 0
      %v1594 = vsel %vm1562, %v1439, 0
      %v1597 = vsel %vm1562, %v1447, 0
      %v1600 = vsel %vm1562, %v1455, 0
      %v1603 = vsel %vm1562, %v1463, 0
      %v1606 = vsel %vm1562, %v1471, 0
      %v1609 = vsel %vm1562, %v1479, 0
      %v1612 = vsel %vm1562, %v1487, 0
      %v1615 = vsel %vm1562, %v1495, 0
      %v1618 = vsel %vm1562, %v1503, 0
      %v1621 = vsel %vm1562, %v1511, 0
      %v1624 = vsel %vm1562, %v1519, 0
      %v1627 = vsel %vm1562, %v1527, 0
      %v1630 = vsel %vm1562, %v1535, 0
      %v1633 = vsel %vm1562, %v1543, 0
      %1635 = vmatprep.subr.bf16.mxu0 0
      %1636 = vmatpush1.bf16.msra.mxu0 %v1556
      %1637 = vmatprep.subr.bf16.mxu0 0
      %1638 = vmatpush1.bf16.msra.mxu0 %v1557
      %1639 = vmatprep.subr.bf16.mxu0 0
      %1640 = vmatpush1.bf16.msra.mxu0 %v1558
      %1641 = vmatprep.subr.bf16.mxu0 0
      %1642 = vmatpush1.bf16.msra.mxu0 0
      %1643 = vmatprep.subr.bf16.mxu0 0
      %1644 = vmatpush1.bf16.msra.mxu0 0
      %1645 = vmatprep.subr.bf16.mxu0 0
      %1646 = vmatpush1.bf16.msra.mxu0 0
      %1647 = vmatprep.subr.bf16.mxu0 0
      %1648 = vmatpush1.bf16.msra.mxu0 0
      %1649 = vmatprep.subr.bf16.mxu0 0
      %1650 = vmatpush1.bf16.msra.mxu0 0
      %1651 = vmatprep.subr.bf16.mxu0 0
      %1652 = vmatpush1.bf16.msra.mxu0 0
      %1653 = vmatprep.subr.bf16.mxu0 0
      %1654 = vmatpush1.bf16.msra.mxu0 0
      %1655 = vmatprep.subr.bf16.mxu0 0
      %1656 = vmatpush1.bf16.msra.mxu0 0
      %1657 = vmatprep.subr.bf16.mxu0 0
      %1658 = vmatpush1.bf16.msra.mxu0 0
      %1659 = vmatprep.subr.bf16.mxu0 0
      %1660 = vmatpush1.bf16.msra.mxu0 0
      %1661 = vmatprep.subr.bf16.mxu0 0
      %1662 = vmatpush1.bf16.msra.mxu0 0
      %1663 = vmatprep.subr.bf16.mxu0 0
      %1664 = vmatpush1.bf16.msra.mxu0 0
      %1665 = vmatprep.subr.bf16.mxu0 0
      %1666 = vmatpush1.bf16.msra.mxu0 0
      %1667 = vmatprep.mubr.bf16.mxu0 0
      %1668 = vmatmul.mubr.bf16.gmra.mrb[0].mxu0 %v1564
      %v1669 = vpop.f32.mrb[0].mxu0
      %v1670 = vadd.f32 0.0, %v1669
      %v1671 = vpop.f32.mrb[0].mxu0
      %v1672 = vpop.f32.mrb[0].mxu0
      %v1673 = vadd.f32 0.0, %v1672
      %v1674 = vpop.f32.mrb[0].mxu0
      %1675 = vmatprep.mubr.bf16.mxu0 0
      %1676 = vmatmul.mubr.bf16.gmra.mrb[0].mxu0 %v1567
      %v1677 = vpop.f32.mrb[0].mxu0
      %v1678 = vadd.f32 0.0, %v1677
      %v1679 = vpop.f32.mrb[0].mxu0
      %v1680 = vpop.f32.mrb[0].mxu0
      %v1681 = vadd.f32 0.0, %v1680
      %v1682 = vpop.f32.mrb[0].mxu0
      %1683 = vmatprep.mubr.bf16.mxu0 0
      %1684 = vmatmul.mubr.bf16.gmra.mrb[0].mxu0 %v1570
      %v1685 = vpop.f32.mrb[0].mxu0
      %v1686 = vadd.f32 0.0, %v1685
      %v1687 = vpop.f32.mrb[0].mxu0
      %v1688 = vpop.f32.mrb[0].mxu0
      %v1689 = vadd.f32 0.0, %v1688
      %v1690 = vpop.f32.mrb[0].mxu0
      %1691 = vmatprep.mubr.bf16.mxu0 0
      %1692 = vmatmul.mubr.bf16.gmra.mrb[0].mxu0 %v1573
      %v1693 = vpop.f32.mrb[0].mxu0
      %v1694 = vadd.f32 0.0, %v1693
      %v1695 = vpop.f32.mrb[0].mxu0
      %v1696 = vpop.f32.mrb[0].mxu0
      %v1697 = vadd.f32 0.0, %v1696
      %v1698 = vpop.f32.mrb[0].mxu0
      %1699 = vmatprep.mubr.bf16.mxu0 0
      %1700 = vmatmul.mubr.bf16.gmra.mrb[0].mxu0 %v1576
      %v1701 = vpop.f32.mrb[0].mxu0
      %v1702 = vadd.f32 0.0, %v1701
      %v1703 = vpop.f32.mrb[0].mxu0
      %v1704 = vpop.f32.mrb[0].mxu0
      %v1705 = vadd.f32 0.0, %v1704
      %v1706 = vpop.f32.mrb[0].mxu0
      %1707 = vmatprep.mubr.bf16.mxu0 0
      %1708 = vmatmul.mubr.bf16.gmra.mrb[0].mxu0 %v1579
      %v1709 = vpop.f32.mrb[0].mxu0
      %v1710 = vadd.f32 0.0, %v1709
      %v1711 = vpop.f32.mrb[0].mxu0
      %v1712 = vpop.f32.mrb[0].mxu0
      %v1713 = vadd.f32 0.0, %v1712
      %v1714 = vpop.f32.mrb[0].mxu0
      %1715 = vmatprep.mubr.bf16.mxu0 0
      %1716 = vmatmul.mubr.bf16.gmra.mrb[0].mxu0 %v1582
      %v1717 = vpop.f32.mrb[0].mxu0
      %v1718 = vadd.f32 0.0, %v1717
      %v1719 = vpop.f32.mrb[0].mxu0
      %v1720 = vpop.f32.mrb[0].mxu0
      %v1721 = vadd.f32 0.0, %v1720
      %v1722 = vpop.f32.mrb[0].mxu0
      %1723 = vmatprep.mubr.bf16.mxu0 0
      %1724 = vmatmul.mubr.bf16.gmra.mrb[0].mxu0 %v1585
      %v1725 = vpop.f32.mrb[0].mxu0
      %v1726 = vadd.f32 0.0, %v1725
      %v1727 = vpop.f32.mrb[0].mxu0
      %v1728 = vpop.f32.mrb[0].mxu0
      %v1729 = vadd.f32 0.0, %v1728
      %v1730 = vpop.f32.mrb[0].mxu0
      %1731 = vmatprep.mubr.bf16.mxu0 0
      %1732 = vmatmul.mubr.bf16.gmra.mrb[0].mxu0 %v1588
      %v1733 = vpop.f32.mrb[0].mxu0
      %v1734 = vadd.f32 0.0, %v1733
      %v1735 = vpop.f32.mrb[0].mxu0
      %v1736 = vpop.f32.mrb[0].mxu0
      %v1737 = vadd.f32 0.0, %v1736
      %v1738 = vpop.f32.mrb[0].mxu0
      %1739 = vmatprep.mubr.bf16.mxu0 0
      %1740 = vmatmul.mubr.bf16.gmra.mrb[0].mxu0 %v1591
      %v1741 = vpop.f32.mrb[0].mxu0
      %v1742 = vadd.f32 0.0, %v1741
      %v1743 = vpop.f32.mrb[0].mxu0
      %v1744 = vpop.f32.mrb[0].mxu0
      %v1745 = vadd.f32 0.0, %v1744
      %v1746 = vpop.f32.mrb[0].mxu0
      %1747 = vmatprep.mubr.bf16.mxu0 0
      %1748 = vmatmul.mubr.bf16.gmra.mrb[0].mxu0 %v1594
      %v1749 = vpop.f32.mrb[0].mxu0
      %v1750 = vadd.f32 0.0, %v1749
      %v1751 = vpop.f32.mrb[0].mxu0
      %v1752 = vpop.f32.mrb[0].mxu0
      %v1753 = vadd.f32 0.0, %v1752
      %v1754 = vpop.f32.mrb[0].mxu0
      %1755 = vmatprep.mubr.bf16.mxu0 0
      %1756 = vmatmul.mubr.bf16.gmra.mrb[0].mxu0 %v1597
      %v1757 = vpop.f32.mrb[0].mxu0
      %v1758 = vadd.f32 0.0, %v1757
      %v1759 = vpop.f32.mrb[0].mxu0
      %v1760 = vpop.f32.mrb[0].mxu0
      %v1761 = vadd.f32 0.0, %v1760
      %v1762 = vpop.f32.mrb[0].mxu0
      %1763 = vmatprep.mubr.bf16.mxu0 0
      %1764 = vmatmul.mubr.bf16.gmra.mrb[0].mxu0 %v1600
      %v1765 = vpop.f32.mrb[0].mxu0
      %v1766 = vadd.f32 0.0, %v1765
      %v1767 = vpop.f32.mrb[0].mxu0
      %v1768 = vpop.f32.mrb[0].mxu0
      %v1769 = vadd.f32 0.0, %v1768
      %v1770 = vpop.f32.mrb[0].mxu0
      %1771 = vmatprep.mubr.bf16.mxu0 0
      %1772 = vmatmul.mubr.bf16.gmra.mrb[0].mxu0 %v1603
      %v1773 = vpop.f32.mrb[0].mxu0
      %v1774 = vadd.f32 0.0, %v1773
      %v1775 = vpop.f32.mrb[0].mxu0
      %v1776 = vpop.f32.mrb[0].mxu0
      %v1777 = vadd.f32 0.0, %v1776
      %v1778 = vpop.f32.mrb[0].mxu0
      %1779 = vmatprep.mubr.bf16.mxu0 0
      %1780 = vmatmul.mubr.bf16.gmra.mrb[0].mxu0 %v1606
      %v1781 = vpop.f32.mrb[0].mxu0
      %v1782 = vadd.f32 0.0, %v1781
      %v1783 = vpop.f32.mrb[0].mxu0
      %v1784 = vpop.f32.mrb[0].mxu0
      %v1785 = vadd.f32 0.0, %v1784
      %v1786 = vpop.f32.mrb[0].mxu0
      %1787 = vmatprep.mubr.bf16.mxu0 0
      %1788 = vmatmul.mubr.bf16.gmra.mrb[0].mxu0 %v1609
      %v1789 = vpop.f32.mrb[0].mxu0
      %v1790 = vadd.f32 0.0, %v1789
      %v1791 = vpop.f32.mrb[0].mxu0
      %v1792 = vpop.f32.mrb[0].mxu0
      %v1793 = vadd.f32 0.0, %v1792
      %v1794 = vpop.f32.mrb[0].mxu0
      %1795 = vmatprep.mubr.bf16.mxu0 0
      %1796 = vmatmul.mubr.bf16.gmra.mrb[0].mxu0 %v1612
      %v1797 = vpop.f32.mrb[0].mxu0
      %v1798 = vadd.f32 0.0, %v1797
      %v1799 = vpop.f32.mrb[0].mxu0
      %v1800 = vpop.f32.mrb[0].mxu0
      %v1801 = vadd.f32 0.0, %v1800
      %v1802 = vpop.f32.mrb[0].mxu0
      %1803 = vmatprep.mubr.bf16.mxu0 0
      %1804 = vmatmul.mubr.bf16.gmra.mrb[0].mxu0 %v1615
      %v1805 = vpop.f32.mrb[0].mxu0
      %v1806 = vadd.f32 0.0, %v1805
      %v1807 = vpop.f32.mrb[0].mxu0
      %v1808 = vpop.f32.mrb[0].mxu0
      %v1809 = vadd.f32 0.0, %v1808
      %v1810 = vpop.f32.mrb[0].mxu0
      %1811 = vmatprep.mubr.bf16.mxu0 0
      %1812 = vmatmul.mubr.bf16.gmra.mrb[0].mxu0 %v1618
      %v1813 = vpop.f32.mrb[0].mxu0
      %v1814 = vadd.f32 0.0, %v1813
      %v1815 = vpop.f32.mrb[0].mxu0
      %v1816 = vpop.f32.mrb[0].mxu0
      %v1817 = vadd.f32 0.0, %v1816
      %v1818 = vpop.f32.mrb[0].mxu0
      %1819 = vmatprep.mubr.bf16.mxu0 0
      %1820 = vmatmul.mubr.bf16.gmra.mrb[0].mxu0 %v1621
      %v1821 = vpop.f32.mrb[0].mxu0
      %v1822 = vadd.f32 0.0, %v1821
      %v1823 = vpop.f32.mrb[0].mxu0
      %v1824 = vpop.f32.mrb[0].mxu0
      %v1825 = vadd.f32 0.0, %v1824
      %v1826 = vpop.f32.mrb[0].mxu0
      %1827 = vmatprep.mubr.bf16.mxu0 0
      %1828 = vmatmul.mubr.bf16.gmra.mrb[0].mxu0 %v1624
      %v1829 = vpop.f32.mrb[0].mxu0
      %v1830 = vadd.f32 0.0, %v1829
      %v1831 = vpop.f32.mrb[0].mxu0
      %v1832 = vpop.f32.mrb[0].mxu0
      %v1833 = vadd.f32 0.0, %v1832
      %v1834 = vpop.f32.mrb[0].mxu0
      %1835 = vmatprep.mubr.bf16.mxu0 0
      %1836 = vmatmul.mubr.bf16.gmra.mrb[0].mxu0 %v1627
      %v1837 = vpop.f32.mrb[0].mxu0
      %v1838 = vadd.f32 0.0, %v1837
      %v1839 = vpop.f32.mrb[0].mxu0
      %v1840 = vpop.f32.mrb[0].mxu0
      %v1841 = vadd.f32 0.0, %v1840
      %v1842 = vpop.f32.mrb[0].mxu0
      %1843 = vmatprep.mubr.bf16.mxu0 0
      %1844 = vmatmul.mubr.bf16.gmra.mrb[0].mxu0 %v1630
      %v1845 = vpop.f32.mrb[0].mxu0
      %v1846 = vadd.f32 0.0, %v1845
      %v1847 = vpop.f32.mrb[0].mxu0
      %v1848 = vpop.f32.mrb[0].mxu0
      %v1849 = vadd.f32 0.0, %v1848
      %v1850 = vpop.f32.mrb[0].mxu0
      %1851 = vmatprep.mubr.bf16.mxu0 0
      %1852 = vmatmul.mubr.bf16.gmra.mrb[0].mxu0 %v1633
      %v1853 = vpop.f32.mrb[0].mxu0
      %v1854 = vadd.f32 0.0, %v1853
      %v1855 = vpop.f32.mrb[0].mxu0
      %v1856 = vpop.f32.mrb[0].mxu0
      %v1857 = vadd.f32 0.0, %v1856
      %v1858 = vpop.f32.mrb[0].mxu0
      %1859 = vdwg.mxu0
      %v1860 = vshrl.u32 %v816, 16
      %v1862 = vrot.slane %v1860, 3
      %v1863 = vshll.u32 %v816, 16
      %v1865 = vrot.slane %v1863, 4
      %v1866 = vor.u32 %v1862, %v1865
      %v1867 = vshrl.u32 %v818, 16
      %v1869 = vrot.slane %v1867, 3
      %v1870 = vshll.u32 %v818, 16
      %v1872 = vrot.slane %v1870, 4
      %v1873 = vor.u32 %v1869, %v1872
      %v1874 = vsel %vm1344, %v1866, %v1873
      %v1875 = vshrl.u32 %v820, 16
      %v1877 = vrot.slane %v1875, 3
      %v1878 = vshll.u32 %v820, 16
      %v1880 = vrot.slane %v1878, 4
      %v1881 = vor.u32 %v1877, %v1880
      %v1882 = vsel %vm1344, %v1873, %v1881
      %v1883 = vshrl.u32 %v822, 16
      %v1885 = vrot.slane %v1883, 3
      %v1886 = vshll.u32 %v822, 16
      %v1888 = vrot.slane %v1886, 4
      %v1889 = vor.u32 %v1885, %v1888
      %v1890 = vsel %vm1344, %v1881, %v1889
      %v1891 = vshrl.u32 %v824, 16
      %v1893 = vrot.slane %v1891, 3
      %v1894 = vshll.u32 %v824, 16
      %v1896 = vrot.slane %v1894, 4
      %v1897 = vor.u32 %v1893, %v1896
      %v1898 = vsel %vm1344, %v1889, %v1897
      %v1899 = vshrl.u32 %v826, 16
      %v1901 = vrot.slane %v1899, 3
      %v1902 = vshll.u32 %v826, 16
      %v1904 = vrot.slane %v1902, 4
      %v1905 = vor.u32 %v1901, %v1904
      %v1906 = vsel %vm1344, %v1897, %v1905
      %v1907 = vshrl.u32 %v828, 16
      %v1909 = vrot.slane %v1907, 3
      %v1910 = vshll.u32 %v828, 16
      %v1912 = vrot.slane %v1910, 4
      %v1913 = vor.u32 %v1909, %v1912
      %v1914 = vsel %vm1344, %v1905, %v1913
      %v1915 = vshrl.u32 %v830, 16
      %v1917 = vrot.slane %v1915, 3
      %v1918 = vshll.u32 %v830, 16
      %v1920 = vrot.slane %v1918, 4
      %v1921 = vor.u32 %v1917, %v1920
      %v1922 = vsel %vm1344, %v1913, %v1921
      %v1923 = vshrl.u32 %v832, 16
      %v1925 = vrot.slane %v1923, 3
      %v1926 = vshll.u32 %v832, 16
      %v1928 = vrot.slane %v1926, 4
      %v1929 = vor.u32 %v1925, %v1928
      %v1930 = vsel %vm1344, %v1921, %v1929
      %v1931 = vshrl.u32 %v834, 16
      %v1933 = vrot.slane %v1931, 3
      %v1934 = vshll.u32 %v834, 16
      %v1936 = vrot.slane %v1934, 4
      %v1937 = vor.u32 %v1933, %v1936
      %v1938 = vsel %vm1344, %v1929, %v1937
      %v1939 = vshrl.u32 %v836, 16
      %v1941 = vrot.slane %v1939, 3
      %v1942 = vshll.u32 %v836, 16
      %v1944 = vrot.slane %v1942, 4
      %v1945 = vor.u32 %v1941, %v1944
      %v1946 = vsel %vm1344, %v1937, %v1945
      %v1947 = vshrl.u32 %v838, 16
      %v1949 = vrot.slane %v1947, 3
      %v1950 = vshll.u32 %v838, 16
      %v1952 = vrot.slane %v1950, 4
      %v1953 = vor.u32 %v1949, %v1952
      %v1954 = vsel %vm1344, %v1945, %v1953
      %v1955 = vshrl.u32 %v840, 16
      %v1957 = vrot.slane %v1955, 3
      %v1958 = vshll.u32 %v840, 16
      %v1960 = vrot.slane %v1958, 4
      %v1961 = vor.u32 %v1957, %v1960
      %v1962 = vsel %vm1344, %v1953, %v1961
      %v1963 = vshrl.u32 %v842, 16
      %v1965 = vrot.slane %v1963, 3
      %v1966 = vshll.u32 %v842, 16
      %v1968 = vrot.slane %v1966, 4
      %v1969 = vor.u32 %v1965, %v1968
      %v1970 = vsel %vm1344, %v1961, %v1969
      %v1971 = vshrl.u32 %v844, 16
      %v1973 = vrot.slane %v1971, 3
      %v1974 = vshll.u32 %v844, 16
      %v1976 = vrot.slane %v1974, 4
      %v1977 = vor.u32 %v1973, %v1976
      %v1978 = vsel %vm1344, %v1969, %v1977
      %v1979 = vshrl.u32 %v846, 16
      %v1981 = vrot.slane %v1979, 3
      %v1982 = vshll.u32 %v846, 16
      %v1984 = vrot.slane %v1982, 4
      %v1985 = vor.u32 %v1981, %v1984
      %v1986 = vsel %vm1344, %v1977, %v1985
      %v1987 = vshrl.u32 %v848, 16
      %v1989 = vrot.slane %v1987, 3
      %v1990 = vshll.u32 %v848, 16
      %v1992 = vrot.slane %v1990, 4
      %v1993 = vor.u32 %v1989, %v1992
      %v1994 = vsel %vm1344, %v1985, %v1993
      %v1995 = vshrl.u32 %v850, 16
      %v1997 = vrot.slane %v1995, 3
      %v1998 = vshll.u32 %v850, 16
      %v2000 = vrot.slane %v1998, 4
      %v2001 = vor.u32 %v1997, %v2000
      %v2002 = vsel %vm1344, %v1993, %v2001
      %v2003 = vshrl.u32 %v852, 16
      %v2005 = vrot.slane %v2003, 3
      %v2006 = vshll.u32 %v852, 16
      %v2008 = vrot.slane %v2006, 4
      %v2009 = vor.u32 %v2005, %v2008
      %v2010 = vsel %vm1344, %v2001, %v2009
      %v2011 = vshrl.u32 %v854, 16
      %v2013 = vrot.slane %v2011, 3
      %v2014 = vshll.u32 %v854, 16
      %v2016 = vrot.slane %v2014, 4
      %v2017 = vor.u32 %v2013, %v2016
      %v2018 = vsel %vm1344, %v2009, %v2017
      %v2019 = vshrl.u32 %v856, 16
      %v2021 = vrot.slane %v2019, 3
      %v2022 = vshll.u32 %v856, 16
      %v2024 = vrot.slane %v2022, 4
      %v2025 = vor.u32 %v2021, %v2024
      %v2026 = vsel %vm1344, %v2017, %v2025
      %v2027 = vshrl.u32 %v858, 16
      %v2029 = vrot.slane %v2027, 3
      %v2030 = vshll.u32 %v858, 16
      %v2032 = vrot.slane %v2030, 4
      %v2033 = vor.u32 %v2029, %v2032
      %v2034 = vsel %vm1344, %v2025, %v2033
      %v2035 = vshrl.u32 %v860, 16
      %v2037 = vrot.slane %v2035, 3
      %v2038 = vshll.u32 %v860, 16
      %v2040 = vrot.slane %v2038, 4
      %v2041 = vor.u32 %v2037, %v2040
      %v2042 = vsel %vm1344, %v2033, %v2041
      %v2043 = vshrl.u32 %v862, 16
      %v2045 = vrot.slane %v2043, 3
      %v2046 = vshll.u32 %v862, 16
      %v2048 = vrot.slane %v2046, 4
      %v2049 = vor.u32 %v2045, %v2048
      %v2050 = vsel %vm1344, %v2041, %v2049
      %v2051 = vshrl.u32 %v864, 16
      %v2053 = vrot.slane %v2051, 3
      %v2054 = vshll.u32 %v864, 16
      %v2056 = vrot.slane %v2054, 4
      %v2057 = vor.u32 %v2053, %v2056
      %v2058 = vsel %vm1344, %v2049, %v2057
      %v2065 = vunpack.c.l.b16 %v865
      %v2066 = vunpack.c.l.b16 %v866
      %v2067 = vunpack.c.l.b16 %v867
      %v2068 = vunpack.c.l.b16 %v868
      %v2069 = vunpack.c.l.b16 %v869
      %v2070 = vunpack.c.l.b16 %v870
      %v2071 = vpack.c.b16 %v2066, %v2065
      %v2072 = vpack.c.b16 %v2068, %v2067
      %v2073 = vpack.c.b16 %v2070, %v2069
      %v2078 = vsel %vm1562, %v1874, 0
      %v2081 = vsel %vm1562, %v1882, 0
      %v2084 = vsel %vm1562, %v1890, 0
      %v2087 = vsel %vm1562, %v1898, 0
      %v2090 = vsel %vm1562, %v1906, 0
      %v2093 = vsel %vm1562, %v1914, 0
      %v2096 = vsel %vm1562, %v1922, 0
      %v2099 = vsel %vm1562, %v1930, 0
      %v2102 = vsel %vm1562, %v1938, 0
      %v2105 = vsel %vm1562, %v1946, 0
      %v2108 = vsel %vm1562, %v1954, 0
      %v2111 = vsel %vm1562, %v1962, 0
      %v2114 = vsel %vm1562, %v1970, 0
      %v2117 = vsel %vm1562, %v1978, 0
      %v2120 = vsel %vm1562, %v1986, 0
      %v2123 = vsel %vm1562, %v1994, 0
      %v2126 = vsel %vm1562, %v2002, 0
      %v2129 = vsel %vm1562, %v2010, 0
      %v2132 = vsel %vm1562, %v2018, 0
      %v2135 = vsel %vm1562, %v2026, 0
      %v2138 = vsel %vm1562, %v2034, 0
      %v2141 = vsel %vm1562, %v2042, 0
      %v2144 = vsel %vm1562, %v2050, 0
      %v2147 = vsel %vm1562, %v2058, 0
      %2149 = vmatprep.subr.bf16.mxu0 0
      %2150 = vmatpush1.bf16.msra.mxu0 %v2071
      %2151 = vmatprep.subr.bf16.mxu0 0
      %2152 = vmatpush1.bf16.msra.mxu0 %v2072
      %2153 = vmatprep.subr.bf16.mxu0 0
      %2154 = vmatpush1.bf16.msra.mxu0 %v2073
      %2155 = vmatprep.subr.bf16.mxu0 0
      %2156 = vmatpush1.bf16.msra.mxu0 0
      %2157 = vmatprep.subr.bf16.mxu0 0
      %2158 = vmatpush1.bf16.msra.mxu0 0
      %2159 = vmatprep.subr.bf16.mxu0 0
      %2160 = vmatpush1.bf16.msra.mxu0 0
      %2161 = vmatprep.subr.bf16.mxu0 0
      %2162 = vmatpush1.bf16.msra.mxu0 0
      %2163 = vmatprep.subr.bf16.mxu0 0
      %2164 = vmatpush1.bf16.msra.mxu0 0
      %2165 = vmatprep.subr.bf16.mxu0 0
      %2166 = vmatpush1.bf16.msra.mxu0 0
      %2167 = vmatprep.subr.bf16.mxu0 0
      %2168 = vmatpush1.bf16.msra.mxu0 0
      %2169 = vmatprep.subr.bf16.mxu0 0
      %2170 = vmatpush1.bf16.msra.mxu0 0
      %2171 = vmatprep.subr.bf16.mxu0 0
      %2172 = vmatpush1.bf16.msra.mxu0 0
      %2173 = vmatprep.subr.bf16.mxu0 0
      %2174 = vmatpush1.bf16.msra.mxu0 0
      %2175 = vmatprep.subr.bf16.mxu0 0
      %2176 = vmatpush1.bf16.msra.mxu0 0
      %2177 = vmatprep.subr.bf16.mxu0 0
      %2178 = vmatpush1.bf16.msra.mxu0 0
      %2179 = vmatprep.subr.bf16.mxu0 0
      %2180 = vmatpush1.bf16.msra.mxu0 0
      %2181 = vmatprep.mubr.bf16.mxu0 0
      %2182 = vmatmul.mubr.bf16.gmra.mrb[0].mxu0 %v2078
      %v2183 = vpop.f32.mrb[0].mxu0
      %v2184 = vadd.f32 %v1670, %v2183
      %v2185 = vpop.f32.mrb[0].mxu0
      %v2186 = vpop.f32.mrb[0].mxu0
      %v2187 = vadd.f32 %v1673, %v2186
      %v2188 = vpop.f32.mrb[0].mxu0
      %2189 = vmatprep.mubr.bf16.mxu0 0
      %2190 = vmatmul.mubr.bf16.gmra.mrb[0].mxu0 %v2081
      %v2191 = vpop.f32.mrb[0].mxu0
      %v2192 = vadd.f32 %v1678, %v2191
      %v2193 = vpop.f32.mrb[0].mxu0
      %v2194 = vpop.f32.mrb[0].mxu0
      %v2195 = vadd.f32 %v1681, %v2194
      %v2196 = vpop.f32.mrb[0].mxu0
      %2197 = vmatprep.mubr.bf16.mxu0 0
      %2198 = vmatmul.mubr.bf16.gmra.mrb[0].mxu0 %v2084
      %v2199 = vpop.f32.mrb[0].mxu0
      %v2200 = vadd.f32 %v1686, %v2199
      %v2201 = vpop.f32.mrb[0].mxu0
      %v2202 = vpop.f32.mrb[0].mxu0
      %v2203 = vadd.f32 %v1689, %v2202
      %v2204 = vpop.f32.mrb[0].mxu0
      %2205 = vmatprep.mubr.bf16.mxu0 0
      %2206 = vmatmul.mubr.bf16.gmra.mrb[0].mxu0 %v2087
      %v2207 = vpop.f32.mrb[0].mxu0
      %v2208 = vadd.f32 %v1694, %v2207
      %v2209 = vpop.f32.mrb[0].mxu0
      %v2210 = vpop.f32.mrb[0].mxu0
      %v2211 = vadd.f32 %v1697, %v2210
      %v2212 = vpop.f32.mrb[0].mxu0
      %2213 = vmatprep.mubr.bf16.mxu0 0
      %2214 = vmatmul.mubr.bf16.gmra.mrb[0].mxu0 %v2090
      %v2215 = vpop.f32.mrb[0].mxu0
      %v2216 = vadd.f32 %v1702, %v2215
      %v2217 = vpop.f32.mrb[0].mxu0
      %v2218 = vpop.f32.mrb[0].mxu0
      %v2219 = vadd.f32 %v1705, %v2218
      %v2220 = vpop.f32.mrb[0].mxu0
      %2221 = vmatprep.mubr.bf16.mxu0 0
      %2222 = vmatmul.mubr.bf16.gmra.mrb[0].mxu0 %v2093
      %v2223 = vpop.f32.mrb[0].mxu0
      %v2224 = vadd.f32 %v1710, %v2223
      %v2225 = vpop.f32.mrb[0].mxu0
      %v2226 = vpop.f32.mrb[0].mxu0
      %v2227 = vadd.f32 %v1713, %v2226
      %v2228 = vpop.f32.mrb[0].mxu0
      %2229 = vmatprep.mubr.bf16.mxu0 0
      %2230 = vmatmul.mubr.bf16.gmra.mrb[0].mxu0 %v2096
      %v2231 = vpop.f32.mrb[0].mxu0
      %v2232 = vadd.f32 %v1718, %v2231
      %v2233 = vpop.f32.mrb[0].mxu0
      %v2234 = vpop.f32.mrb[0].mxu0
      %v2235 = vadd.f32 %v1721, %v2234
      %v2236 = vpop.f32.mrb[0].mxu0
      %2237 = vmatprep.mubr.bf16.mxu0 0
      %2238 = vmatmul.mubr.bf16.gmra.mrb[0].mxu0 %v2099
      %v2239 = vpop.f32.mrb[0].mxu0
      %v2240 = vadd.f32 %v1726, %v2239
      %v2241 = vpop.f32.mrb[0].mxu0
      %v2242 = vpop.f32.mrb[0].mxu0
      %v2243 = vadd.f32 %v1729, %v2242
      %v2244 = vpop.f32.mrb[0].mxu0
      %2245 = vmatprep.mubr.bf16.mxu0 0
      %2246 = vmatmul.mubr.bf16.gmra.mrb[0].mxu0 %v2102
      %v2247 = vpop.f32.mrb[0].mxu0
      %v2248 = vadd.f32 %v1734, %v2247
      %v2249 = vpop.f32.mrb[0].mxu0
      %v2250 = vpop.f32.mrb[0].mxu0
      %v2251 = vadd.f32 %v1737, %v2250
      %v2252 = vpop.f32.mrb[0].mxu0
      %2253 = vmatprep.mubr.bf16.mxu0 0
      %2254 = vmatmul.mubr.bf16.gmra.mrb[0].mxu0 %v2105
      %v2255 = vpop.f32.mrb[0].mxu0
      %v2256 = vadd.f32 %v1742, %v2255
      %v2257 = vpop.f32.mrb[0].mxu0
      %v2258 = vpop.f32.mrb[0].mxu0
      %v2259 = vadd.f32 %v1745, %v2258
      %v2260 = vpop.f32.mrb[0].mxu0
      %2261 = vmatprep.mubr.bf16.mxu0 0
      %2262 = vmatmul.mubr.bf16.gmra.mrb[0].mxu0 %v2108
      %v2263 = vpop.f32.mrb[0].mxu0
      %v2264 = vadd.f32 %v1750, %v2263
      %v2265 = vpop.f32.mrb[0].mxu0
      %v2266 = vpop.f32.mrb[0].mxu0
      %v2267 = vadd.f32 %v1753, %v2266
      %v2268 = vpop.f32.mrb[0].mxu0
      %2269 = vmatprep.mubr.bf16.mxu0 0
      %2270 = vmatmul.mubr.bf16.gmra.mrb[0].mxu0 %v2111
      %v2271 = vpop.f32.mrb[0].mxu0
      %v2272 = vadd.f32 %v1758, %v2271
      %v2273 = vpop.f32.mrb[0].mxu0
      %v2274 = vpop.f32.mrb[0].mxu0
      %v2275 = vadd.f32 %v1761, %v2274
      %v2276 = vpop.f32.mrb[0].mxu0
      %2277 = vmatprep.mubr.bf16.mxu0 0
      %2278 = vmatmul.mubr.bf16.gmra.mrb[0].mxu0 %v2114
      %v2279 = vpop.f32.mrb[0].mxu0
      %v2280 = vadd.f32 %v1766, %v2279
      %v2281 = vpop.f32.mrb[0].mxu0
      %v2282 = vpop.f32.mrb[0].mxu0
      %v2283 = vadd.f32 %v1769, %v2282
      %v2284 = vpop.f32.mrb[0].mxu0
      %2285 = vmatprep.mubr.bf16.mxu0 0
      %2286 = vmatmul.mubr.bf16.gmra.mrb[0].mxu0 %v2117
      %v2287 = vpop.f32.mrb[0].mxu0
      %v2288 = vadd.f32 %v1774, %v2287
      %v2289 = vpop.f32.mrb[0].mxu0
      %v2290 = vpop.f32.mrb[0].mxu0
      %v2291 = vadd.f32 %v1777, %v2290
      %v2292 = vpop.f32.mrb[0].mxu0
      %2293 = vmatprep.mubr.bf16.mxu0 0
      %2294 = vmatmul.mubr.bf16.gmra.mrb[0].mxu0 %v2120
      %v2295 = vpop.f32.mrb[0].mxu0
      %v2296 = vadd.f32 %v1782, %v2295
      %v2297 = vpop.f32.mrb[0].mxu0
      %v2298 = vpop.f32.mrb[0].mxu0
      %v2299 = vadd.f32 %v1785, %v2298
      %v2300 = vpop.f32.mrb[0].mxu0
      %2301 = vmatprep.mubr.bf16.mxu0 0
      %2302 = vmatmul.mubr.bf16.gmra.mrb[0].mxu0 %v2123
      %v2303 = vpop.f32.mrb[0].mxu0
      %v2304 = vadd.f32 %v1790, %v2303
      %v2305 = vpop.f32.mrb[0].mxu0
      %v2306 = vpop.f32.mrb[0].mxu0
      %v2307 = vadd.f32 %v1793, %v2306
      %v2308 = vpop.f32.mrb[0].mxu0
      %2309 = vmatprep.mubr.bf16.mxu0 0
      %2310 = vmatmul.mubr.bf16.gmra.mrb[0].mxu0 %v2126
      %v2311 = vpop.f32.mrb[0].mxu0
      %v2312 = vadd.f32 %v1798, %v2311
      %v2313 = vpop.f32.mrb[0].mxu0
      %v2314 = vpop.f32.mrb[0].mxu0
      %v2315 = vadd.f32 %v1801, %v2314
      %v2316 = vpop.f32.mrb[0].mxu0
      %2317 = vmatprep.mubr.bf16.mxu0 0
      %2318 = vmatmul.mubr.bf16.gmra.mrb[0].mxu0 %v2129
      %v2319 = vpop.f32.mrb[0].mxu0
      %v2320 = vadd.f32 %v1806, %v2319
      %v2321 = vpop.f32.mrb[0].mxu0
      %v2322 = vpop.f32.mrb[0].mxu0
      %v2323 = vadd.f32 %v1809, %v2322
      %v2324 = vpop.f32.mrb[0].mxu0
      %2325 = vmatprep.mubr.bf16.mxu0 0
      %2326 = vmatmul.mubr.bf16.gmra.mrb[0].mxu0 %v2132
      %v2327 = vpop.f32.mrb[0].mxu0
      %v2328 = vadd.f32 %v1814, %v2327
      %v2329 = vpop.f32.mrb[0].mxu0
      %v2330 = vpop.f32.mrb[0].mxu0
      %v2331 = vadd.f32 %v1817, %v2330
      %v2332 = vpop.f32.mrb[0].mxu0
      %2333 = vmatprep.mubr.bf16.mxu0 0
      %2334 = vmatmul.mubr.bf16.gmra.mrb[0].mxu0 %v2135
      %v2335 = vpop.f32.mrb[0].mxu0
      %v2336 = vadd.f32 %v1822, %v2335
      %v2337 = vpop.f32.mrb[0].mxu0
      %v2338 = vpop.f32.mrb[0].mxu0
      %v2339 = vadd.f32 %v1825, %v2338
      %v2340 = vpop.f32.mrb[0].mxu0
      %2341 = vmatprep.mubr.bf16.mxu0 0
      %2342 = vmatmul.mubr.bf16.gmra.mrb[0].mxu0 %v2138
      %v2343 = vpop.f32.mrb[0].mxu0
      %v2344 = vadd.f32 %v1830, %v2343
      %v2345 = vpop.f32.mrb[0].mxu0
      %v2346 = vpop.f32.mrb[0].mxu0
      %v2347 = vadd.f32 %v1833, %v2346
      %v2348 = vpop.f32.mrb[0].mxu0
      %2349 = vmatprep.mubr.bf16.mxu0 0
      %2350 = vmatmul.mubr.bf16.gmra.mrb[0].mxu0 %v2141
      %v2351 = vpop.f32.mrb[0].mxu0
      %v2352 = vadd.f32 %v1838, %v2351
      %v2353 = vpop.f32.mrb[0].mxu0
      %v2354 = vpop.f32.mrb[0].mxu0
      %v2355 = vadd.f32 %v1841, %v2354
      %v2356 = vpop.f32.mrb[0].mxu0
      %2357 = vmatprep.mubr.bf16.mxu0 0
      %2358 = vmatmul.mubr.bf16.gmra.mrb[0].mxu0 %v2144
      %v2359 = vpop.f32.mrb[0].mxu0
      %v2360 = vadd.f32 %v1846, %v2359
      %v2361 = vpop.f32.mrb[0].mxu0
      %v2362 = vpop.f32.mrb[0].mxu0
      %v2363 = vadd.f32 %v1849, %v2362
      %v2364 = vpop.f32.mrb[0].mxu0
      %2365 = vmatprep.mubr.bf16.mxu0 0
      %2366 = vmatmul.mubr.bf16.gmra.mrb[0].mxu0 %v2147
      %v2367 = vpop.f32.mrb[0].mxu0
      %v2368 = vadd.f32 %v1854, %v2367
      %v2369 = vpop.f32.mrb[0].mxu0
      %v2370 = vpop.f32.mrb[0].mxu0
      %v2371 = vadd.f32 %v1857, %v2370
      %v2372 = vpop.f32.mrb[0].mxu0
      %2373 = vdwg.mxu0
      %v2374 = vld [vmem:[%s165 + $0x18] sm:$0x8]
      %v2375 = vld [vmem:[%s165 + $0x1c] sm:$0xf]
      %v2376 = vld [vmem:[%s165 + $0x20] sm:$0xf]
      %v2377 = vld [vmem:[%s165 + $0x24] sm:$0xf]
      %v2378 = vld [vmem:[%s165 + $0x28] sm:$0xf]
      %v2379 = vld [vmem:[%s165 + $0x2c] sm:$0xf]
      %v2380 = vld [vmem:[%s165 + $0x30] sm:$0xf]
      %v2381 = vld [vmem:[%s165 + $0x34] sm:$0xf]
      %v2382 = vld [vmem:[%s165 + $0x38] sm:$0xf]
      %v2383 = vld [vmem:[%s165 + $0x3c] sm:$0xf]
      %v2384 = vld [vmem:[%s165 + $0x40] sm:$0xf]
      %v2385 = vld [vmem:[%s165 + $0x44] sm:$0xf]
      %v2386 = vld [vmem:[%s165 + $0x48] sm:$0xf]
      %v2387 = vld [vmem:[%s165 + $0x4c] sm:$0xf]
      %v2388 = vld [vmem:[%s165 + $0x50] sm:$0xf]
      %v2389 = vld [vmem:[%s165 + $0x54] sm:$0xf]
      %v2390 = vld [vmem:[%s165 + $0x58] sm:$0xf]
      %v2391 = vld [vmem:[%s165 + $0x5c] sm:$0xf]
      %v2392 = vld [vmem:[%s165 + $0x60] sm:$0xf]
      %v2393 = vld [vmem:[%s165 + $0x64] sm:$0xf]
      %v2394 = vld [vmem:[%s165 + $0x68] sm:$0xf]
      %v2395 = vld [vmem:[%s165 + $0x6c] sm:$0xf]
      %v2396 = vld [vmem:[%s165 + $0x70] sm:$0xf]
      %v2397 = vld [vmem:[%s165 + $0x74] sm:$0xf]
      %v2398 = vld [vmem:[%s165 + $0x78] sm:$0xf]
      %v2399 = vld [vmem:[%s165 + $0x7c] sm:$0xf]
      %v2400 = vld [vmem:[%s165 + $0x80] sm:$0xf]
      %v2401 = vld [vmem:[%s165 + $0x84] sm:$0xf]
      %v2402 = vld [vmem:[%s165 + $0x88] sm:$0xf]
      %v2403 = vld [vmem:[%s165 + $0x8c] sm:$0xf]
      %v2404 = vld [vmem:[%s165 + $0x90] sm:$0xf]
      %v2405 = vld [vmem:[%s165 + $0x94] sm:$0xf]
      %v2406 = vld [vmem:[%s165 + $0x98] sm:$0xf]
      %v2407 = vld [vmem:[%s165 + $0x9c] sm:$0xf]
      %v2408 = vld [vmem:[%s165 + $0xa0] sm:$0xf]
      %v2409 = vld [vmem:[%s165 + $0xa4] sm:$0xf]
      %v2410 = vld [vmem:[%s165 + $0xa8] sm:$0xf]
      %v2411 = vld [vmem:[%s165 + $0xac] sm:$0xf]
      %v2412 = vld [vmem:[%s165 + $0xb0] sm:$0xf]
      %v2413 = vld [vmem:[%s165 + $0xb4] sm:$0xf]
      %v2414 = vld [vmem:[%s165 + $0xb8] sm:$0xf]
      %v2415 = vld [vmem:[%s165 + $0xbc] sm:$0xf]
      %v2416 = vld [vmem:[%s165 + $0xc0] sm:$0xf]
      %v2417 = vld [vmem:[%s165 + $0xc4] sm:$0xf]
      %v2418 = vld [vmem:[%s165 + $0xc8] sm:$0xf]
      %v2419 = vld [vmem:[%s165 + $0xcc] sm:$0xf]
      %v2420 = vld [vmem:[%s165 + $0xd0] sm:$0xf]
      %v2421 = vld [vmem:[%s165 + $0xd4] sm:$0xf]
      %v2422 = vld [vmem:[%s165 + $0xd8] sm:$0xf]
      %v2423 = vld [vmem:[%s165 + $0xdc] sm:$0x1]
      %v2473 = vunpack.c.l.b16 %v2374
      %v2474 = vunpack.c.l.b16 %v2375
      %v2475 = vunpack.c.l.b16 %v2376
      %v2476 = vunpack.c.l.b16 %v2377
      %v2477 = vunpack.c.l.b16 %v2378
      %v2478 = vunpack.c.l.b16 %v2379
      %v2479 = vunpack.c.l.b16 %v2380
      %v2480 = vunpack.c.l.b16 %v2381
      %v2481 = vunpack.c.l.b16 %v2382
      %v2482 = vunpack.c.l.b16 %v2383
      %v2483 = vunpack.c.l.b16 %v2384
      %v2484 = vunpack.c.l.b16 %v2385
      %v2485 = vunpack.c.l.b16 %v2386
      %v2486 = vunpack.c.l.b16 %v2387
      %v2487 = vunpack.c.l.b16 %v2388
      %v2488 = vunpack.c.l.b16 %v2389
      %v2489 = vunpack.c.l.b16 %v2390
      %v2490 = vunpack.c.l.b16 %v2391
      %v2491 = vunpack.c.l.b16 %v2392
      %v2492 = vunpack.c.l.b16 %v2393
      %v2493 = vunpack.c.l.b16 %v2394
      %v2494 = vunpack.c.l.b16 %v2395
      %v2495 = vunpack.c.l.b16 %v2396
      %v2496 = vunpack.c.l.b16 %v2397
      %v2497 = vunpack.c.l.b16 %v2398
      %v2498 = vunpack.c.l.b16 %v2399
      %v2499 = vunpack.c.l.b16 %v2400
      %v2500 = vunpack.c.l.b16 %v2401
      %v2501 = vunpack.c.l.b16 %v2402
      %v2502 = vunpack.c.l.b16 %v2403
      %v2503 = vunpack.c.l.b16 %v2404
      %v2504 = vunpack.c.l.b16 %v2405
      %v2505 = vunpack.c.l.b16 %v2406
      %v2506 = vunpack.c.l.b16 %v2407
      %v2507 = vunpack.c.l.b16 %v2408
      %v2508 = vunpack.c.l.b16 %v2409
      %v2509 = vunpack.c.l.b16 %v2410
      %v2510 = vunpack.c.l.b16 %v2411
      %v2511 = vunpack.c.l.b16 %v2412
      %v2512 = vunpack.c.l.b16 %v2413
      %v2513 = vunpack.c.l.b16 %v2414
      %v2514 = vunpack.c.l.b16 %v2415
      %v2515 = vunpack.c.l.b16 %v2416
      %v2516 = vunpack.c.l.b16 %v2417
      %v2517 = vunpack.c.l.b16 %v2418
      %v2518 = vunpack.c.l.b16 %v2419
      %v2519 = vunpack.c.l.b16 %v2420
      %v2520 = vunpack.c.l.b16 %v2421
      %v2521 = vunpack.c.l.b16 %v2422
      %v2522 = vpack.c.b16 %v2474, %v2473
      %v2523 = vpack.c.b16 %v2476, %v2475
      %v2524 = vpack.c.b16 %v2478, %v2477
      %v2525 = vpack.c.b16 %v2480, %v2479
      %v2526 = vpack.c.b16 %v2482, %v2481
      %v2527 = vpack.c.b16 %v2484, %v2483
      %v2528 = vpack.c.b16 %v2486, %v2485
      %v2529 = vpack.c.b16 %v2488, %v2487
      %v2530 = vpack.c.b16 %v2490, %v2489
      %v2531 = vpack.c.b16 %v2492, %v2491
      %v2532 = vpack.c.b16 %v2494, %v2493
      %v2533 = vpack.c.b16 %v2496, %v2495
      %v2534 = vpack.c.b16 %v2498, %v2497
      %v2535 = vpack.c.b16 %v2500, %v2499
      %v2536 = vpack.c.b16 %v2502, %v2501
      %v2537 = vpack.c.b16 %v2504, %v2503
      %v2538 = vpack.c.b16 %v2506, %v2505
      %v2539 = vpack.c.b16 %v2508, %v2507
      %v2540 = vpack.c.b16 %v2510, %v2509
      %v2541 = vpack.c.b16 %v2512, %v2511
      %v2542 = vpack.c.b16 %v2514, %v2513
      %v2543 = vpack.c.b16 %v2516, %v2515
      %v2544 = vpack.c.b16 %v2518, %v2517
      %v2545 = vpack.c.b16 %v2520, %v2519
      %v2546 = vpack.c.b16 %v2521, %v2521
      %v2547 = vpack.c.b16 %v2475, %v2474
      %v2548 = vpack.c.b16 %v2477, %v2476
      %v2549 = vpack.c.b16 %v2479, %v2478
      %v2550 = vpack.c.b16 %v2481, %v2480
      %v2551 = vpack.c.b16 %v2483, %v2482
      %v2552 = vpack.c.b16 %v2485, %v2484
      %v2553 = vpack.c.b16 %v2487, %v2486
      %v2554 = vpack.c.b16 %v2489, %v2488
      %v2555 = vpack.c.b16 %v2491, %v2490
      %v2556 = vpack.c.b16 %v2493, %v2492
      %v2557 = vpack.c.b16 %v2495, %v2494
      %v2558 = vpack.c.b16 %v2497, %v2496
      %v2559 = vpack.c.b16 %v2499, %v2498
      %v2560 = vpack.c.b16 %v2501, %v2500
      %v2561 = vpack.c.b16 %v2503, %v2502
      %v2562 = vpack.c.b16 %v2505, %v2504
      %v2563 = vpack.c.b16 %v2507, %v2506
      %v2564 = vpack.c.b16 %v2509, %v2508
      %v2565 = vpack.c.b16 %v2511, %v2510
      %v2566 = vpack.c.b16 %v2513, %v2512
      %v2567 = vpack.c.b16 %v2515, %v2514
      %v2568 = vpack.c.b16 %v2517, %v2516
      %v2569 = vpack.c.b16 %v2519, %v2518
      %v2570 = vpack.c.b16 %v2521, %v2520
      %v2572 = vshrl.u32 %v2547, 16
      %v2574 = vrot.slane %v2572, 4
      %v2575 = vshll.u32 %v2547, 16
      %v2577 = vrot.slane %v2575, 5
      %v2578 = vor.u32 %v2574, %v2577
      %v2580 = vshrl.u32 %v2548, 16
      %v2582 = vrot.slane %v2580, 4
      %v2583 = vshll.u32 %v2548, 16
      %v2585 = vrot.slane %v2583, 5
      %v2586 = vor.u32 %v2582, %v2585
      %v2587 = vsel %vm369, %v2578, %v2586
      %v2589 = vshrl.u32 %v2549, 16
      %v2591 = vrot.slane %v2589, 4
      %v2592 = vshll.u32 %v2549, 16
      %v2594 = vrot.slane %v2592, 5
      %v2595 = vor.u32 %v2591, %v2594
      %v2596 = vsel %vm369, %v2586, %v2595
      %v2598 = vshrl.u32 %v2550, 16
      %v2600 = vrot.slane %v2598, 4
      %v2601 = vshll.u32 %v2550, 16
      %v2603 = vrot.slane %v2601, 5
      %v2604 = vor.u32 %v2600, %v2603
      %v2605 = vsel %vm369, %v2595, %v2604
      %v2607 = vshrl.u32 %v2551, 16
      %v2609 = vrot.slane %v2607, 4
      %v2610 = vshll.u32 %v2551, 16
      %v2612 = vrot.slane %v2610, 5
      %v2613 = vor.u32 %v2609, %v2612
      %v2614 = vsel %vm369, %v2604, %v2613
      %v2616 = vshrl.u32 %v2552, 16
      %v2618 = vrot.slane %v2616, 4
      %v2619 = vshll.u32 %v2552, 16
      %v2621 = vrot.slane %v2619, 5
      %v2622 = vor.u32 %v2618, %v2621
      %v2623 = vsel %vm369, %v2613, %v2622
      %v2625 = vshrl.u32 %v2553, 16
      %v2627 = vrot.slane %v2625, 4
      %v2628 = vshll.u32 %v2553, 16
      %v2630 = vrot.slane %v2628, 5
      %v2631 = vor.u32 %v2627, %v2630
      %v2632 = vsel %vm369, %v2622, %v2631
      %v2634 = vshrl.u32 %v2554, 16
      %v2636 = vrot.slane %v2634, 4
      %v2637 = vshll.u32 %v2554, 16
      %v2639 = vrot.slane %v2637, 5
      %v2640 = vor.u32 %v2636, %v2639
      %v2641 = vsel %vm369, %v2631, %v2640
      %v2643 = vshrl.u32 %v2555, 16
      %v2645 = vrot.slane %v2643, 4
      %v2646 = vshll.u32 %v2555, 16
      %v2648 = vrot.slane %v2646, 5
      %v2649 = vor.u32 %v2645, %v2648
      %v2650 = vsel %vm369, %v2640, %v2649
      %v2652 = vshrl.u32 %v2556, 16
      %v2654 = vrot.slane %v2652, 4
      %v2655 = vshll.u32 %v2556, 16
      %v2657 = vrot.slane %v2655, 5
      %v2658 = vor.u32 %v2654, %v2657
      %v2659 = vsel %vm369, %v2649, %v2658
      %v2661 = vshrl.u32 %v2557, 16
      %v2663 = vrot.slane %v2661, 4
      %v2664 = vshll.u32 %v2557, 16
      %v2666 = vrot.slane %v2664, 5
      %v2667 = vor.u32 %v2663, %v2666
      %v2668 = vsel %vm369, %v2658, %v2667
      %v2670 = vshrl.u32 %v2558, 16
      %v2672 = vrot.slane %v2670, 4
      %v2673 = vshll.u32 %v2558, 16
      %v2675 = vrot.slane %v2673, 5
      %v2676 = vor.u32 %v2672, %v2675
      %v2677 = vsel %vm369, %v2667, %v2676
      %v2679 = vshrl.u32 %v2559, 16
      %v2681 = vrot.slane %v2679, 4
      %v2682 = vshll.u32 %v2559, 16
      %v2684 = vrot.slane %v2682, 5
      %v2685 = vor.u32 %v2681, %v2684
      %v2686 = vsel %vm369, %v2676, %v2685
      %v2688 = vshrl.u32 %v2560, 16
      %v2690 = vrot.slane %v2688, 4
      %v2691 = vshll.u32 %v2560, 16
      %v2693 = vrot.slane %v2691, 5
      %v2694 = vor.u32 %v2690, %v2693
      %v2695 = vsel %vm369, %v2685, %v2694
      %v2697 = vshrl.u32 %v2561, 16
      %v2699 = vrot.slane %v2697, 4
      %v2700 = vshll.u32 %v2561, 16
      %v2702 = vrot.slane %v2700, 5
      %v2703 = vor.u32 %v2699, %v2702
      %v2704 = vsel %vm369, %v2694, %v2703
      %v2706 = vshrl.u32 %v2562, 16
      %v2708 = vrot.slane %v2706, 4
      %v2709 = vshll.u32 %v2562, 16
      %v2711 = vrot.slane %v2709, 5
      %v2712 = vor.u32 %v2708, %v2711
      %v2713 = vsel %vm369, %v2703, %v2712
      %v2715 = vshrl.u32 %v2563, 16
      %v2717 = vrot.slane %v2715, 4
      %v2718 = vshll.u32 %v2563, 16
      %v2720 = vrot.slane %v2718, 5
      %v2721 = vor.u32 %v2717, %v2720
      %v2722 = vsel %vm369, %v2712, %v2721
      %v2724 = vshrl.u32 %v2564, 16
      %v2726 = vrot.slane %v2724, 4
      %v2727 = vshll.u32 %v2564, 16
      %v2729 = vrot.slane %v2727, 5
      %v2730 = vor.u32 %v2726, %v2729
      %v2731 = vsel %vm369, %v2721, %v2730
      %v2733 = vshrl.u32 %v2565, 16
      %v2735 = vrot.slane %v2733, 4
      %v2736 = vshll.u32 %v2565, 16
      %v2738 = vrot.slane %v2736, 5
      %v2739 = vor.u32 %v2735, %v2738
      %v2740 = vsel %vm369, %v2730, %v2739
      %v2742 = vshrl.u32 %v2566, 16
      %v2744 = vrot.slane %v2742, 4
      %v2745 = vshll.u32 %v2566, 16
      %v2747 = vrot.slane %v2745, 5
      %v2748 = vor.u32 %v2744, %v2747
      %v2749 = vsel %vm369, %v2739, %v2748
      %v2751 = vshrl.u32 %v2567, 16
      %v2753 = vrot.slane %v2751, 4
      %v2754 = vshll.u32 %v2567, 16
      %v2756 = vrot.slane %v2754, 5
      %v2757 = vor.u32 %v2753, %v2756
      %v2758 = vsel %vm369, %v2748, %v2757
      %v2760 = vshrl.u32 %v2568, 16
      %v2762 = vrot.slane %v2760, 4
      %v2763 = vshll.u32 %v2568, 16
      %v2765 = vrot.slane %v2763, 5
      %v2766 = vor.u32 %v2762, %v2765
      %v2767 = vsel %vm369, %v2757, %v2766
      %v2769 = vshrl.u32 %v2569, 16
      %v2771 = vrot.slane %v2769, 4
      %v2772 = vshll.u32 %v2569, 16
      %v2774 = vrot.slane %v2772, 5
      %v2775 = vor.u32 %v2771, %v2774
      %v2776 = vsel %vm369, %v2766, %v2775
      %v2778 = vshrl.u32 %v2570, 16
      %v2780 = vrot.slane %v2778, 4
      %v2781 = vshll.u32 %v2570, 16
      %v2783 = vrot.slane %v2781, 5
      %v2784 = vor.u32 %v2780, %v2783
      %v2785 = vsel %vm369, %v2775, %v2784
      %2786 = vrot.lane.b32.xlu0 %v2578, 16
      %v2787 = vpop.permute.xlu0 %2786
      %2788 = vrot.lane.b32.xlu0 %v2587, 16
      %v2789 = vpop.permute.xlu0 %2788
      %2790 = vrot.lane.b32.xlu0 %v2596, 16
      %v2791 = vpop.permute.xlu0 %2790
      %2792 = vrot.lane.b32.xlu0 %v2605, 16
      %v2793 = vpop.permute.xlu0 %2792
      %2794 = vrot.lane.b32.xlu0 %v2614, 16
      %v2795 = vpop.permute.xlu0 %2794
      %2796 = vrot.lane.b32.xlu0 %v2623, 16
      %v2797 = vpop.permute.xlu0 %2796
      %2798 = vrot.lane.b32.xlu0 %v2632, 16
      %v2799 = vpop.permute.xlu0 %2798
      %2800 = vrot.lane.b32.xlu0 %v2641, 16
      %v2801 = vpop.permute.xlu0 %2800
      %2802 = vrot.lane.b32.xlu0 %v2650, 16
      %v2803 = vpop.permute.xlu0 %2802
      %2804 = vrot.lane.b32.xlu0 %v2659, 16
      %v2805 = vpop.permute.xlu0 %2804
      %2806 = vrot.lane.b32.xlu0 %v2668, 16
      %v2807 = vpop.permute.xlu0 %2806
      %2808 = vrot.lane.b32.xlu0 %v2677, 16
      %v2809 = vpop.permute.xlu0 %2808
      %2810 = vrot.lane.b32.xlu0 %v2686, 16
      %v2811 = vpop.permute.xlu0 %2810
      %2812 = vrot.lane.b32.xlu0 %v2695, 16
      %v2813 = vpop.permute.xlu0 %2812
      %2814 = vrot.lane.b32.xlu0 %v2704, 16
      %v2815 = vpop.permute.xlu0 %2814
      %2816 = vrot.lane.b32.xlu0 %v2713, 16
      %v2817 = vpop.permute.xlu0 %2816
      %2818 = vrot.lane.b32.xlu0 %v2722, 16
      %v2819 = vpop.permute.xlu0 %2818
      %2820 = vrot.lane.b32.xlu0 %v2731, 16
      %v2821 = vpop.permute.xlu0 %2820
      %2822 = vrot.lane.b32.xlu0 %v2740, 16
      %v2823 = vpop.permute.xlu0 %2822
      %2824 = vrot.lane.b32.xlu0 %v2749, 16
      %v2825 = vpop.permute.xlu0 %2824
      %2826 = vrot.lane.b32.xlu0 %v2758, 16
      %v2827 = vpop.permute.xlu0 %2826
      %2828 = vrot.lane.b32.xlu0 %v2767, 16
      %v2829 = vpop.permute.xlu0 %2828
      %2830 = vrot.lane.b32.xlu0 %v2776, 16
      %v2831 = vpop.permute.xlu0 %2830
      %2832 = vrot.lane.b32.xlu0 %v2785, 16
      %v2833 = vpop.permute.xlu0 %2832
      %2834 = vrot.lane.b32.xlu0 %v2784, 16
      %v2835 = vpop.permute.xlu0 %2834
      %v2837 = vunpack.c.l.b16 %v2423
      %v2838 = vpack.c.b16 %v2837, %v2837
      %v2839 = vrot.slane %v2547, 5
      %v2840 = vrot.slane %v2548, 5
      %v2841 = vsel %vm638, %v2839, %v2840
      %v2842 = vrot.slane %v2549, 5
      %v2843 = vsel %vm638, %v2840, %v2842
      %v2844 = vrot.slane %v2550, 5
      %v2845 = vsel %vm638, %v2842, %v2844
      %v2846 = vrot.slane %v2551, 5
      %v2847 = vsel %vm638, %v2844, %v2846
      %v2848 = vrot.slane %v2552, 5
      %v2849 = vsel %vm638, %v2846, %v2848
      %v2850 = vrot.slane %v2553, 5
      %v2851 = vsel %vm638, %v2848, %v2850
      %v2852 = vrot.slane %v2554, 5
      %v2853 = vsel %vm638, %v2850, %v2852
      %v2854 = vrot.slane %v2555, 5
      %v2855 = vsel %vm638, %v2852, %v2854
      %v2856 = vrot.slane %v2556, 5
      %v2857 = vsel %vm638, %v2854, %v2856
      %v2858 = vrot.slane %v2557, 5
      %v2859 = vsel %vm638, %v2856, %v2858
      %v2860 = vrot.slane %v2558, 5
      %v2861 = vsel %vm638, %v2858, %v2860
      %v2862 = vrot.slane %v2559, 5
      %v2863 = vsel %vm638, %v2860, %v2862
      %v2864 = vrot.slane %v2560, 5
      %v2865 = vsel %vm638, %v2862, %v2864
      %v2866 = vrot.slane %v2561, 5
      %v2867 = vsel %vm638, %v2864, %v2866
      %v2868 = vrot.slane %v2562, 5
      %v2869 = vsel %vm638, %v2866, %v2868
      %v2870 = vrot.slane %v2563, 5
      %v2871 = vsel %vm638, %v2868, %v2870
      %v2872 = vrot.slane %v2564, 5
      %v2873 = vsel %vm638, %v2870, %v2872
      %v2874 = vrot.slane %v2565, 5
      %v2875 = vsel %vm638, %v2872, %v2874
      %v2876 = vrot.slane %v2566, 5
      %v2877 = vsel %vm638, %v2874, %v2876
      %v2878 = vrot.slane %v2567, 5
      %v2879 = vsel %vm638, %v2876, %v2878
      %v2880 = vrot.slane %v2568, 5
      %v2881 = vsel %vm638, %v2878, %v2880
      %v2882 = vrot.slane %v2569, 5
      %v2883 = vsel %vm638, %v2880, %v2882
      %v2884 = vrot.slane %v2570, 5
      %v2885 = vsel %vm638, %v2882, %v2884
      %v2886 = vrot.slane %v2838, 5
      %v2887 = vsel %vm638, %v2884, %v2886
      %2888 = vrot.lane.b32.xlu0 %v2839, 32
      %v2889 = vpop.permute.xlu0 %2888
      %2890 = vrot.lane.b32.xlu0 %v2841, 32
      %v2891 = vpop.permute.xlu0 %2890
      %2892 = vrot.lane.b32.xlu0 %v2843, 32
      %v2893 = vpop.permute.xlu0 %2892
      %2894 = vrot.lane.b32.xlu0 %v2845, 32
      %v2895 = vpop.permute.xlu0 %2894
      %2896 = vrot.lane.b32.xlu0 %v2847, 32
      %v2897 = vpop.permute.xlu0 %2896
      %2898 = vrot.lane.b32.xlu0 %v2849, 32
      %v2899 = vpop.permute.xlu0 %2898
      %2900 = vrot.lane.b32.xlu0 %v2851, 32
      %v2901 = vpop.permute.xlu0 %2900
      %2902 = vrot.lane.b32.xlu0 %v2853, 32
      %v2903 = vpop.permute.xlu0 %2902
      %2904 = vrot.lane.b32.xlu0 %v2855, 32
      %v2905 = vpop.permute.xlu0 %2904
      %2906 = vrot.lane.b32.xlu0 %v2857, 32
      %v2907 = vpop.permute.xlu0 %2906
      %2908 = vrot.lane.b32.xlu0 %v2859, 32
      %v2909 = vpop.permute.xlu0 %2908
      %2910 = vrot.lane.b32.xlu0 %v2861, 32
      %v2911 = vpop.permute.xlu0 %2910
      %2912 = vrot.lane.b32.xlu0 %v2863, 32
      %v2913 = vpop.permute.xlu0 %2912
      %2914 = vrot.lane.b32.xlu0 %v2865, 32
      %v2915 = vpop.permute.xlu0 %2914
      %2916 = vrot.lane.b32.xlu0 %v2867, 32
      %v2917 = vpop.permute.xlu0 %2916
      %2918 = vrot.lane.b32.xlu0 %v2869, 32
      %v2919 = vpop.permute.xlu0 %2918
      %2920 = vrot.lane.b32.xlu0 %v2871, 32
      %v2921 = vpop.permute.xlu0 %2920
      %2922 = vrot.lane.b32.xlu0 %v2873, 32
      %v2923 = vpop.permute.xlu0 %2922
      %2924 = vrot.lane.b32.xlu0 %v2875, 32
      %v2925 = vpop.permute.xlu0 %2924
      %2926 = vrot.lane.b32.xlu0 %v2877, 32
      %v2927 = vpop.permute.xlu0 %2926
      %2928 = vrot.lane.b32.xlu0 %v2879, 32
      %v2929 = vpop.permute.xlu0 %2928
      %2930 = vrot.lane.b32.xlu0 %v2881, 32
      %v2931 = vpop.permute.xlu0 %2930
      %2932 = vrot.lane.b32.xlu0 %v2883, 32
      %v2933 = vpop.permute.xlu0 %2932
      %2934 = vrot.lane.b32.xlu0 %v2885, 32
      %v2935 = vpop.permute.xlu0 %2934
      %2936 = vrot.lane.b32.xlu0 %v2887, 32
      %v2937 = vpop.permute.xlu0 %2936
      %v2940 = vsel %vm738, %v2522, %v2787
      %v2943 = vsel %vm738, %v2523, %v2789
      %v2946 = vsel %vm738, %v2524, %v2791
      %v2949 = vsel %vm738, %v2525, %v2793
      %v2952 = vsel %vm738, %v2526, %v2795
      %v2955 = vsel %vm738, %v2527, %v2797
      %v2958 = vsel %vm738, %v2528, %v2799
      %v2961 = vsel %vm738, %v2529, %v2801
      %v2964 = vsel %vm738, %v2530, %v2803
      %v2967 = vsel %vm738, %v2531, %v2805
      %v2970 = vsel %vm738, %v2532, %v2807
      %v2973 = vsel %vm738, %v2533, %v2809
      %v2976 = vsel %vm738, %v2534, %v2811
      %v2979 = vsel %vm738, %v2535, %v2813
      %v2982 = vsel %vm738, %v2536, %v2815
      %v2985 = vsel %vm738, %v2537, %v2817
      %v2988 = vsel %vm738, %v2538, %v2819
      %v2991 = vsel %vm738, %v2539, %v2821
      %v2994 = vsel %vm738, %v2540, %v2823
      %v2997 = vsel %vm738, %v2541, %v2825
      %v3000 = vsel %vm738, %v2542, %v2827
      %v3003 = vsel %vm738, %v2543, %v2829
      %v3006 = vsel %vm738, %v2544, %v2831
      %v3009 = vsel %vm738, %v2545, %v2833
      %v3012 = vsel %vm738, %v2546, %v2835
      %v3014 = vsel %vm814, %v2940, %v2889
      %v3016 = vsel %vm814, %v2943, %v2891
      %v3018 = vsel %vm814, %v2946, %v2893
      %v3020 = vsel %vm814, %v2949, %v2895
      %v3022 = vsel %vm814, %v2952, %v2897
      %v3024 = vsel %vm814, %v2955, %v2899
      %v3026 = vsel %vm814, %v2958, %v2901
      %v3028 = vsel %vm814, %v2961, %v2903
      %v3030 = vsel %vm814, %v2964, %v2905
      %v3032 = vsel %vm814, %v2967, %v2907
      %v3034 = vsel %vm814, %v2970, %v2909
      %v3036 = vsel %vm814, %v2973, %v2911
      %v3038 = vsel %vm814, %v2976, %v2913
      %v3040 = vsel %vm814, %v2979, %v2915
      %v3042 = vsel %vm814, %v2982, %v2917
      %v3044 = vsel %vm814, %v2985, %v2919
      %v3046 = vsel %vm814, %v2988, %v2921
      %v3048 = vsel %vm814, %v2991, %v2923
      %v3050 = vsel %vm814, %v2994, %v2925
      %v3052 = vsel %vm814, %v2997, %v2927
      %v3054 = vsel %vm814, %v3000, %v2929
      %v3056 = vsel %vm814, %v3003, %v2931
      %v3058 = vsel %vm814, %v3006, %v2933
      %v3060 = vsel %vm814, %v3009, %v2935
      %v3062 = vsel %vm814, %v3012, %v2937
      %s3063 = scalar_lea.vmem %s1, 48
      %v3064 = vld [vmem:[%s3063] sm:$0xf]
      %v3065 = vld [vmem:[%s3063 + $0x4] sm:$0xf]
      %v3066 = vld [vmem:[%s3063 + $0x8] sm:$0xf]
      %v3067 = vld [vmem:[%s3063 + $0xc] sm:$0xf]
      %v3068 = vld [vmem:[%s3063 + $0x10] sm:$0xf]
      %v3069 = vld [vmem:[%s3063 + $0x14] sm:$0xf]
      %v3070 = vshrl.u32 %v3014, 16
      %v3072 = vrot.slane %v3070, 3
      %v3073 = vshll.u32 %v3014, 16
      %v3075 = vrot.slane %v3073, 4
      %v3076 = vor.u32 %v3072, %v3075
      %v3077 = vshrl.u32 %v3016, 16
      %v3079 = vrot.slane %v3077, 3
      %v3080 = vshll.u32 %v3016, 16
      %v3082 = vrot.slane %v3080, 4
      %v3083 = vor.u32 %v3079, %v3082
      %v3084 = vsel %vm1344, %v3076, %v3083
      %v3085 = vshrl.u32 %v3018, 16
      %v3087 = vrot.slane %v3085, 3
      %v3088 = vshll.u32 %v3018, 16
      %v3090 = vrot.slane %v3088, 4
      %v3091 = vor.u32 %v3087, %v3090
      %v3092 = vsel %vm1344, %v3083, %v3091
      %v3093 = vshrl.u32 %v3020, 16
      %v3095 = vrot.slane %v3093, 3
      %v3096 = vshll.u32 %v3020, 16
      %v3098 = vrot.slane %v3096, 4
      %v3099 = vor.u32 %v3095, %v3098
      %v3100 = vsel %vm1344, %v3091, %v3099
      %v3101 = vshrl.u32 %v3022, 16
      %v3103 = vrot.slane %v3101, 3
      %v3104 = vshll.u32 %v3022, 16
      %v3106 = vrot.slane %v3104, 4
      %v3107 = vor.u32 %v3103, %v3106
      %v3108 = vsel %vm1344, %v3099, %v3107
      %v3109 = vshrl.u32 %v3024, 16
      %v3111 = vrot.slane %v3109, 3
      %v3112 = vshll.u32 %v3024, 16
      %v3114 = vrot.slane %v3112, 4
      %v3115 = vor.u32 %v3111, %v3114
      %v3116 = vsel %vm1344, %v3107, %v3115
      %v3117 = vshrl.u32 %v3026, 16
      %v3119 = vrot.slane %v3117, 3
      %v3120 = vshll.u32 %v3026, 16
      %v3122 = vrot.slane %v3120, 4
      %v3123 = vor.u32 %v3119, %v3122
      %v3124 = vsel %vm1344, %v3115, %v3123
      %v3125 = vshrl.u32 %v3028, 16
      %v3127 = vrot.slane %v3125, 3
      %v3128 = vshll.u32 %v3028, 16
      %v3130 = vrot.slane %v3128, 4
      %v3131 = vor.u32 %v3127, %v3130
      %v3132 = vsel %vm1344, %v3123, %v3131
      %v3133 = vshrl.u32 %v3030, 16
      %v3135 = vrot.slane %v3133, 3
      %v3136 = vshll.u32 %v3030, 16
      %v3138 = vrot.slane %v3136, 4
      %v3139 = vor.u32 %v3135, %v3138
      %v3140 = vsel %vm1344, %v3131, %v3139
      %v3141 = vshrl.u32 %v3032, 16
      %v3143 = vrot.slane %v3141, 3
      %v3144 = vshll.u32 %v3032, 16
      %v3146 = vrot.slane %v3144, 4
      %v3147 = vor.u32 %v3143, %v3146
      %v3148 = vsel %vm1344, %v3139, %v3147
      %v3149 = vshrl.u32 %v3034, 16
      %v3151 = vrot.slane %v3149, 3
      %v3152 = vshll.u32 %v3034, 16
      %v3154 = vrot.slane %v3152, 4
      %v3155 = vor.u32 %v3151, %v3154
      %v3156 = vsel %vm1344, %v3147, %v3155
      %v3157 = vshrl.u32 %v3036, 16
      %v3159 = vrot.slane %v3157, 3
      %v3160 = vshll.u32 %v3036, 16
      %v3162 = vrot.slane %v3160, 4
      %v3163 = vor.u32 %v3159, %v3162
      %v3164 = vsel %vm1344, %v3155, %v3163
      %v3165 = vshrl.u32 %v3038, 16
      %v3167 = vrot.slane %v3165, 3
      %v3168 = vshll.u32 %v3038, 16
      %v3170 = vrot.slane %v3168, 4
      %v3171 = vor.u32 %v3167, %v3170
      %v3172 = vsel %vm1344, %v3163, %v3171
      %v3173 = vshrl.u32 %v3040, 16
      %v3175 = vrot.slane %v3173, 3
      %v3176 = vshll.u32 %v3040, 16
      %v3178 = vrot.slane %v3176, 4
      %v3179 = vor.u32 %v3175, %v3178
      %v3180 = vsel %vm1344, %v3171, %v3179
      %v3181 = vshrl.u32 %v3042, 16
      %v3183 = vrot.slane %v3181, 3
      %v3184 = vshll.u32 %v3042, 16
      %v3186 = vrot.slane %v3184, 4
      %v3187 = vor.u32 %v3183, %v3186
      %v3188 = vsel %vm1344, %v3179, %v3187
      %v3189 = vshrl.u32 %v3044, 16
      %v3191 = vrot.slane %v3189, 3
      %v3192 = vshll.u32 %v3044, 16
      %v3194 = vrot.slane %v3192, 4
      %v3195 = vor.u32 %v3191, %v3194
      %v3196 = vsel %vm1344, %v3187, %v3195
      %v3197 = vshrl.u32 %v3046, 16
      %v3199 = vrot.slane %v3197, 3
      %v3200 = vshll.u32 %v3046, 16
      %v3202 = vrot.slane %v3200, 4
      %v3203 = vor.u32 %v3199, %v3202
      %v3204 = vsel %vm1344, %v3195, %v3203
      %v3205 = vshrl.u32 %v3048, 16
      %v3207 = vrot.slane %v3205, 3
      %v3208 = vshll.u32 %v3048, 16
      %v3210 = vrot.slane %v3208, 4
      %v3211 = vor.u32 %v3207, %v3210
      %v3212 = vsel %vm1344, %v3203, %v3211
      %v3213 = vshrl.u32 %v3050, 16
      %v3215 = vrot.slane %v3213, 3
      %v3216 = vshll.u32 %v3050, 16
      %v3218 = vrot.slane %v3216, 4
      %v3219 = vor.u32 %v3215, %v3218
      %v3220 = vsel %vm1344, %v3211, %v3219
      %v3221 = vshrl.u32 %v3052, 16
      %v3223 = vrot.slane %v3221, 3
      %v3224 = vshll.u32 %v3052, 16
      %v3226 = vrot.slane %v3224, 4
      %v3227 = vor.u32 %v3223, %v3226
      %v3228 = vsel %vm1344, %v3219, %v3227
      %v3229 = vshrl.u32 %v3054, 16
      %v3231 = vrot.slane %v3229, 3
      %v3232 = vshll.u32 %v3054, 16
      %v3234 = vrot.slane %v3232, 4
      %v3235 = vor.u32 %v3231, %v3234
      %v3236 = vsel %vm1344, %v3227, %v3235
      %v3237 = vshrl.u32 %v3056, 16
      %v3239 = vrot.slane %v3237, 3
      %v3240 = vshll.u32 %v3056, 16
      %v3242 = vrot.slane %v3240, 4
      %v3243 = vor.u32 %v3239, %v3242
      %v3244 = vsel %vm1344, %v3235, %v3243
      %v3245 = vshrl.u32 %v3058, 16
      %v3247 = vrot.slane %v3245, 3
      %v3248 = vshll.u32 %v3058, 16
      %v3250 = vrot.slane %v3248, 4
      %v3251 = vor.u32 %v3247, %v3250
      %v3252 = vsel %vm1344, %v3243, %v3251
      %v3253 = vshrl.u32 %v3060, 16
      %v3255 = vrot.slane %v3253, 3
      %v3256 = vshll.u32 %v3060, 16
      %v3258 = vrot.slane %v3256, 4
      %v3259 = vor.u32 %v3255, %v3258
      %v3260 = vsel %vm1344, %v3251, %v3259
      %v3261 = vshrl.u32 %v3062, 16
      %v3263 = vrot.slane %v3261, 3
      %v3264 = vshll.u32 %v3062, 16
      %v3266 = vrot.slane %v3264, 4
      %v3267 = vor.u32 %v3263, %v3266
      %v3268 = vsel %vm1344, %v3259, %v3267
      %v3275 = vunpack.c.l.b16 %v3064
      %v3276 = vunpack.c.l.b16 %v3065
      %v3277 = vunpack.c.l.b16 %v3066
      %v3278 = vunpack.c.l.b16 %v3067
      %v3279 = vunpack.c.l.b16 %v3068
      %v3280 = vunpack.c.l.b16 %v3069
      %v3281 = vpack.c.b16 %v3276, %v3275
      %v3282 = vpack.c.b16 %v3278, %v3277
      %v3283 = vpack.c.b16 %v3280, %v3279
      %v3288 = vsel %vm1562, %v3084, 0
      %v3291 = vsel %vm1562, %v3092, 0
      %v3294 = vsel %vm1562, %v3100, 0
      %v3297 = vsel %vm1562, %v3108, 0
      %v3300 = vsel %vm1562, %v3116, 0
      %v3303 = vsel %vm1562, %v3124, 0
      %v3306 = vsel %vm1562, %v3132, 0
      %v3309 = vsel %vm1562, %v3140, 0
      %v3312 = vsel %vm1562, %v3148, 0
      %v3315 = vsel %vm1562, %v3156, 0
      %v3318 = vsel %vm1562, %v3164, 0
      %v3321 = vsel %vm1562, %v3172, 0
      %v3324 = vsel %vm1562, %v3180, 0
      %v3327 = vsel %vm1562, %v3188, 0
      %v3330 = vsel %vm1562, %v3196, 0
      %v3333 = vsel %vm1562, %v3204, 0
      %v3336 = vsel %vm1562, %v3212, 0
      %v3339 = vsel %vm1562, %v3220, 0
      %v3342 = vsel %vm1562, %v3228, 0
      %v3345 = vsel %vm1562, %v3236, 0
      %v3348 = vsel %vm1562, %v3244, 0
      %v3351 = vsel %vm1562, %v3252, 0
      %v3354 = vsel %vm1562, %v3260, 0
      %v3357 = vsel %vm1562, %v3268, 0
      %3359 = vmatprep.subr.bf16.mxu0 0
      %3360 = vmatpush1.bf16.msra.mxu0 %v3281
      %3361 = vmatprep.subr.bf16.mxu0 0
      %3362 = vmatpush1.bf16.msra.mxu0 %v3282
      %3363 = vmatprep.subr.bf16.mxu0 0
      %3364 = vmatpush1.bf16.msra.mxu0 %v3283
      %3365 = vmatprep.subr.bf16.mxu0 0
      %3366 = vmatpush1.bf16.msra.mxu0 0
      %3367 = vmatprep.subr.bf16.mxu0 0
      %3368 = vmatpush1.bf16.msra.mxu0 0
      %3369 = vmatprep.subr.bf16.mxu0 0
      %3370 = vmatpush1.bf16.msra.mxu0 0
      %3371 = vmatprep.subr.bf16.mxu0 0
      %3372 = vmatpush1.bf16.msra.mxu0 0
      %3373 = vmatprep.subr.bf16.mxu0 0
      %3374 = vmatpush1.bf16.msra.mxu0 0
      %3375 = vmatprep.subr.bf16.mxu0 0
      %3376 = vmatpush1.bf16.msra.mxu0 0
      %3377 = vmatprep.subr.bf16.mxu0 0
      %3378 = vmatpush1.bf16.msra.mxu0 0
      %3379 = vmatprep.subr.bf16.mxu0 0
      %3380 = vmatpush1.bf16.msra.mxu0 0
      %3381 = vmatprep.subr.bf16.mxu0 0
      %3382 = vmatpush1.bf16.msra.mxu0 0
      %3383 = vmatprep.subr.bf16.mxu0 0
      %3384 = vmatpush1.bf16.msra.mxu0 0
      %3385 = vmatprep.subr.bf16.mxu0 0
      %3386 = vmatpush1.bf16.msra.mxu0 0
      %3387 = vmatprep.subr.bf16.mxu0 0
      %3388 = vmatpush1.bf16.msra.mxu0 0
      %3389 = vmatprep.subr.bf16.mxu0 0
      %3390 = vmatpush1.bf16.msra.mxu0 0
      %3391 = vmatprep.mubr.bf16.mxu0 0
      %3392 = vmatmul.mubr.bf16.gmra.mrb[0].mxu0 %v3288
      %v3393 = vpop.f32.mrb[0].mxu0
      %v3394 = vadd.f32 0.0, %v3393
      %v3395 = vpop.f32.mrb[0].mxu0
      %v3396 = vpop.f32.mrb[0].mxu0
      %v3397 = vadd.f32 0.0, %v3396
      %v3398 = vpop.f32.mrb[0].mxu0
      %3399 = vmatprep.mubr.bf16.mxu0 0
      %3400 = vmatmul.mubr.bf16.gmra.mrb[0].mxu0 %v3291
      %v3401 = vpop.f32.mrb[0].mxu0
      %v3402 = vadd.f32 0.0, %v3401
      %v3403 = vpop.f32.mrb[0].mxu0
      %v3404 = vpop.f32.mrb[0].mxu0
      %v3405 = vadd.f32 0.0, %v3404
      %v3406 = vpop.f32.mrb[0].mxu0
      %3407 = vmatprep.mubr.bf16.mxu0 0
      %3408 = vmatmul.mubr.bf16.gmra.mrb[0].mxu0 %v3294
      %v3409 = vpop.f32.mrb[0].mxu0
      %v3410 = vadd.f32 0.0, %v3409
      %v3411 = vpop.f32.mrb[0].mxu0
      %v3412 = vpop.f32.mrb[0].mxu0
      %v3413 = vadd.f32 0.0, %v3412
      %v3414 = vpop.f32.mrb[0].mxu0
      %3415 = vmatprep.mubr.bf16.mxu0 0
      %3416 = vmatmul.mubr.bf16.gmra.mrb[0].mxu0 %v3297
      %v3417 = vpop.f32.mrb[0].mxu0
      %v3418 = vadd.f32 0.0, %v3417
      %v3419 = vpop.f32.mrb[0].mxu0
      %v3420 = vpop.f32.mrb[0].mxu0
      %v3421 = vadd.f32 0.0, %v3420
      %v3422 = vpop.f32.mrb[0].mxu0
      %3423 = vmatprep.mubr.bf16.mxu0 0
      %3424 = vmatmul.mubr.bf16.gmra.mrb[0].mxu0 %v3300
      %v3425 = vpop.f32.mrb[0].mxu0
      %v3426 = vadd.f32 0.0, %v3425
      %v3427 = vpop.f32.mrb[0].mxu0
      %v3428 = vpop.f32.mrb[0].mxu0
      %v3429 = vadd.f32 0.0, %v3428
      %v3430 = vpop.f32.mrb[0].mxu0
      %3431 = vmatprep.mubr.bf16.mxu0 0
      %3432 = vmatmul.mubr.bf16.gmra.mrb[0].mxu0 %v3303
      %v3433 = vpop.f32.mrb[0].mxu0
      %v3434 = vadd.f32 0.0, %v3433
      %v3435 = vpop.f32.mrb[0].mxu0
      %v3436 = vpop.f32.mrb[0].mxu0
      %v3437 = vadd.f32 0.0, %v3436
      %v3438 = vpop.f32.mrb[0].mxu0
      %3439 = vmatprep.mubr.bf16.mxu0 0
      %3440 = vmatmul.mubr.bf16.gmra.mrb[0].mxu0 %v3306
      %v3441 = vpop.f32.mrb[0].mxu0
      %v3442 = vadd.f32 0.0, %v3441
      %v3443 = vpop.f32.mrb[0].mxu0
      %v3444 = vpop.f32.mrb[0].mxu0
      %v3445 = vadd.f32 0.0, %v3444
      %v3446 = vpop.f32.mrb[0].mxu0
      %3447 = vmatprep.mubr.bf16.mxu0 0
      %3448 = vmatmul.mubr.bf16.gmra.mrb[0].mxu0 %v3309
      %v3449 = vpop.f32.mrb[0].mxu0
      %v3450 = vadd.f32 0.0, %v3449
      %v3451 = vpop.f32.mrb[0].mxu0
      %v3452 = vpop.f32.mrb[0].mxu0
      %v3453 = vadd.f32 0.0, %v3452
      %v3454 = vpop.f32.mrb[0].mxu0
      %3455 = vmatprep.mubr.bf16.mxu0 0
      %3456 = vmatmul.mubr.bf16.gmra.mrb[0].mxu0 %v3312
      %v3457 = vpop.f32.mrb[0].mxu0
      %v3458 = vadd.f32 0.0, %v3457
      %v3459 = vpop.f32.mrb[0].mxu0
      %v3460 = vpop.f32.mrb[0].mxu0
      %v3461 = vadd.f32 0.0, %v3460
      %v3462 = vpop.f32.mrb[0].mxu0
      %3463 = vmatprep.mubr.bf16.mxu0 0
      %3464 = vmatmul.mubr.bf16.gmra.mrb[0].mxu0 %v3315
      %v3465 = vpop.f32.mrb[0].mxu0
      %v3466 = vadd.f32 0.0, %v3465
      %v3467 = vpop.f32.mrb[0].mxu0
      %v3468 = vpop.f32.mrb[0].mxu0
      %v3469 = vadd.f32 0.0, %v3468
      %v3470 = vpop.f32.mrb[0].mxu0
      %3471 = vmatprep.mubr.bf16.mxu0 0
      %3472 = vmatmul.mubr.bf16.gmra.mrb[0].mxu0 %v3318
      %v3473 = vpop.f32.mrb[0].mxu0
      %v3474 = vadd.f32 0.0, %v3473
      %v3475 = vpop.f32.mrb[0].mxu0
      %v3476 = vpop.f32.mrb[0].mxu0
      %v3477 = vadd.f32 0.0, %v3476
      %v3478 = vpop.f32.mrb[0].mxu0
      %3479 = vmatprep.mubr.bf16.mxu0 0
      %3480 = vmatmul.mubr.bf16.gmra.mrb[0].mxu0 %v3321
      %v3481 = vpop.f32.mrb[0].mxu0
      %v3482 = vadd.f32 0.0, %v3481
      %v3483 = vpop.f32.mrb[0].mxu0
      %v3484 = vpop.f32.mrb[0].mxu0
      %v3485 = vadd.f32 0.0, %v3484
      %v3486 = vpop.f32.mrb[0].mxu0
      %3487 = vmatprep.mubr.bf16.mxu0 0
      %3488 = vmatmul.mubr.bf16.gmra.mrb[0].mxu0 %v3324
      %v3489 = vpop.f32.mrb[0].mxu0
      %v3490 = vadd.f32 0.0, %v3489
      %v3491 = vpop.f32.mrb[0].mxu0
      %v3492 = vpop.f32.mrb[0].mxu0
      %v3493 = vadd.f32 0.0, %v3492
      %v3494 = vpop.f32.mrb[0].mxu0
      %3495 = vmatprep.mubr.bf16.mxu0 0
      %3496 = vmatmul.mubr.bf16.gmra.mrb[0].mxu0 %v3327
      %v3497 = vpop.f32.mrb[0].mxu0
      %v3498 = vadd.f32 0.0, %v3497
      %v3499 = vpop.f32.mrb[0].mxu0
      %v3500 = vpop.f32.mrb[0].mxu0
      %v3501 = vadd.f32 0.0, %v3500
      %v3502 = vpop.f32.mrb[0].mxu0
      %3503 = vmatprep.mubr.bf16.mxu0 0
      %3504 = vmatmul.mubr.bf16.gmra.mrb[0].mxu0 %v3330
      %v3505 = vpop.f32.mrb[0].mxu0
      %v3506 = vadd.f32 0.0, %v3505
      %v3507 = vpop.f32.mrb[0].mxu0
      %v3508 = vpop.f32.mrb[0].mxu0
      %v3509 = vadd.f32 0.0, %v3508
      %v3510 = vpop.f32.mrb[0].mxu0
      %3511 = vmatprep.mubr.bf16.mxu0 0
      %3512 = vmatmul.mubr.bf16.gmra.mrb[0].mxu0 %v3333
      %v3513 = vpop.f32.mrb[0].mxu0
      %v3514 = vadd.f32 0.0, %v3513
      %v3515 = vpop.f32.mrb[0].mxu0
      %v3516 = vpop.f32.mrb[0].mxu0
      %v3517 = vadd.f32 0.0, %v3516
      %v3518 = vpop.f32.mrb[0].mxu0
      %3519 = vmatprep.mubr.bf16.mxu0 0
      %3520 = vmatmul.mubr.bf16.gmra.mrb[0].mxu0 %v3336
      %v3521 = vpop.f32.mrb[0].mxu0
      %v3522 = vadd.f32 0.0, %v3521
      %v3523 = vpop.f32.mrb[0].mxu0
      %v3524 = vpop.f32.mrb[0].mxu0
      %v3525 = vadd.f32 0.0, %v3524
      %v3526 = vpop.f32.mrb[0].mxu0
      %3527 = vmatprep.mubr.bf16.mxu0 0
      %3528 = vmatmul.mubr.bf16.gmra.mrb[0].mxu0 %v3339
      %v3529 = vpop.f32.mrb[0].mxu0
      %v3530 = vadd.f32 0.0, %v3529
      %v3531 = vpop.f32.mrb[0].mxu0
      %v3532 = vpop.f32.mrb[0].mxu0
      %v3533 = vadd.f32 0.0, %v3532
      %v3534 = vpop.f32.mrb[0].mxu0
      %3535 = vmatprep.mubr.bf16.mxu0 0
      %3536 = vmatmul.mubr.bf16.gmra.mrb[0].mxu0 %v3342
      %v3537 = vpop.f32.mrb[0].mxu0
      %v3538 = vadd.f32 0.0, %v3537
      %v3539 = vpop.f32.mrb[0].mxu0
      %v3540 = vpop.f32.mrb[0].mxu0
      %v3541 = vadd.f32 0.0, %v3540
      %v3542 = vpop.f32.mrb[0].mxu0
      %3543 = vmatprep.mubr.bf16.mxu0 0
      %3544 = vmatmul.mubr.bf16.gmra.mrb[0].mxu0 %v3345
      %v3545 = vpop.f32.mrb[0].mxu0
      %v3546 = vadd.f32 0.0, %v3545
      %v3547 = vpop.f32.mrb[0].mxu0
      %v3548 = vpop.f32.mrb[0].mxu0
      %v3549 = vadd.f32 0.0, %v3548
      %v3550 = vpop.f32.mrb[0].mxu0
      %3551 = vmatprep.mubr.bf16.mxu0 0
      %3552 = vmatmul.mubr.bf16.gmra.mrb[0].mxu0 %v3348
      %v3553 = vpop.f32.mrb[0].mxu0
      %v3554 = vadd.f32 0.0, %v3553
      %v3555 = vpop.f32.mrb[0].mxu0
      %v3556 = vpop.f32.mrb[0].mxu0
      %v3557 = vadd.f32 0.0, %v3556
      %v3558 = vpop.f32.mrb[0].mxu0
      %3559 = vmatprep.mubr.bf16.mxu0 0
      %3560 = vmatmul.mubr.bf16.gmra.mrb[0].mxu0 %v3351
      %v3561 = vpop.f32.mrb[0].mxu0
      %v3562 = vadd.f32 0.0, %v3561
      %v3563 = vpop.f32.mrb[0].mxu0
      %v3564 = vpop.f32.mrb[0].mxu0
      %v3565 = vadd.f32 0.0, %v3564
      %v3566 = vpop.f32.mrb[0].mxu0
      %3567 = vmatprep.mubr.bf16.mxu0 0
      %3568 = vmatmul.mubr.bf16.gmra.mrb[0].mxu0 %v3354
      %v3569 = vpop.f32.mrb[0].mxu0
      %v3570 = vadd.f32 0.0, %v3569
      %v3571 = vpop.f32.mrb[0].mxu0
      %v3572 = vpop.f32.mrb[0].mxu0
      %v3573 = vadd.f32 0.0, %v3572
      %v3574 = vpop.f32.mrb[0].mxu0
      %3575 = vmatprep.mubr.bf16.mxu0 0
      %3576 = vmatmul.mubr.bf16.gmra.mrb[0].mxu0 %v3357
      %v3577 = vpop.f32.mrb[0].mxu0
      %v3578 = vadd.f32 0.0, %v3577
      %v3579 = vpop.f32.mrb[0].mxu0
      %v3580 = vpop.f32.mrb[0].mxu0
      %v3581 = vadd.f32 0.0, %v3580
      %v3582 = vpop.f32.mrb[0].mxu0
      %3583 = vdwg.mxu0
      %v3584 = vadd.f32 %v2184, %v3394
      %v3585 = vadd.f32 %v2187, %v3397
      %v3586 = vadd.f32 %v2192, %v3402
      %v3587 = vadd.f32 %v2195, %v3405
      %v3588 = vadd.f32 %v2200, %v3410
      %v3589 = vadd.f32 %v2203, %v3413
      %v3590 = vadd.f32 %v2208, %v3418
      %v3591 = vadd.f32 %v2211, %v3421
      %v3592 = vadd.f32 %v2216, %v3426
      %v3593 = vadd.f32 %v2219, %v3429
      %v3594 = vadd.f32 %v2224, %v3434
      %v3595 = vadd.f32 %v2227, %v3437
      %v3596 = vadd.f32 %v2232, %v3442
      %v3597 = vadd.f32 %v2235, %v3445
      %v3598 = vadd.f32 %v2240, %v3450
      %v3599 = vadd.f32 %v2243, %v3453
      %v3600 = vadd.f32 %v2248, %v3458
      %v3601 = vadd.f32 %v2251, %v3461
      %v3602 = vadd.f32 %v2256, %v3466
      %v3603 = vadd.f32 %v2259, %v3469
      %v3604 = vadd.f32 %v2264, %v3474
      %v3605 = vadd.f32 %v2267, %v3477
      %v3606 = vadd.f32 %v2272, %v3482
      %v3607 = vadd.f32 %v2275, %v3485
      %v3608 = vadd.f32 %v2280, %v3490
      %v3609 = vadd.f32 %v2283, %v3493
      %v3610 = vadd.f32 %v2288, %v3498
      %v3611 = vadd.f32 %v2291, %v3501
      %v3612 = vadd.f32 %v2296, %v3506
      %v3613 = vadd.f32 %v2299, %v3509
      %v3614 = vadd.f32 %v2304, %v3514
      %v3615 = vadd.f32 %v2307, %v3517
      %v3616 = vadd.f32 %v2312, %v3522
      %v3617 = vadd.f32 %v2315, %v3525
      %v3618 = vadd.f32 %v2320, %v3530
      %v3619 = vadd.f32 %v2323, %v3533
      %v3620 = vadd.f32 %v2328, %v3538
      %v3621 = vadd.f32 %v2331, %v3541
      %v3622 = vadd.f32 %v2336, %v3546
      %v3623 = vadd.f32 %v2339, %v3549
      %v3624 = vadd.f32 %v2344, %v3554
      %v3625 = vadd.f32 %v2347, %v3557
      %v3626 = vadd.f32 %v2352, %v3562
      %v3627 = vadd.f32 %v2355, %v3565
      %v3628 = vadd.f32 %v2360, %v3570
      %v3629 = vadd.f32 %v2363, %v3573
      %v3630 = vadd.f32 %v2368, %v3578
      %v3631 = vadd.f32 %v2371, %v3581
      %vm3632 = vcmp.gt.f32.partialorder %v3584, 0.0
      %vm3633 = vcmp.gt.f32.partialorder %v3585, 0.0
      %vm3634 = vcmp.gt.f32.partialorder %v3586, 0.0
      %vm3635 = vcmp.gt.f32.partialorder %v3587, 0.0
      %vm3636 = vcmp.gt.f32.partialorder %v3588, 0.0
      %vm3637 = vcmp.gt.f32.partialorder %v3589, 0.0
      %vm3638 = vcmp.gt.f32.partialorder %v3590, 0.0
      %vm3639 = vcmp.gt.f32.partialorder %v3591, 0.0
      %vm3640 = vcmp.gt.f32.partialorder %v3592, 0.0
      %vm3641 = vcmp.gt.f32.partialorder %v3593, 0.0
      %vm3642 = vcmp.gt.f32.partialorder %v3594, 0.0
      %vm3643 = vcmp.gt.f32.partialorder %v3595, 0.0
      %vm3644 = vcmp.gt.f32.partialorder %v3596, 0.0
      %vm3645 = vcmp.gt.f32.partialorder %v3597, 0.0
      %vm3646 = vcmp.gt.f32.partialorder %v3598, 0.0
      %vm3647 = vcmp.gt.f32.partialorder %v3599, 0.0
      %vm3648 = vcmp.gt.f32.partialorder %v3600, 0.0
      %vm3649 = vcmp.gt.f32.partialorder %v3601, 0.0
      %vm3650 = vcmp.gt.f32.partialorder %v3602, 0.0
      %vm3651 = vcmp.gt.f32.partialorder %v3603, 0.0
      %vm3652 = vcmp.gt.f32.partialorder %v3604, 0.0
      %vm3653 = vcmp.gt.f32.partialorder %v3605, 0.0
      %vm3654 = vcmp.gt.f32.partialorder %v3606, 0.0
      %vm3655 = vcmp.gt.f32.partialorder %v3607, 0.0
      %vm3656 = vcmp.gt.f32.partialorder %v3608, 0.0
      %vm3657 = vcmp.gt.f32.partialorder %v3609, 0.0
      %vm3658 = vcmp.gt.f32.partialorder %v3610, 0.0
      %vm3659 = vcmp.gt.f32.partialorder %v3611, 0.0
      %vm3660 = vcmp.gt.f32.partialorder %v3612, 0.0
      %vm3661 = vcmp.gt.f32.partialorder %v3613, 0.0
      %vm3662 = vcmp.gt.f32.partialorder %v3614, 0.0
      %vm3663 = vcmp.gt.f32.partialorder %v3615, 0.0
      %vm3664 = vcmp.gt.f32.partialorder %v3616, 0.0
      %vm3665 = vcmp.gt.f32.partialorder %v3617, 0.0
      %vm3666 = vcmp.gt.f32.partialorder %v3618, 0.0
      %vm3667 = vcmp.gt.f32.partialorder %v3619, 0.0
      %vm3668 = vcmp.gt.f32.partialorder %v3620, 0.0
      %vm3669 = vcmp.gt.f32.partialorder %v3621, 0.0
      %vm3670 = vcmp.gt.f32.partialorder %v3622, 0.0
      %vm3671 = vcmp.gt.f32.partialorder %v3623, 0.0
      %vm3672 = vcmp.gt.f32.partialorder %v3624, 0.0
      %vm3673 = vcmp.gt.f32.partialorder %v3625, 0.0
      %vm3674 = vcmp.gt.f32.partialorder %v3626, 0.0
      %vm3675 = vcmp.gt.f32.partialorder %v3627, 0.0
      %vm3676 = vcmp.gt.f32.partialorder %v3628, 0.0
      %vm3677 = vcmp.gt.f32.partialorder %v3629, 0.0
      %vm3678 = vcmp.gt.f32.partialorder %v3630, 0.0
      %vm3679 = vcmp.gt.f32.partialorder %v3631, 0.0
      %v3680 = vld [vmem:[%s2] sm:$0x1]
      %v3682 = vlaneseq
      %v3683 = vshrl.u32 %v3682, 7
      %v3684 = vsub.s32 0, %v3683
      %v3685 = vrot.slane %v3680, %v3684
      %v3687 = vmul.f32 %v3584, %v3685
      %v3688 = vmul.f32 %v3585, %v3685
      %v3689 = vmul.f32 %v3586, %v3685
      %v3690 = vmul.f32 %v3587, %v3685
      %v3691 = vmul.f32 %v3588, %v3685
      %v3692 = vmul.f32 %v3589, %v3685
      %v3693 = vmul.f32 %v3590, %v3685
      %v3694 = vmul.f32 %v3591, %v3685
      %v3695 = vmul.f32 %v3592, %v3685
      %v3696 = vmul.f32 %v3593, %v3685
      %v3697 = vmul.f32 %v3594, %v3685
      %v3698 = vmul.f32 %v3595, %v3685
      %v3699 = vmul.f32 %v3596, %v3685
      %v3700 = vmul.f32 %v3597, %v3685
      %v3701 = vmul.f32 %v3598, %v3685
      %v3702 = vmul.f32 %v3599, %v3685
      %v3703 = vmul.f32 %v3600, %v3685
      %v3704 = vmul.f32 %v3601, %v3685
      %v3705 = vmul.f32 %v3602, %v3685
      %v3706 = vmul.f32 %v3603, %v3685
      %v3707 = vmul.f32 %v3604, %v3685
      %v3708 = vmul.f32 %v3605, %v3685
      %v3709 = vmul.f32 %v3606, %v3685
      %v3710 = vmul.f32 %v3607, %v3685
      %v3711 = vmul.f32 %v3608, %v3685
      %v3712 = vmul.f32 %v3609, %v3685
      %v3713 = vmul.f32 %v3610, %v3685
      %v3714 = vmul.f32 %v3611, %v3685
      %v3715 = vmul.f32 %v3612, %v3685
      %v3716 = vmul.f32 %v3613, %v3685
      %v3717 = vmul.f32 %v3614, %v3685
      %v3718 = vmul.f32 %v3615, %v3685
      %v3719 = vmul.f32 %v3616, %v3685
      %v3720 = vmul.f32 %v3617, %v3685
      %v3721 = vmul.f32 %v3618, %v3685
      %v3722 = vmul.f32 %v3619, %v3685
      %v3723 = vmul.f32 %v3620, %v3685
      %v3724 = vmul.f32 %v3621, %v3685
      %v3725 = vmul.f32 %v3622, %v3685
      %v3726 = vmul.f32 %v3623, %v3685
      %v3727 = vmul.f32 %v3624, %v3685
      %v3728 = vmul.f32 %v3625, %v3685
      %v3729 = vmul.f32 %v3626, %v3685
      %v3730 = vmul.f32 %v3627, %v3685
      %v3731 = vmul.f32 %v3628, %v3685
      %v3732 = vmul.f32 %v3629, %v3685
      %v3733 = vmul.f32 %v3630, %v3685
      %v3734 = vmul.f32 %v3631, %v3685
      %v3735 = vsel %vm3632, %v3584, %v3687
      %v3736 = vsel %vm3633, %v3585, %v3688
      %v3737 = vsel %vm3634, %v3586, %v3689
      %v3738 = vsel %vm3635, %v3587, %v3690
      %v3739 = vsel %vm3636, %v3588, %v3691
      %v3740 = vsel %vm3637, %v3589, %v3692
      %v3741 = vsel %vm3638, %v3590, %v3693
      %v3742 = vsel %vm3639, %v3591, %v3694
      %v3743 = vsel %vm3640, %v3592, %v3695
      %v3744 = vsel %vm3641, %v3593, %v3696
      %v3745 = vsel %vm3642, %v3594, %v3697
      %v3746 = vsel %vm3643, %v3595, %v3698
      %v3747 = vsel %vm3644, %v3596, %v3699
      %v3748 = vsel %vm3645, %v3597, %v3700
      %v3749 = vsel %vm3646, %v3598, %v3701
      %v3750 = vsel %vm3647, %v3599, %v3702
      %v3751 = vsel %vm3648, %v3600, %v3703
      %v3752 = vsel %vm3649, %v3601, %v3704
      %v3753 = vsel %vm3650, %v3602, %v3705
      %v3754 = vsel %vm3651, %v3603, %v3706
      %v3755 = vsel %vm3652, %v3604, %v3707
      %v3756 = vsel %vm3653, %v3605, %v3708
      %v3757 = vsel %vm3654, %v3606, %v3709
      %v3758 = vsel %vm3655, %v3607, %v3710
      %v3759 = vsel %vm3656, %v3608, %v3711
      %v3760 = vsel %vm3657, %v3609, %v3712
      %v3761 = vsel %vm3658, %v3610, %v3713
      %v3762 = vsel %vm3659, %v3611, %v3714
      %v3763 = vsel %vm3660, %v3612, %v3715
      %v3764 = vsel %vm3661, %v3613, %v3716
      %v3765 = vsel %vm3662, %v3614, %v3717
      %v3766 = vsel %vm3663, %v3615, %v3718
      %v3767 = vsel %vm3664, %v3616, %v3719
      %v3768 = vsel %vm3665, %v3617, %v3720
      %v3769 = vsel %vm3666, %v3618, %v3721
      %v3770 = vsel %vm3667, %v3619, %v3722
      %v3771 = vsel %vm3668, %v3620, %v3723
      %v3772 = vsel %vm3669, %v3621, %v3724
      %v3773 = vsel %vm3670, %v3622, %v3725
      %v3774 = vsel %vm3671, %v3623, %v3726
      %v3775 = vsel %vm3672, %v3624, %v3727
      %v3776 = vsel %vm3673, %v3625, %v3728
      %v3777 = vsel %vm3674, %v3626, %v3729
      %v3778 = vsel %vm3675, %v3627, %v3730
      %v3779 = vsel %vm3676, %v3628, %v3731
      %v3780 = vsel %vm3677, %v3629, %v3732
      %v3781 = vsel %vm3678, %v3630, %v3733
      %v3782 = vsel %vm3679, %v3631, %v3734
      %v3783 = vlaneseq
      %v3784 = vshrl.u32 %v3783, 7
      %v3785 = vadd.s32 %v3784, 8
      %v3786 = vadd.s32 %v3784, 16
      %v3787 = vadd.s32 %v3784, 24
      %v3788 = vadd.s32 %v3784, 32
      %v3789 = vadd.s32 %v3784, 40
      %v3790 = vadd.s32 %v3784, 48
      %v3791 = vadd.s32 %v3784, 56
      %v3792 = vadd.s32 %v3784, 64
      %v3793 = vadd.s32 %v3784, 72
      %v3794 = vadd.s32 %v3784, 80
      %v3795 = vadd.s32 %v3784, 88
      %v3796 = vadd.s32 %v3784, 96
      %v3797 = vadd.s32 %v3784, 104
      %v3798 = vadd.s32 %v3784, 112
      %v3799 = vadd.s32 %v3784, 120
      %v3800 = vadd.s32 %v3784, 128
      %v3801 = vadd.s32 %v3784, 136
      %v3802 = vadd.s32 %v3784, 144
      %v3803 = vadd.s32 %v3784, 152
      %v3804 = vadd.s32 %v3784, 160
      %v3805 = vadd.s32 %v3784, 168
      %v3806 = vadd.s32 %v3784, 176
      %v3807 = vadd.s32 %v3784, 184
      %v3808 = vadd.s32 %v3784, 192
      %v3809 = vadd.s32 %v3784, 200
      %v3810 = vadd.s32 %v3784, 208
      %v3811 = vadd.s32 %v3784, 216
      %v3812 = vadd.s32 %v3784, 224
      %v3813 = vadd.s32 %v3784, 232
      %v3814 = vadd.s32 %v3784, 240
      %v3815 = vadd.s32 %v3784, 248
      %v3816 = vadd.s32 %v3784, 256
      %v3817 = vadd.s32 %v3784, 264
      %v3818 = vadd.s32 %v3784, 272
      %v3819 = vadd.s32 %v3784, 280
      %v3820 = vadd.s32 %v3784, 288
      %v3821 = vadd.s32 %v3784, 296
      %v3822 = vadd.s32 %v3784, 304
      %v3823 = vadd.s32 %v3784, 312
      %v3824 = vadd.s32 %v3784, 320
      %v3825 = vadd.s32 %v3784, 328
      %v3826 = vadd.s32 %v3784, 336
      %v3827 = vadd.s32 %v3784, 344
      %v3828 = vadd.s32 %v3784, 352
      %v3829 = vadd.s32 %v3784, 360
      %v3830 = vadd.s32 %v3784, 368
      %v3831 = vadd.s32 %v3784, 376
      %vm3832 = vcmp.lt.s32.totalorder %v3784, 0
      %v3833 = vsub.s32 0, %v3784
      %v3834 = vsel %vm3832, %v3833, %v3784
      %v3835 = vmul.u32.u64.compose %v3834, 2863311531
      %v3836 = vextract.low.u32 %v3835
      %v3837 = vextract.high.u32 %v3835
      %v3838 = vshrl.u32 %v3837, 4
      %v3839 = vmul.u32 %v3838, 24
      %v3840 = vsub.s32 %v3834, %v3839
      %v3841 = vsub.s32 0, %v3840
      %v3842 = vsel %vm3832, %v3841, %v3840
      %vm3843 = vcmp.lt.s32.totalorder %v3785, 0
      %v3844 = vsub.s32 0, %v3785
      %v3845 = vsel %vm3843, %v3844, %v3785
      %v3846 = vmul.u32.u64.compose %v3845, 2863311531
      %v3847 = vextract.low.u32 %v3846
      %v3848 = vextract.high.u32 %v3846
      %v3849 = vshrl.u32 %v3848, 4
      %v3850 = vmul.u32 %v3849, 24
      %v3851 = vsub.s32 %v3845, %v3850
      %v3852 = vsub.s32 0, %v3851
      %v3853 = vsel %vm3843, %v3852, %v3851
      %vm3854 = vcmp.lt.s32.totalorder %v3786, 0
      %v3855 = vsub.s32 0, %v3786
      %v3856 = vsel %vm3854, %v3855, %v3786
      %v3857 = vmul.u32.u64.compose %v3856, 2863311531
      %v3858 = vextract.low.u32 %v3857
      %v3859 = vextract.high.u32 %v3857
      %v3860 = vshrl.u32 %v3859, 4
      %v3861 = vmul.u32 %v3860, 24
      %v3862 = vsub.s32 %v3856, %v3861
      %v3863 = vsub.s32 0, %v3862
      %v3864 = vsel %vm3854, %v3863, %v3862
      %vm3865 = vcmp.lt.s32.totalorder %v3787, 0
      %v3866 = vsub.s32 0, %v3787
      %v3867 = vsel %vm3865, %v3866, %v3787
      %v3868 = vmul.u32.u64.compose %v3867, 2863311531
      %v3869 = vextract.low.u32 %v3868
      %v3870 = vextract.high.u32 %v3868
      %v3871 = vshrl.u32 %v3870, 4
      %v3872 = vmul.u32 %v3871, 24
      %v3873 = vsub.s32 %v3867, %v3872
      %v3874 = vsub.s32 0, %v3873
      %v3875 = vsel %vm3865, %v3874, %v3873
      %vm3876 = vcmp.lt.s32.totalorder %v3788, 0
      %v3877 = vsub.s32 0, %v3788
      %v3878 = vsel %vm3876, %v3877, %v3788
      %v3879 = vmul.u32.u64.compose %v3878, 2863311531
      %v3880 = vextract.low.u32 %v3879
      %v3881 = vextract.high.u32 %v3879
      %v3882 = vshrl.u32 %v3881, 4
      %v3883 = vmul.u32 %v3882, 24
      %v3884 = vsub.s32 %v3878, %v3883
      %v3885 = vsub.s32 0, %v3884
      %v3886 = vsel %vm3876, %v3885, %v3884
      %vm3887 = vcmp.lt.s32.totalorder %v3789, 0
      %v3888 = vsub.s32 0, %v3789
      %v3889 = vsel %vm3887, %v3888, %v3789
      %v3890 = vmul.u32.u64.compose %v3889, 2863311531
      %v3891 = vextract.low.u32 %v3890
      %v3892 = vextract.high.u32 %v3890
      %v3893 = vshrl.u32 %v3892, 4
      %v3894 = vmul.u32 %v3893, 24
      %v3895 = vsub.s32 %v3889, %v3894
      %v3896 = vsub.s32 0, %v3895
      %v3897 = vsel %vm3887, %v3896, %v3895
      %vm3898 = vcmp.lt.s32.totalorder %v3790, 0
      %v3899 = vsub.s32 0, %v3790
      %v3900 = vsel %vm3898, %v3899, %v3790
      %v3901 = vmul.u32.u64.compose %v3900, 2863311531
      %v3902 = vextract.low.u32 %v3901
      %v3903 = vextract.high.u32 %v3901
      %v3904 = vshrl.u32 %v3903, 4
      %v3905 = vmul.u32 %v3904, 24
      %v3906 = vsub.s32 %v3900, %v3905
      %v3907 = vsub.s32 0, %v3906
      %v3908 = vsel %vm3898, %v3907, %v3906
      %vm3909 = vcmp.lt.s32.totalorder %v3791, 0
      %v3910 = vsub.s32 0, %v3791
      %v3911 = vsel %vm3909, %v3910, %v3791
      %v3912 = vmul.u32.u64.compose %v3911, 2863311531
      %v3913 = vextract.low.u32 %v3912
      %v3914 = vextract.high.u32 %v3912
      %v3915 = vshrl.u32 %v3914, 4
      %v3916 = vmul.u32 %v3915, 24
      %v3917 = vsub.s32 %v3911, %v3916
      %v3918 = vsub.s32 0, %v3917
      %v3919 = vsel %vm3909, %v3918, %v3917
      %vm3920 = vcmp.lt.s32.totalorder %v3792, 0
      %v3921 = vsub.s32 0, %v3792
      %v3922 = vsel %vm3920, %v3921, %v3792
      %v3923 = vmul.u32.u64.compose %v3922, 2863311531
      %v3924 = vextract.low.u32 %v3923
      %v3925 = vextract.high.u32 %v3923
      %v3926 = vshrl.u32 %v3925, 4
      %v3927 = vmul.u32 %v3926, 24
      %v3928 = vsub.s32 %v3922, %v3927
      %v3929 = vsub.s32 0, %v3928
      %v3930 = vsel %vm3920, %v3929, %v3928
      %vm3931 = vcmp.lt.s32.totalorder %v3793, 0
      %v3932 = vsub.s32 0, %v3793
      %v3933 = vsel %vm3931, %v3932, %v3793
      %v3934 = vmul.u32.u64.compose %v3933, 2863311531
      %v3935 = vextract.low.u32 %v3934
      %v3936 = vextract.high.u32 %v3934
      %v3937 = vshrl.u32 %v3936, 4
      %v3938 = vmul.u32 %v3937, 24
      %v3939 = vsub.s32 %v3933, %v3938
      %v3940 = vsub.s32 0, %v3939
      %v3941 = vsel %vm3931, %v3940, %v3939
      %vm3942 = vcmp.lt.s32.totalorder %v3794, 0
      %v3943 = vsub.s32 0, %v3794
      %v3944 = vsel %vm3942, %v3943, %v3794
      %v3945 = vmul.u32.u64.compose %v3944, 2863311531
      %v3946 = vextract.low.u32 %v3945
      %v3947 = vextract.high.u32 %v3945
      %v3948 = vshrl.u32 %v3947, 4
      %v3949 = vmul.u32 %v3948, 24
      %v3950 = vsub.s32 %v3944, %v3949
      %v3951 = vsub.s32 0, %v3950
      %v3952 = vsel %vm3942, %v3951, %v3950
      %vm3953 = vcmp.lt.s32.totalorder %v3795, 0
      %v3954 = vsub.s32 0, %v3795
      %v3955 = vsel %vm3953, %v3954, %v3795
      %v3956 = vmul.u32.u64.compose %v3955, 2863311531
      %v3957 = vextract.low.u32 %v3956
      %v3958 = vextract.high.u32 %v3956
      %v3959 = vshrl.u32 %v3958, 4
      %v3960 = vmul.u32 %v3959, 24
      %v3961 = vsub.s32 %v3955, %v3960
      %v3962 = vsub.s32 0, %v3961
      %v3963 = vsel %vm3953, %v3962, %v3961
      %vm3964 = vcmp.lt.s32.totalorder %v3796, 0
      %v3965 = vsub.s32 0, %v3796
      %v3966 = vsel %vm3964, %v3965, %v3796
      %v3967 = vmul.u32.u64.compose %v3966, 2863311531
      %v3968 = vextract.low.u32 %v3967
      %v3969 = vextract.high.u32 %v3967
      %v3970 = vshrl.u32 %v3969, 4
      %v3971 = vmul.u32 %v3970, 24
      %v3972 = vsub.s32 %v3966, %v3971
      %v3973 = vsub.s32 0, %v3972
      %v3974 = vsel %vm3964, %v3973, %v3972
      %vm3975 = vcmp.lt.s32.totalorder %v3797, 0
      %v3976 = vsub.s32 0, %v3797
      %v3977 = vsel %vm3975, %v3976, %v3797
      %v3978 = vmul.u32.u64.compose %v3977, 2863311531
      %v3979 = vextract.low.u32 %v3978
      %v3980 = vextract.high.u32 %v3978
      %v3981 = vshrl.u32 %v3980, 4
      %v3982 = vmul.u32 %v3981, 24
      %v3983 = vsub.s32 %v3977, %v3982
      %v3984 = vsub.s32 0, %v3983
      %v3985 = vsel %vm3975, %v3984, %v3983
      %vm3986 = vcmp.lt.s32.totalorder %v3798, 0
      %v3987 = vsub.s32 0, %v3798
      %v3988 = vsel %vm3986, %v3987, %v3798
      %v3989 = vmul.u32.u64.compose %v3988, 2863311531
      %v3990 = vextract.low.u32 %v3989
      %v3991 = vextract.high.u32 %v3989
      %v3992 = vshrl.u32 %v3991, 4
      %v3993 = vmul.u32 %v3992, 24
      %v3994 = vsub.s32 %v3988, %v3993
      %v3995 = vsub.s32 0, %v3994
      %v3996 = vsel %vm3986, %v3995, %v3994
      %vm3997 = vcmp.lt.s32.totalorder %v3799, 0
      %v3998 = vsub.s32 0, %v3799
      %v3999 = vsel %vm3997, %v3998, %v3799
      %v4000 = vmul.u32.u64.compose %v3999, 2863311531
      %v4001 = vextract.low.u32 %v4000
      %v4002 = vextract.high.u32 %v4000
      %v4003 = vshrl.u32 %v4002, 4
      %v4004 = vmul.u32 %v4003, 24
      %v4005 = vsub.s32 %v3999, %v4004
      %v4006 = vsub.s32 0, %v4005
      %v4007 = vsel %vm3997, %v4006, %v4005
      %vm4008 = vcmp.lt.s32.totalorder %v3800, 0
      %v4009 = vsub.s32 0, %v3800
      %v4010 = vsel %vm4008, %v4009, %v3800
      %v4011 = vmul.u32.u64.compose %v4010, 2863311531
      %v4012 = vextract.low.u32 %v4011
      %v4013 = vextract.high.u32 %v4011
      %v4014 = vshrl.u32 %v4013, 4
      %v4015 = vmul.u32 %v4014, 24
      %v4016 = vsub.s32 %v4010, %v4015
      %v4017 = vsub.s32 0, %v4016
      %v4018 = vsel %vm4008, %v4017, %v4016
      %vm4019 = vcmp.lt.s32.totalorder %v3801, 0
      %v4020 = vsub.s32 0, %v3801
      %v4021 = vsel %vm4019, %v4020, %v3801
      %v4022 = vmul.u32.u64.compose %v4021, 2863311531
      %v4023 = vextract.low.u32 %v4022
      %v4024 = vextract.high.u32 %v4022
      %v4025 = vshrl.u32 %v4024, 4
      %v4026 = vmul.u32 %v4025, 24
      %v4027 = vsub.s32 %v4021, %v4026
      %v4028 = vsub.s32 0, %v4027
      %v4029 = vsel %vm4019, %v4028, %v4027
      %vm4030 = vcmp.lt.s32.totalorder %v3802, 0
      %v4031 = vsub.s32 0, %v3802
      %v4032 = vsel %vm4030, %v4031, %v3802
      %v4033 = vmul.u32.u64.compose %v4032, 2863311531
      %v4034 = vextract.low.u32 %v4033
      %v4035 = vextract.high.u32 %v4033
      %v4036 = vshrl.u32 %v4035, 4
      %v4037 = vmul.u32 %v4036, 24
      %v4038 = vsub.s32 %v4032, %v4037
      %v4039 = vsub.s32 0, %v4038
      %v4040 = vsel %vm4030, %v4039, %v4038
      %vm4041 = vcmp.lt.s32.totalorder %v3803, 0
      %v4042 = vsub.s32 0, %v3803
      %v4043 = vsel %vm4041, %v4042, %v3803
      %v4044 = vmul.u32.u64.compose %v4043, 2863311531
      %v4045 = vextract.low.u32 %v4044
      %v4046 = vextract.high.u32 %v4044
      %v4047 = vshrl.u32 %v4046, 4
      %v4048 = vmul.u32 %v4047, 24
      %v4049 = vsub.s32 %v4043, %v4048
      %v4050 = vsub.s32 0, %v4049
      %v4051 = vsel %vm4041, %v4050, %v4049
      %vm4052 = vcmp.lt.s32.totalorder %v3804, 0
      %v4053 = vsub.s32 0, %v3804
      %v4054 = vsel %vm4052, %v4053, %v3804
      %v4055 = vmul.u32.u64.compose %v4054, 2863311531
      %v4056 = vextract.low.u32 %v4055
      %v4057 = vextract.high.u32 %v4055
      %v4058 = vshrl.u32 %v4057, 4
      %v4059 = vmul.u32 %v4058, 24
      %v4060 = vsub.s32 %v4054, %v4059
      %v4061 = vsub.s32 0, %v4060
      %v4062 = vsel %vm4052, %v4061, %v4060
      %vm4063 = vcmp.lt.s32.totalorder %v3805, 0
      %v4064 = vsub.s32 0, %v3805
      %v4065 = vsel %vm4063, %v4064, %v3805
      %v4066 = vmul.u32.u64.compose %v4065, 2863311531
      %v4067 = vextract.low.u32 %v4066
      %v4068 = vextract.high.u32 %v4066
      %v4069 = vshrl.u32 %v4068, 4
      %v4070 = vmul.u32 %v4069, 24
      %v4071 = vsub.s32 %v4065, %v4070
      %v4072 = vsub.s32 0, %v4071
      %v4073 = vsel %vm4063, %v4072, %v4071
      %vm4074 = vcmp.lt.s32.totalorder %v3806, 0
      %v4075 = vsub.s32 0, %v3806
      %v4076 = vsel %vm4074, %v4075, %v3806
      %v4077 = vmul.u32.u64.compose %v4076, 2863311531
      %v4078 = vextract.low.u32 %v4077
      %v4079 = vextract.high.u32 %v4077
      %v4080 = vshrl.u32 %v4079, 4
      %v4081 = vmul.u32 %v4080, 24
      %v4082 = vsub.s32 %v4076, %v4081
      %v4083 = vsub.s32 0, %v4082
      %v4084 = vsel %vm4074, %v4083, %v4082
      %vm4085 = vcmp.lt.s32.totalorder %v3807, 0
      %v4086 = vsub.s32 0, %v3807
      %v4087 = vsel %vm4085, %v4086, %v3807
      %v4088 = vmul.u32.u64.compose %v4087, 2863311531
      %v4089 = vextract.low.u32 %v4088
      %v4090 = vextract.high.u32 %v4088
      %v4091 = vshrl.u32 %v4090, 4
      %v4092 = vmul.u32 %v4091, 24
      %v4093 = vsub.s32 %v4087, %v4092
      %v4094 = vsub.s32 0, %v4093
      %v4095 = vsel %vm4085, %v4094, %v4093
      %vm4096 = vcmp.lt.s32.totalorder %v3808, 0
      %v4097 = vsub.s32 0, %v3808
      %v4098 = vsel %vm4096, %v4097, %v3808
      %v4099 = vmul.u32.u64.compose %v4098, 2863311531
      %v4100 = vextract.low.u32 %v4099
      %v4101 = vextract.high.u32 %v4099
      %v4102 = vshrl.u32 %v4101, 4
      %v4103 = vmul.u32 %v4102, 24
      %v4104 = vsub.s32 %v4098, %v4103
      %v4105 = vsub.s32 0, %v4104
      %v4106 = vsel %vm4096, %v4105, %v4104
      %vm4107 = vcmp.lt.s32.totalorder %v3809, 0
      %v4108 = vsub.s32 0, %v3809
      %v4109 = vsel %vm4107, %v4108, %v3809
      %v4110 = vmul.u32.u64.compose %v4109, 2863311531
      %v4111 = vextract.low.u32 %v4110
      %v4112 = vextract.high.u32 %v4110
      %v4113 = vshrl.u32 %v4112, 4
      %v4114 = vmul.u32 %v4113, 24
      %v4115 = vsub.s32 %v4109, %v4114
      %v4116 = vsub.s32 0, %v4115
      %v4117 = vsel %vm4107, %v4116, %v4115
      %vm4118 = vcmp.lt.s32.totalorder %v3810, 0
      %v4119 = vsub.s32 0, %v3810
      %v4120 = vsel %vm4118, %v4119, %v3810
      %v4121 = vmul.u32.u64.compose %v4120, 2863311531
      %v4122 = vextract.low.u32 %v4121
      %v4123 = vextract.high.u32 %v4121
      %v4124 = vshrl.u32 %v4123, 4
      %v4125 = vmul.u32 %v4124, 24
      %v4126 = vsub.s32 %v4120, %v4125
      %v4127 = vsub.s32 0, %v4126
      %v4128 = vsel %vm4118, %v4127, %v4126
      %vm4129 = vcmp.lt.s32.totalorder %v3811, 0
      %v4130 = vsub.s32 0, %v3811
      %v4131 = vsel %vm4129, %v4130, %v3811
      %v4132 = vmul.u32.u64.compose %v4131, 2863311531
      %v4133 = vextract.low.u32 %v4132
      %v4134 = vextract.high.u32 %v4132
      %v4135 = vshrl.u32 %v4134, 4
      %v4136 = vmul.u32 %v4135, 24
      %v4137 = vsub.s32 %v4131, %v4136
      %v4138 = vsub.s32 0, %v4137
      %v4139 = vsel %vm4129, %v4138, %v4137
      %vm4140 = vcmp.lt.s32.totalorder %v3812, 0
      %v4141 = vsub.s32 0, %v3812
      %v4142 = vsel %vm4140, %v4141, %v3812
      %v4143 = vmul.u32.u64.compose %v4142, 2863311531
      %v4144 = vextract.low.u32 %v4143
      %v4145 = vextract.high.u32 %v4143
      %v4146 = vshrl.u32 %v4145, 4
      %v4147 = vmul.u32 %v4146, 24
      %v4148 = vsub.s32 %v4142, %v4147
      %v4149 = vsub.s32 0, %v4148
      %v4150 = vsel %vm4140, %v4149, %v4148
      %vm4151 = vcmp.lt.s32.totalorder %v3813, 0
      %v4152 = vsub.s32 0, %v3813
      %v4153 = vsel %vm4151, %v4152, %v3813
      %v4154 = vmul.u32.u64.compose %v4153, 2863311531
      %v4155 = vextract.low.u32 %v4154
      %v4156 = vextract.high.u32 %v4154
      %v4157 = vshrl.u32 %v4156, 4
      %v4158 = vmul.u32 %v4157, 24
      %v4159 = vsub.s32 %v4153, %v4158
      %v4160 = vsub.s32 0, %v4159
      %v4161 = vsel %vm4151, %v4160, %v4159
      %vm4162 = vcmp.lt.s32.totalorder %v3814, 0
      %v4163 = vsub.s32 0, %v3814
      %v4164 = vsel %vm4162, %v4163, %v3814
      %v4165 = vmul.u32.u64.compose %v4164, 2863311531
      %v4166 = vextract.low.u32 %v4165
      %v4167 = vextract.high.u32 %v4165
      %v4168 = vshrl.u32 %v4167, 4
      %v4169 = vmul.u32 %v4168, 24
      %v4170 = vsub.s32 %v4164, %v4169
      %v4171 = vsub.s32 0, %v4170
      %v4172 = vsel %vm4162, %v4171, %v4170
      %vm4173 = vcmp.lt.s32.totalorder %v3815, 0
      %v4174 = vsub.s32 0, %v3815
      %v4175 = vsel %vm4173, %v4174, %v3815
      %v4176 = vmul.u32.u64.compose %v4175, 2863311531
      %v4177 = vextract.low.u32 %v4176
      %v4178 = vextract.high.u32 %v4176
      %v4179 = vshrl.u32 %v4178, 4
      %v4180 = vmul.u32 %v4179, 24
      %v4181 = vsub.s32 %v4175, %v4180
      %v4182 = vsub.s32 0, %v4181
      %v4183 = vsel %vm4173, %v4182, %v4181
      %vm4184 = vcmp.lt.s32.totalorder %v3816, 0
      %v4185 = vsub.s32 0, %v3816
      %v4186 = vsel %vm4184, %v4185, %v3816
      %v4187 = vmul.u32.u64.compose %v4186, 2863311531
      %v4188 = vextract.low.u32 %v4187
      %v4189 = vextract.high.u32 %v4187
      %v4190 = vshrl.u32 %v4189, 4
      %v4191 = vmul.u32 %v4190, 24
      %v4192 = vsub.s32 %v4186, %v4191
      %v4193 = vsub.s32 0, %v4192
      %v4194 = vsel %vm4184, %v4193, %v4192
      %vm4195 = vcmp.lt.s32.totalorder %v3817, 0
      %v4196 = vsub.s32 0, %v3817
      %v4197 = vsel %vm4195, %v4196, %v3817
      %v4198 = vmul.u32.u64.compose %v4197, 2863311531
      %v4199 = vextract.low.u32 %v4198
      %v4200 = vextract.high.u32 %v4198
      %v4201 = vshrl.u32 %v4200, 4
      %v4202 = vmul.u32 %v4201, 24
      %v4203 = vsub.s32 %v4197, %v4202
      %v4204 = vsub.s32 0, %v4203
      %v4205 = vsel %vm4195, %v4204, %v4203
      %vm4206 = vcmp.lt.s32.totalorder %v3818, 0
      %v4207 = vsub.s32 0, %v3818
      %v4208 = vsel %vm4206, %v4207, %v3818
      %v4209 = vmul.u32.u64.compose %v4208, 2863311531
      %v4210 = vextract.low.u32 %v4209
      %v4211 = vextract.high.u32 %v4209
      %v4212 = vshrl.u32 %v4211, 4
      %v4213 = vmul.u32 %v4212, 24
      %v4214 = vsub.s32 %v4208, %v4213
      %v4215 = vsub.s32 0, %v4214
      %v4216 = vsel %vm4206, %v4215, %v4214
      %vm4217 = vcmp.lt.s32.totalorder %v3819, 0
      %v4218 = vsub.s32 0, %v3819
      %v4219 = vsel %vm4217, %v4218, %v3819
      %v4220 = vmul.u32.u64.compose %v4219, 2863311531
      %v4221 = vextract.low.u32 %v4220
      %v4222 = vextract.high.u32 %v4220
      %v4223 = vshrl.u32 %v4222, 4
      %v4224 = vmul.u32 %v4223, 24
      %v4225 = vsub.s32 %v4219, %v4224
      %v4226 = vsub.s32 0, %v4225
      %v4227 = vsel %vm4217, %v4226, %v4225
      %vm4228 = vcmp.lt.s32.totalorder %v3820, 0
      %v4229 = vsub.s32 0, %v3820
      %v4230 = vsel %vm4228, %v4229, %v3820
      %v4231 = vmul.u32.u64.compose %v4230, 2863311531
      %v4232 = vextract.low.u32 %v4231
      %v4233 = vextract.high.u32 %v4231
      %v4234 = vshrl.u32 %v4233, 4
      %v4235 = vmul.u32 %v4234, 24
      %v4236 = vsub.s32 %v4230, %v4235
      %v4237 = vsub.s32 0, %v4236
      %v4238 = vsel %vm4228, %v4237, %v4236
      %vm4239 = vcmp.lt.s32.totalorder %v3821, 0
      %v4240 = vsub.s32 0, %v3821
      %v4241 = vsel %vm4239, %v4240, %v3821
      %v4242 = vmul.u32.u64.compose %v4241, 2863311531
      %v4243 = vextract.low.u32 %v4242
      %v4244 = vextract.high.u32 %v4242
      %v4245 = vshrl.u32 %v4244, 4
      %v4246 = vmul.u32 %v4245, 24
      %v4247 = vsub.s32 %v4241, %v4246
      %v4248 = vsub.s32 0, %v4247
      %v4249 = vsel %vm4239, %v4248, %v4247
      %vm4250 = vcmp.lt.s32.totalorder %v3822, 0
      %v4251 = vsub.s32 0, %v3822
      %v4252 = vsel %vm4250, %v4251, %v3822
      %v4253 = vmul.u32.u64.compose %v4252, 2863311531
      %v4254 = vextract.low.u32 %v4253
      %v4255 = vextract.high.u32 %v4253
      %v4256 = vshrl.u32 %v4255, 4
      %v4257 = vmul.u32 %v4256, 24
      %v4258 = vsub.s32 %v4252, %v4257
      %v4259 = vsub.s32 0, %v4258
      %v4260 = vsel %vm4250, %v4259, %v4258
      %vm4261 = vcmp.lt.s32.totalorder %v3823, 0
      %v4262 = vsub.s32 0, %v3823
      %v4263 = vsel %vm4261, %v4262, %v3823
      %v4264 = vmul.u32.u64.compose %v4263, 2863311531
      %v4265 = vextract.low.u32 %v4264
      %v4266 = vextract.high.u32 %v4264
      %v4267 = vshrl.u32 %v4266, 4
      %v4268 = vmul.u32 %v4267, 24
      %v4269 = vsub.s32 %v4263, %v4268
      %v4270 = vsub.s32 0, %v4269
      %v4271 = vsel %vm4261, %v4270, %v4269
      %vm4272 = vcmp.lt.s32.totalorder %v3824, 0
      %v4273 = vsub.s32 0, %v3824
      %v4274 = vsel %vm4272, %v4273, %v3824
      %v4275 = vmul.u32.u64.compose %v4274, 2863311531
      %v4276 = vextract.low.u32 %v4275
      %v4277 = vextract.high.u32 %v4275
      %v4278 = vshrl.u32 %v4277, 4
      %v4279 = vmul.u32 %v4278, 24
      %v4280 = vsub.s32 %v4274, %v4279
      %v4281 = vsub.s32 0, %v4280
      %v4282 = vsel %vm4272, %v4281, %v4280
      %vm4283 = vcmp.lt.s32.totalorder %v3825, 0
      %v4284 = vsub.s32 0, %v3825
      %v4285 = vsel %vm4283, %v4284, %v3825
      %v4286 = vmul.u32.u64.compose %v4285, 2863311531
      %v4287 = vextract.low.u32 %v4286
      %v4288 = vextract.high.u32 %v4286
      %v4289 = vshrl.u32 %v4288, 4
      %v4290 = vmul.u32 %v4289, 24
      %v4291 = vsub.s32 %v4285, %v4290
      %v4292 = vsub.s32 0, %v4291
      %v4293 = vsel %vm4283, %v4292, %v4291
      %vm4294 = vcmp.lt.s32.totalorder %v3826, 0
      %v4295 = vsub.s32 0, %v3826
      %v4296 = vsel %vm4294, %v4295, %v3826
      %v4297 = vmul.u32.u64.compose %v4296, 2863311531
      %v4298 = vextract.low.u32 %v4297
      %v4299 = vextract.high.u32 %v4297
      %v4300 = vshrl.u32 %v4299, 4
      %v4301 = vmul.u32 %v4300, 24
      %v4302 = vsub.s32 %v4296, %v4301
      %v4303 = vsub.s32 0, %v4302
      %v4304 = vsel %vm4294, %v4303, %v4302
      %vm4305 = vcmp.lt.s32.totalorder %v3827, 0
      %v4306 = vsub.s32 0, %v3827
      %v4307 = vsel %vm4305, %v4306, %v3827
      %v4308 = vmul.u32.u64.compose %v4307, 2863311531
      %v4309 = vextract.low.u32 %v4308
      %v4310 = vextract.high.u32 %v4308
      %v4311 = vshrl.u32 %v4310, 4
      %v4312 = vmul.u32 %v4311, 24
      %v4313 = vsub.s32 %v4307, %v4312
      %v4314 = vsub.s32 0, %v4313
      %v4315 = vsel %vm4305, %v4314, %v4313
      %vm4316 = vcmp.lt.s32.totalorder %v3828, 0
      %v4317 = vsub.s32 0, %v3828
      %v4318 = vsel %vm4316, %v4317, %v3828
      %v4319 = vmul.u32.u64.compose %v4318, 2863311531
      %v4320 = vextract.low.u32 %v4319
      %v4321 = vextract.high.u32 %v4319
      %v4322 = vshrl.u32 %v4321, 4
      %v4323 = vmul.u32 %v4322, 24
      %v4324 = vsub.s32 %v4318, %v4323
      %v4325 = vsub.s32 0, %v4324
      %v4326 = vsel %vm4316, %v4325, %v4324
      %vm4327 = vcmp.lt.s32.totalorder %v3829, 0
      %v4328 = vsub.s32 0, %v3829
      %v4329 = vsel %vm4327, %v4328, %v3829
      %v4330 = vmul.u32.u64.compose %v4329, 2863311531
      %v4331 = vextract.low.u32 %v4330
      %v4332 = vextract.high.u32 %v4330
      %v4333 = vshrl.u32 %v4332, 4
      %v4334 = vmul.u32 %v4333, 24
      %v4335 = vsub.s32 %v4329, %v4334
      %v4336 = vsub.s32 0, %v4335
      %v4337 = vsel %vm4327, %v4336, %v4335
      %vm4338 = vcmp.lt.s32.totalorder %v3830, 0
      %v4339 = vsub.s32 0, %v3830
      %v4340 = vsel %vm4338, %v4339, %v3830
      %v4341 = vmul.u32.u64.compose %v4340, 2863311531
      %v4342 = vextract.low.u32 %v4341
      %v4343 = vextract.high.u32 %v4341
      %v4344 = vshrl.u32 %v4343, 4
      %v4345 = vmul.u32 %v4344, 24
      %v4346 = vsub.s32 %v4340, %v4345
      %v4347 = vsub.s32 0, %v4346
      %v4348 = vsel %vm4338, %v4347, %v4346
      %vm4349 = vcmp.lt.s32.totalorder %v3831, 0
      %v4350 = vsub.s32 0, %v3831
      %v4351 = vsel %vm4349, %v4350, %v3831
      %v4352 = vmul.u32.u64.compose %v4351, 2863311531
      %v4353 = vextract.low.u32 %v4352
      %v4354 = vextract.high.u32 %v4352
      %v4355 = vshrl.u32 %v4354, 4
      %v4356 = vmul.u32 %v4355, 24
      %v4357 = vsub.s32 %v4351, %v4356
      %v4358 = vsub.s32 0, %v4357
      %v4359 = vsel %vm4349, %v4358, %v4357
      %vm4360 = vcmp.ne.s32.totalorder %v3842, 0
      %vm4361 = vcmp.ne.s32.totalorder %v3853, 0
      %vm4362 = vcmp.ne.s32.totalorder %v3864, 0
      %vm4363 = vcmp.ne.s32.totalorder %v3875, 0
      %vm4364 = vcmp.ne.s32.totalorder %v3886, 0
      %vm4365 = vcmp.ne.s32.totalorder %v3897, 0
      %vm4366 = vcmp.ne.s32.totalorder %v3908, 0
      %vm4367 = vcmp.ne.s32.totalorder %v3919, 0
      %vm4368 = vcmp.ne.s32.totalorder %v3930, 0
      %vm4369 = vcmp.ne.s32.totalorder %v3941, 0
      %vm4370 = vcmp.ne.s32.totalorder %v3952, 0
      %vm4371 = vcmp.ne.s32.totalorder %v3963, 0
      %vm4372 = vcmp.ne.s32.totalorder %v3974, 0
      %vm4373 = vcmp.ne.s32.totalorder %v3985, 0
      %vm4374 = vcmp.ne.s32.totalorder %v3996, 0
      %vm4375 = vcmp.ne.s32.totalorder %v4007, 0
      %vm4376 = vcmp.ne.s32.totalorder %v4018, 0
      %vm4377 = vcmp.ne.s32.totalorder %v4029, 0
      %vm4378 = vcmp.ne.s32.totalorder %v4040, 0
      %vm4379 = vcmp.ne.s32.totalorder %v4051, 0
      %vm4380 = vcmp.ne.s32.totalorder %v4062, 0
      %vm4381 = vcmp.ne.s32.totalorder %v4073, 0
      %vm4382 = vcmp.ne.s32.totalorder %v4084, 0
      %vm4383 = vcmp.ne.s32.totalorder %v4095, 0
      %vm4384 = vcmp.ne.s32.totalorder %v4106, 0
      %vm4385 = vcmp.ne.s32.totalorder %v4117, 0
      %vm4386 = vcmp.ne.s32.totalorder %v4128, 0
      %vm4387 = vcmp.ne.s32.totalorder %v4139, 0
      %vm4388 = vcmp.ne.s32.totalorder %v4150, 0
      %vm4389 = vcmp.ne.s32.totalorder %v4161, 0
      %vm4390 = vcmp.ne.s32.totalorder %v4172, 0
      %vm4391 = vcmp.ne.s32.totalorder %v4183, 0
      %vm4392 = vcmp.ne.s32.totalorder %v4194, 0
      %vm4393 = vcmp.ne.s32.totalorder %v4205, 0
      %vm4394 = vcmp.ne.s32.totalorder %v4216, 0
      %vm4395 = vcmp.ne.s32.totalorder %v4227, 0
      %vm4396 = vcmp.ne.s32.totalorder %v4238, 0
      %vm4397 = vcmp.ne.s32.totalorder %v4249, 0
      %vm4398 = vcmp.ne.s32.totalorder %v4260, 0
      %vm4399 = vcmp.ne.s32.totalorder %v4271, 0
      %vm4400 = vcmp.ne.s32.totalorder %v4282, 0
      %vm4401 = vcmp.ne.s32.totalorder %v4293, 0
      %vm4402 = vcmp.ne.s32.totalorder %v4304, 0
      %vm4403 = vcmp.ne.s32.totalorder %v4315, 0
      %vm4404 = vcmp.ne.s32.totalorder %v4326, 0
      %vm4405 = vcmp.ne.s32.totalorder %v4337, 0
      %vm4406 = vcmp.ne.s32.totalorder %v4348, 0
      %vm4407 = vcmp.ne.s32.totalorder %v4359, 0
      %vm4408 = vcmp.lt.s32.totalorder %v3842, 0
      %vm4409 = vcmp.lt.s32.totalorder %v3853, 0
      %vm4410 = vcmp.lt.s32.totalorder %v3864, 0
      %vm4411 = vcmp.lt.s32.totalorder %v3875, 0
      %vm4412 = vcmp.lt.s32.totalorder %v3886, 0
      %vm4413 = vcmp.lt.s32.totalorder %v3897, 0
      %vm4414 = vcmp.lt.s32.totalorder %v3908, 0
      %vm4415 = vcmp.lt.s32.totalorder %v3919, 0
      %vm4416 = vcmp.lt.s32.totalorder %v3930, 0
      %vm4417 = vcmp.lt.s32.totalorder %v3941, 0
      %vm4418 = vcmp.lt.s32.totalorder %v3952, 0
      %vm4419 = vcmp.lt.s32.totalorder %v3963, 0
      %vm4420 = vcmp.lt.s32.totalorder %v3974, 0
      %vm4421 = vcmp.lt.s32.totalorder %v3985, 0
      %vm4422 = vcmp.lt.s32.totalorder %v3996, 0
      %vm4423 = vcmp.lt.s32.totalorder %v4007, 0
      %vm4424 = vcmp.lt.s32.totalorder %v4018, 0
      %vm4425 = vcmp.lt.s32.totalorder %v4029, 0
      %vm4426 = vcmp.lt.s32.totalorder %v4040, 0
      %vm4427 = vcmp.lt.s32.totalorder %v4051, 0
      %vm4428 = vcmp.lt.s32.totalorder %v4062, 0
      %vm4429 = vcmp.lt.s32.totalorder %v4073, 0
      %vm4430 = vcmp.lt.s32.totalorder %v4084, 0
      %vm4431 = vcmp.lt.s32.totalorder %v4095, 0
      %vm4432 = vcmp.lt.s32.totalorder %v4106, 0
      %vm4433 = vcmp.lt.s32.totalorder %v4117, 0
      %vm4434 = vcmp.lt.s32.totalorder %v4128, 0
      %vm4435 = vcmp.lt.s32.totalorder %v4139, 0
      %vm4436 = vcmp.lt.s32.totalorder %v4150, 0
      %vm4437 = vcmp.lt.s32.totalorder %v4161, 0
      %vm4438 = vcmp.lt.s32.totalorder %v4172, 0
      %vm4439 = vcmp.lt.s32.totalorder %v4183, 0
      %vm4440 = vcmp.lt.s32.totalorder %v4194, 0
      %vm4441 = vcmp.lt.s32.totalorder %v4205, 0
      %vm4442 = vcmp.lt.s32.totalorder %v4216, 0
      %vm4443 = vcmp.lt.s32.totalorder %v4227, 0
      %vm4444 = vcmp.lt.s32.totalorder %v4238, 0
      %vm4445 = vcmp.lt.s32.totalorder %v4249, 0
      %vm4446 = vcmp.lt.s32.totalorder %v4260, 0
      %vm4447 = vcmp.lt.s32.totalorder %v4271, 0
      %vm4448 = vcmp.lt.s32.totalorder %v4282, 0
      %vm4449 = vcmp.lt.s32.totalorder %v4293, 0
      %vm4450 = vcmp.lt.s32.totalorder %v4304, 0
      %vm4451 = vcmp.lt.s32.totalorder %v4315, 0
      %vm4452 = vcmp.lt.s32.totalorder %v4326, 0
      %vm4453 = vcmp.lt.s32.totalorder %v4337, 0
      %vm4454 = vcmp.lt.s32.totalorder %v4348, 0
      %vm4455 = vcmp.lt.s32.totalorder %v4359, 0
      %vm4456 = vmand %vm4408, %vm4360
      %vm4457 = vmand %vm4409, %vm4361
      %vm4458 = vmand %vm4410, %vm4362
      %vm4459 = vmand %vm4411, %vm4363
      %vm4460 = vmand %vm4412, %vm4364
      %vm4461 = vmand %vm4413, %vm4365
      %vm4462 = vmand %vm4414, %vm4366
      %vm4463 = vmand %vm4415, %vm4367
      %vm4464 = vmand %vm4416, %vm4368
      %vm4465 = vmand %vm4417, %vm4369
      %vm4466 = vmand %vm4418, %vm4370
      %vm4467 = vmand %vm4419, %vm4371
      %vm4468 = vmand %vm4420, %vm4372
      %vm4469 = vmand %vm4421, %vm4373
      %vm4470 = vmand %vm4422, %vm4374
      %vm4471 = vmand %vm4423, %vm4375
      %vm4472 = vmand %vm4424, %vm4376
      %vm4473 = vmand %vm4425, %vm4377
      %vm4474 = vmand %vm4426, %vm4378
      %vm4475 = vmand %vm4427, %vm4379
      %vm4476 = vmand %vm4428, %vm4380
      %vm4477 = vmand %vm4429, %vm4381
      %vm4478 = vmand %vm4430, %vm4382
      %vm4479 = vmand %vm4431, %vm4383
      %vm4480 = vmand %vm4432, %vm4384
      %vm4481 = vmand %vm4433, %vm4385
      %vm4482 = vmand %vm4434, %vm4386
      %vm4483 = vmand %vm4435, %vm4387
      %vm4484 = vmand %vm4436, %vm4388
      %vm4485 = vmand %vm4437, %vm4389
      %vm4486 = vmand %vm4438, %vm4390
      %vm4487 = vmand %vm4439, %vm4391
      %vm4488 = vmand %vm4440, %vm4392
      %vm4489 = vmand %vm4441, %vm4393
      %vm4490 = vmand %vm4442, %vm4394
      %vm4491 = vmand %vm4443, %vm4395
      %vm4492 = vmand %vm4444, %vm4396
      %vm4493 = vmand %vm4445, %vm4397
      %vm4494 = vmand %vm4446, %vm4398
      %vm4495 = vmand %vm4447, %vm4399
      %vm4496 = vmand %vm4448, %vm4400
      %vm4497 = vmand %vm4449, %vm4401
      %vm4498 = vmand %vm4450, %vm4402
      %vm4499 = vmand %vm4451, %vm4403
      %vm4500 = vmand %vm4452, %vm4404
      %vm4501 = vmand %vm4453, %vm4405
      %vm4502 = vmand %vm4454, %vm4406
      %vm4503 = vmand %vm4455, %vm4407
      %v4504 = vadd.s32 %v3842, 24
      %v4505 = vadd.s32 %v3853, 24
      %v4506 = vadd.s32 %v3864, 24
      %v4507 = vadd.s32 %v3875, 24
      %v4508 = vadd.s32 %v3886, 24
      %v4509 = vadd.s32 %v3897, 24
      %v4510 = vadd.s32 %v3908, 24
      %v4511 = vadd.s32 %v3919, 24
      %v4512 = vadd.s32 %v3930, 24
      %v4513 = vadd.s32 %v3941, 24
      %v4514 = vadd.s32 %v3952, 24
      %v4515 = vadd.s32 %v3963, 24
      %v4516 = vadd.s32 %v3974, 24
      %v4517 = vadd.s32 %v3985, 24
      %v4518 = vadd.s32 %v3996, 24
      %v4519 = vadd.s32 %v4007, 24
      %v4520 = vadd.s32 %v4018, 24
      %v4521 = vadd.s32 %v4029, 24
      %v4522 = vadd.s32 %v4040, 24
      %v4523 = vadd.s32 %v4051, 24
      %v4524 = vadd.s32 %v4062, 24
      %v4525 = vadd.s32 %v4073, 24
      %v4526 = vadd.s32 %v4084, 24
      %v4527 = vadd.s32 %v4095, 24
      %v4528 = vadd.s32 %v4106, 24
      %v4529 = vadd.s32 %v4117, 24
      %v4530 = vadd.s32 %v4128, 24
      %v4531 = vadd.s32 %v4139, 24
      %v4532 = vadd.s32 %v4150, 24
      %v4533 = vadd.s32 %v4161, 24
      %v4534 = vadd.s32 %v4172, 24
      %v4535 = vadd.s32 %v4183, 24
      %v4536 = vadd.s32 %v4194, 24
      %v4537 = vadd.s32 %v4205, 24
      %v4538 = vadd.s32 %v4216, 24
      %v4539 = vadd.s32 %v4227, 24
      %v4540 = vadd.s32 %v4238, 24
      %v4541 = vadd.s32 %v4249, 24
      %v4542 = vadd.s32 %v4260, 24
      %v4543 = vadd.s32 %v4271, 24
      %v4544 = vadd.s32 %v4282, 24
      %v4545 = vadd.s32 %v4293, 24
      %v4546 = vadd.s32 %v4304, 24
      %v4547 = vadd.s32 %v4315, 24
      %v4548 = vadd.s32 %v4326, 24
      %v4549 = vadd.s32 %v4337, 24
      %v4550 = vadd.s32 %v4348, 24
      %v4551 = vadd.s32 %v4359, 24
      %v4552 = vsel %vm4456, %v4504, %v3842
      %v4553 = vsel %vm4457, %v4505, %v3853
      %v4554 = vsel %vm4458, %v4506, %v3864
      %v4555 = vsel %vm4459, %v4507, %v3875
      %v4556 = vsel %vm4460, %v4508, %v3886
      %v4557 = vsel %vm4461, %v4509, %v3897
      %v4558 = vsel %vm4462, %v4510, %v3908
      %v4559 = vsel %vm4463, %v4511, %v3919
      %v4560 = vsel %vm4464, %v4512, %v3930
      %v4561 = vsel %vm4465, %v4513, %v3941
      %v4562 = vsel %vm4466, %v4514, %v3952
      %v4563 = vsel %vm4467, %v4515, %v3963
      %v4564 = vsel %vm4468, %v4516, %v3974
      %v4565 = vsel %vm4469, %v4517, %v3985
      %v4566 = vsel %vm4470, %v4518, %v3996
      %v4567 = vsel %vm4471, %v4519, %v4007
      %v4568 = vsel %vm4472, %v4520, %v4018
      %v4569 = vsel %vm4473, %v4521, %v4029
      %v4570 = vsel %vm4474, %v4522, %v4040
      %v4571 = vsel %vm4475, %v4523, %v4051
      %v4572 = vsel %vm4476, %v4524, %v4062
      %v4573 = vsel %vm4477, %v4525, %v4073
      %v4574 = vsel %vm4478, %v4526, %v4084
      %v4575 = vsel %vm4479, %v4527, %v4095
      %v4576 = vsel %vm4480, %v4528, %v4106
      %v4577 = vsel %vm4481, %v4529, %v4117
      %v4578 = vsel %vm4482, %v4530, %v4128
      %v4579 = vsel %vm4483, %v4531, %v4139
      %v4580 = vsel %vm4484, %v4532, %v4150
      %v4581 = vsel %vm4485, %v4533, %v4161
      %v4582 = vsel %vm4486, %v4534, %v4172
      %v4583 = vsel %vm4487, %v4535, %v4183
      %v4584 = vsel %vm4488, %v4536, %v4194
      %v4585 = vsel %vm4489, %v4537, %v4205
      %v4586 = vsel %vm4490, %v4538, %v4216
      %v4587 = vsel %vm4491, %v4539, %v4227
      %v4588 = vsel %vm4492, %v4540, %v4238
      %v4589 = vsel %vm4493, %v4541, %v4249
      %v4590 = vsel %vm4494, %v4542, %v4260
      %v4591 = vsel %vm4495, %v4543, %v4271
      %v4592 = vsel %vm4496, %v4544, %v4282
      %v4593 = vsel %vm4497, %v4545, %v4293
      %v4594 = vsel %vm4498, %v4546, %v4304
      %v4595 = vsel %vm4499, %v4547, %v4315
      %v4596 = vsel %vm4500, %v4548, %v4326
      %v4597 = vsel %vm4501, %v4549, %v4337
      %v4598 = vsel %vm4502, %v4550, %v4348
      %v4599 = vsel %vm4503, %v4551, %v4359
      %vm4600 = vcmp.lt.s32.totalorder %v4552, 16
      %vm4601 = vcmp.lt.s32.totalorder %v4553, 16
      %vm4602 = vcmp.lt.s32.totalorder %v4554, 16
      %vm4603 = vcmp.lt.s32.totalorder %v4555, 16
      %vm4604 = vcmp.lt.s32.totalorder %v4556, 16
      %vm4605 = vcmp.lt.s32.totalorder %v4557, 16
      %vm4606 = vcmp.lt.s32.totalorder %v4558, 16
      %vm4607 = vcmp.lt.s32.totalorder %v4559, 16
      %vm4608 = vcmp.lt.s32.totalorder %v4560, 16
      %vm4609 = vcmp.lt.s32.totalorder %v4561, 16
      %vm4610 = vcmp.lt.s32.totalorder %v4562, 16
      %vm4611 = vcmp.lt.s32.totalorder %v4563, 16
      %vm4612 = vcmp.lt.s32.totalorder %v4564, 16
      %vm4613 = vcmp.lt.s32.totalorder %v4565, 16
      %vm4614 = vcmp.lt.s32.totalorder %v4566, 16
      %vm4615 = vcmp.lt.s32.totalorder %v4567, 16
      %vm4616 = vcmp.lt.s32.totalorder %v4568, 16
      %vm4617 = vcmp.lt.s32.totalorder %v4569, 16
      %vm4618 = vcmp.lt.s32.totalorder %v4570, 16
      %vm4619 = vcmp.lt.s32.totalorder %v4571, 16
      %vm4620 = vcmp.lt.s32.totalorder %v4572, 16
      %vm4621 = vcmp.lt.s32.totalorder %v4573, 16
      %vm4622 = vcmp.lt.s32.totalorder %v4574, 16
      %vm4623 = vcmp.lt.s32.totalorder %v4575, 16
      %vm4624 = vcmp.lt.s32.totalorder %v4576, 16
      %vm4625 = vcmp.lt.s32.totalorder %v4577, 16
      %vm4626 = vcmp.lt.s32.totalorder %v4578, 16
      %vm4627 = vcmp.lt.s32.totalorder %v4579, 16
      %vm4628 = vcmp.lt.s32.totalorder %v4580, 16
      %vm4629 = vcmp.lt.s32.totalorder %v4581, 16
      %vm4630 = vcmp.lt.s32.totalorder %v4582, 16
      %vm4631 = vcmp.lt.s32.totalorder %v4583, 16
      %vm4632 = vcmp.lt.s32.totalorder %v4584, 16
      %vm4633 = vcmp.lt.s32.totalorder %v4585, 16
      %vm4634 = vcmp.lt.s32.totalorder %v4586, 16
      %vm4635 = vcmp.lt.s32.totalorder %v4587, 16
      %vm4636 = vcmp.lt.s32.totalorder %v4588, 16
      %vm4637 = vcmp.lt.s32.totalorder %v4589, 16
      %vm4638 = vcmp.lt.s32.totalorder %v4590, 16
      %vm4639 = vcmp.lt.s32.totalorder %v4591, 16
      %vm4640 = vcmp.lt.s32.totalorder %v4592, 16
      %vm4641 = vcmp.lt.s32.totalorder %v4593, 16
      %vm4642 = vcmp.lt.s32.totalorder %v4594, 16
      %vm4643 = vcmp.lt.s32.totalorder %v4595, 16
      %vm4644 = vcmp.lt.s32.totalorder %v4596, 16
      %vm4645 = vcmp.lt.s32.totalorder %v4597, 16
      %vm4646 = vcmp.lt.s32.totalorder %v4598, 16
      %vm4647 = vcmp.lt.s32.totalorder %v4599, 16
      %v4648 = vsel %vm4600, 1, 0
      %v4649 = vsel %vm4601, 1, 0
      %v4650 = vsel %vm4602, 1, 0
      %v4651 = vsel %vm4603, 1, 0
      %v4652 = vsel %vm4604, 1, 0
      %v4653 = vsel %vm4605, 1, 0
      %v4654 = vsel %vm4606, 1, 0
      %v4655 = vsel %vm4607, 1, 0
      %v4656 = vsel %vm4608, 1, 0
      %v4657 = vsel %vm4609, 1, 0
      %v4658 = vsel %vm4610, 1, 0
      %v4659 = vsel %vm4611, 1, 0
      %v4660 = vsel %vm4612, 1, 0
      %v4661 = vsel %vm4613, 1, 0
      %v4662 = vsel %vm4614, 1, 0
      %v4663 = vsel %vm4615, 1, 0
      %v4664 = vsel %vm4616, 1, 0
      %v4665 = vsel %vm4617, 1, 0
      %v4666 = vsel %vm4618, 1, 0
      %v4667 = vsel %vm4619, 1, 0
      %v4668 = vsel %vm4620, 1, 0
      %v4669 = vsel %vm4621, 1, 0
      %v4670 = vsel %vm4622, 1, 0
      %v4671 = vsel %vm4623, 1, 0
      %v4672 = vsel %vm4624, 1, 0
      %v4673 = vsel %vm4625, 1, 0
      %v4674 = vsel %vm4626, 1, 0
      %v4675 = vsel %vm4627, 1, 0
      %v4676 = vsel %vm4628, 1, 0
      %v4677 = vsel %vm4629, 1, 0
      %v4678 = vsel %vm4630, 1, 0
      %v4679 = vsel %vm4631, 1, 0
      %v4680 = vsel %vm4632, 1, 0
      %v4681 = vsel %vm4633, 1, 0
      %v4682 = vsel %vm4634, 1, 0
      %v4683 = vsel %vm4635, 1, 0
      %v4684 = vsel %vm4636, 1, 0
      %v4685 = vsel %vm4637, 1, 0
      %v4686 = vsel %vm4638, 1, 0
      %v4687 = vsel %vm4639, 1, 0
      %v4688 = vsel %vm4640, 1, 0
      %v4689 = vsel %vm4641, 1, 0
      %v4690 = vsel %vm4642, 1, 0
      %v4691 = vsel %vm4643, 1, 0
      %v4692 = vsel %vm4644, 1, 0
      %v4693 = vsel %vm4645, 1, 0
      %v4694 = vsel %vm4646, 1, 0
      %v4695 = vsel %vm4647, 1, 0
      %vm4696 = vcmp.eq.s32.totalorder %v4648, 1
      %vm4697 = vcmp.eq.s32.totalorder %v4649, 1
      %vm4698 = vcmp.eq.s32.totalorder %v4650, 1
      %vm4699 = vcmp.eq.s32.totalorder %v4651, 1
      %vm4700 = vcmp.eq.s32.totalorder %v4652, 1
      %vm4701 = vcmp.eq.s32.totalorder %v4653, 1
      %vm4702 = vcmp.eq.s32.totalorder %v4654, 1
      %vm4703 = vcmp.eq.s32.totalorder %v4655, 1
      %vm4704 = vcmp.eq.s32.totalorder %v4656, 1
      %vm4705 = vcmp.eq.s32.totalorder %v4657, 1
      %vm4706 = vcmp.eq.s32.totalorder %v4658, 1
      %vm4707 = vcmp.eq.s32.totalorder %v4659, 1
      %vm4708 = vcmp.eq.s32.totalorder %v4660, 1
      %vm4709 = vcmp.eq.s32.totalorder %v4661, 1
      %vm4710 = vcmp.eq.s32.totalorder %v4662, 1
      %vm4711 = vcmp.eq.s32.totalorder %v4663, 1
      %vm4712 = vcmp.eq.s32.totalorder %v4664, 1
      %vm4713 = vcmp.eq.s32.totalorder %v4665, 1
      %vm4714 = vcmp.eq.s32.totalorder %v4666, 1
      %vm4715 = vcmp.eq.s32.totalorder %v4667, 1
      %vm4716 = vcmp.eq.s32.totalorder %v4668, 1
      %vm4717 = vcmp.eq.s32.totalorder %v4669, 1
      %vm4718 = vcmp.eq.s32.totalorder %v4670, 1
      %vm4719 = vcmp.eq.s32.totalorder %v4671, 1
      %vm4720 = vcmp.eq.s32.totalorder %v4672, 1
      %vm4721 = vcmp.eq.s32.totalorder %v4673, 1
      %vm4722 = vcmp.eq.s32.totalorder %v4674, 1
      %vm4723 = vcmp.eq.s32.totalorder %v4675, 1
      %vm4724 = vcmp.eq.s32.totalorder %v4676, 1
      %vm4725 = vcmp.eq.s32.totalorder %v4677, 1
      %vm4726 = vcmp.eq.s32.totalorder %v4678, 1
      %vm4727 = vcmp.eq.s32.totalorder %v4679, 1
      %vm4728 = vcmp.eq.s32.totalorder %v4680, 1
      %vm4729 = vcmp.eq.s32.totalorder %v4681, 1
      %vm4730 = vcmp.eq.s32.totalorder %v4682, 1
      %vm4731 = vcmp.eq.s32.totalorder %v4683, 1
      %vm4732 = vcmp.eq.s32.totalorder %v4684, 1
      %vm4733 = vcmp.eq.s32.totalorder %v4685, 1
      %vm4734 = vcmp.eq.s32.totalorder %v4686, 1
      %vm4735 = vcmp.eq.s32.totalorder %v4687, 1
      %vm4736 = vcmp.eq.s32.totalorder %v4688, 1
      %vm4737 = vcmp.eq.s32.totalorder %v4689, 1
      %vm4738 = vcmp.eq.s32.totalorder %v4690, 1
      %vm4739 = vcmp.eq.s32.totalorder %v4691, 1
      %vm4740 = vcmp.eq.s32.totalorder %v4692, 1
      %vm4741 = vcmp.eq.s32.totalorder %v4693, 1
      %vm4742 = vcmp.eq.s32.totalorder %v4694, 1
      %vm4743 = vcmp.eq.s32.totalorder %v4695, 1
      %v4744 = vsel %vm4696, %v3735, 0.0
      %v4745 = vsel %vm4697, %v3736, 0.0
      %v4746 = vsel %vm4698, %v3737, 0.0
      %v4747 = vsel %vm4699, %v3738, 0.0
      %v4748 = vsel %vm4700, %v3739, 0.0
      %v4749 = vsel %vm4701, %v3740, 0.0
      %v4750 = vsel %vm4702, %v3741, 0.0
      %v4751 = vsel %vm4703, %v3742, 0.0
      %v4752 = vsel %vm4704, %v3743, 0.0
      %v4753 = vsel %vm4705, %v3744, 0.0
      %v4754 = vsel %vm4706, %v3745, 0.0
      %v4755 = vsel %vm4707, %v3746, 0.0
      %v4756 = vsel %vm4708, %v3747, 0.0
      %v4757 = vsel %vm4709, %v3748, 0.0
      %v4758 = vsel %vm4710, %v3749, 0.0
      %v4759 = vsel %vm4711, %v3750, 0.0
      %v4760 = vsel %vm4712, %v3751, 0.0
      %v4761 = vsel %vm4713, %v3752, 0.0
      %v4762 = vsel %vm4714, %v3753, 0.0
      %v4763 = vsel %vm4715, %v3754, 0.0
      %v4764 = vsel %vm4716, %v3755, 0.0
      %v4765 = vsel %vm4717, %v3756, 0.0
      %v4766 = vsel %vm4718, %v3757, 0.0
      %v4767 = vsel %vm4719, %v3758, 0.0
      %v4768 = vsel %vm4720, %v3759, 0.0
      %v4769 = vsel %vm4721, %v3760, 0.0
      %v4770 = vsel %vm4722, %v3761, 0.0
      %v4771 = vsel %vm4723, %v3762, 0.0
      %v4772 = vsel %vm4724, %v3763, 0.0
      %v4773 = vsel %vm4725, %v3764, 0.0
      %v4774 = vsel %vm4726, %v3765, 0.0
      %v4775 = vsel %vm4727, %v3766, 0.0
      %v4776 = vsel %vm4728, %v3767, 0.0
      %v4777 = vsel %vm4729, %v3768, 0.0
      %v4778 = vsel %vm4730, %v3769, 0.0
      %v4779 = vsel %vm4731, %v3770, 0.0
      %v4780 = vsel %vm4732, %v3771, 0.0
      %v4781 = vsel %vm4733, %v3772, 0.0
      %v4782 = vsel %vm4734, %v3773, 0.0
      %v4783 = vsel %vm4735, %v3774, 0.0
      %v4784 = vsel %vm4736, %v3775, 0.0
      %v4785 = vsel %vm4737, %v3776, 0.0
      %v4786 = vsel %vm4738, %v3777, 0.0
      %v4787 = vsel %vm4739, %v3778, 0.0
      %v4788 = vsel %vm4740, %v3779, 0.0
      %v4789 = vsel %vm4741, %v3780, 0.0
      %v4790 = vsel %vm4742, %v3781, 0.0
      %v4791 = vsel %vm4743, %v3782, 0.0
      %v4792 = vpack.c.bf16 %v4745, %v4744
      %v4793 = vpack.c.bf16 %v4747, %v4746
      %v4794 = vpack.c.bf16 %v4749, %v4748
      %v4795 = vpack.c.bf16 %v4751, %v4750
      %v4796 = vpack.c.bf16 %v4753, %v4752
      %v4797 = vpack.c.bf16 %v4755, %v4754
      %v4798 = vpack.c.bf16 %v4757, %v4756
      %v4799 = vpack.c.bf16 %v4759, %v4758
      %v4800 = vpack.c.bf16 %v4761, %v4760
      %v4801 = vpack.c.bf16 %v4763, %v4762
      %v4802 = vpack.c.bf16 %v4765, %v4764
      %v4803 = vpack.c.bf16 %v4767, %v4766
      %v4804 = vpack.c.bf16 %v4769, %v4768
      %v4805 = vpack.c.bf16 %v4771, %v4770
      %v4806 = vpack.c.bf16 %v4773, %v4772
      %v4807 = vpack.c.bf16 %v4775, %v4774
      %v4808 = vpack.c.bf16 %v4777, %v4776
      %v4809 = vpack.c.bf16 %v4779, %v4778
      %v4810 = vpack.c.bf16 %v4781, %v4780
      %v4811 = vpack.c.bf16 %v4783, %v4782
      %v4812 = vpack.c.bf16 %v4785, %v4784
      %v4813 = vpack.c.bf16 %v4787, %v4786
      %v4814 = vpack.c.bf16 %v4789, %v4788
      %v4815 = vpack.c.bf16 %v4791, %v4790
      %vm4816 = vcmask 257024
      %4817 = vst.msk [vmem:[%s170] sm:$0xf] %vm4816, 0
      %4818 = vst.msk [vmem:[%s170 + $0x4] sm:$0xf] %vm4816, 0
      %4819 = vst.msk [vmem:[%s170 + $0x8] sm:$0xf] %vm4816, 0
      %4820 = vst.msk [vmem:[%s170 + $0xc] sm:$0xf] %vm4816, 0
      %v4845 = vunpack.c.l.b16 %v4792
      %v4846 = vunpack.c.h.b16 %v4792
      %v4847 = vunpack.c.l.b16 %v4793
      %v4848 = vunpack.c.h.b16 %v4793
      %v4849 = vunpack.c.l.b16 %v4794
      %v4850 = vunpack.c.h.b16 %v4794
      %v4851 = vunpack.c.l.b16 %v4795
      %v4852 = vunpack.c.h.b16 %v4795
      %v4853 = vunpack.c.l.b16 %v4796
      %v4854 = vunpack.c.h.b16 %v4796
      %v4855 = vunpack.c.l.b16 %v4797
      %v4856 = vunpack.c.h.b16 %v4797
      %v4857 = vunpack.c.l.b16 %v4798
      %v4858 = vunpack.c.h.b16 %v4798
      %v4859 = vunpack.c.l.b16 %v4799
      %v4860 = vunpack.c.h.b16 %v4799
      %v4861 = vunpack.c.l.b16 %v4800
      %v4862 = vunpack.c.h.b16 %v4800
      %v4863 = vunpack.c.l.b16 %v4801
      %v4864 = vunpack.c.h.b16 %v4801
      %v4865 = vunpack.c.l.b16 %v4802
      %v4866 = vunpack.c.h.b16 %v4802
      %v4867 = vunpack.c.l.b16 %v4803
      %v4868 = vunpack.c.h.b16 %v4803
      %v4869 = vunpack.c.l.b16 %v4804
      %v4870 = vunpack.c.h.b16 %v4804
      %v4871 = vunpack.c.l.b16 %v4805
      %v4872 = vunpack.c.h.b16 %v4805
      %v4873 = vunpack.c.l.b16 %v4806
      %v4874 = vunpack.c.h.b16 %v4806
      %v4875 = vunpack.c.l.b16 %v4807
      %v4876 = vunpack.c.h.b16 %v4807
      %v4877 = vunpack.c.l.b16 %v4808
      %v4878 = vunpack.c.h.b16 %v4808
      %v4879 = vunpack.c.l.b16 %v4809
      %v4880 = vunpack.c.h.b16 %v4809
      %v4881 = vunpack.c.l.b16 %v4810
      %v4882 = vunpack.c.h.b16 %v4810
      %v4883 = vunpack.c.l.b16 %v4811
      %v4884 = vunpack.c.h.b16 %v4811
      %v4885 = vunpack.c.l.b16 %v4812
      %v4886 = vunpack.c.h.b16 %v4812
      %v4887 = vunpack.c.l.b16 %v4813
      %v4888 = vunpack.c.h.b16 %v4813
      %v4889 = vunpack.c.l.b16 %v4814
      %v4890 = vunpack.c.h.b16 %v4814
      %v4891 = vunpack.c.l.b16 %v4815
      %v4892 = vunpack.c.h.b16 %v4815
      %v4893 = vpack.c.b16 %v4845, %v4845
      %v4894 = vpack.c.b16 %v4846, %v4846
      %v4895 = vpack.c.b16 %v4847, %v4847
      %v4896 = vpack.c.b16 %v4848, %v4848
      %v4897 = vpack.c.b16 %v4849, %v4849
      %v4898 = vpack.c.b16 %v4850, %v4850
      %v4899 = vpack.c.b16 %v4851, %v4851
      %v4900 = vpack.c.b16 %v4852, %v4852
      %v4901 = vpack.c.b16 %v4853, %v4853
      %v4902 = vpack.c.b16 %v4854, %v4854
      %v4903 = vpack.c.b16 %v4855, %v4855
      %v4904 = vpack.c.b16 %v4856, %v4856
      %v4905 = vpack.c.b16 %v4857, %v4857
      %v4906 = vpack.c.b16 %v4858, %v4858
      %v4907 = vpack.c.b16 %v4859, %v4859
      %v4908 = vpack.c.b16 %v4860, %v4860
      %v4909 = vpack.c.b16 %v4861, %v4861
      %v4910 = vpack.c.b16 %v4862, %v4862
      %v4911 = vpack.c.b16 %v4863, %v4863
      %v4912 = vpack.c.b16 %v4864, %v4864
      %v4913 = vpack.c.b16 %v4865, %v4865
      %v4914 = vpack.c.b16 %v4866, %v4866
      %v4915 = vpack.c.b16 %v4867, %v4867
      %v4916 = vpack.c.b16 %v4868, %v4868
      %v4917 = vpack.c.b16 %v4869, %v4869
      %v4918 = vpack.c.b16 %v4870, %v4870
      %v4919 = vpack.c.b16 %v4871, %v4871
      %v4920 = vpack.c.b16 %v4872, %v4872
      %v4921 = vpack.c.b16 %v4873, %v4873
      %v4922 = vpack.c.b16 %v4874, %v4874
      %v4923 = vpack.c.b16 %v4875, %v4875
      %v4924 = vpack.c.b16 %v4876, %v4876
      %v4925 = vpack.c.b16 %v4877, %v4877
      %v4926 = vpack.c.b16 %v4878, %v4878
      %v4927 = vpack.c.b16 %v4879, %v4879
      %v4928 = vpack.c.b16 %v4880, %v4880
      %v4929 = vpack.c.b16 %v4881, %v4881
      %v4930 = vpack.c.b16 %v4882, %v4882
      %v4931 = vpack.c.b16 %v4883, %v4883
      %v4932 = vpack.c.b16 %v4884, %v4884
      %v4933 = vpack.c.b16 %v4885, %v4885
      %v4934 = vpack.c.b16 %v4886, %v4886
      %v4935 = vpack.c.b16 %v4887, %v4887
      %v4936 = vpack.c.b16 %v4888, %v4888
      %v4937 = vpack.c.b16 %v4889, %v4889
      %v4938 = vpack.c.b16 %v4890, %v4890
      %v4939 = vpack.c.b16 %v4891, %v4891
      %v4940 = vpack.c.b16 %v4892, %v4892
      %4989 = vst.msk [vmem:[%s170 + $0x10] sm:$0xf] %vm4816, %v4893
      %4990 = vst.msk [vmem:[%s170 + $0x14] sm:$0xf] %vm4816, %v4894
      %4991 = vst.msk [vmem:[%s170 + $0x18] sm:$0xf] %vm4816, %v4895
      %4992 = vst.msk [vmem:[%s170 + $0x1c] sm:$0xf] %vm4816, %v4896
      %4993 = vst.msk [vmem:[%s170 + $0x20] sm:$0xf] %vm4816, %v4897
      %4994 = vst.msk [vmem:[%s170 + $0x24] sm:$0xf] %vm4816, %v4898
      %4995 = vst.msk [vmem:[%s170 + $0x28] sm:$0xf] %vm4816, %v4899
      %4996 = vst.msk [vmem:[%s170 + $0x2c] sm:$0xf] %vm4816, %v4900
      %4997 = vst.msk [vmem:[%s170 + $0x30] sm:$0xf] %vm4816, %v4901
      %4998 = vst.msk [vmem:[%s170 + $0x34] sm:$0xf] %vm4816, %v4902
      %4999 = vst.msk [vmem:[%s170 + $0x38] sm:$0xf] %vm4816, %v4903
      %5000 = vst.msk [vmem:[%s170 + $0x3c] sm:$0xf] %vm4816, %v4904
      %5001 = vst.msk [vmem:[%s170 + $0x40] sm:$0xf] %vm4816, %v4905
      %5002 = vst.msk [vmem:[%s170 + $0x44] sm:$0xf] %vm4816, %v4906
      %5003 = vst.msk [vmem:[%s170 + $0x48] sm:$0xf] %vm4816, %v4907
      %5004 = vst.msk [vmem:[%s170 + $0x4c] sm:$0xf] %vm4816, %v4908
      %5005 = vst.msk [vmem:[%s170 + $0x50] sm:$0xf] %vm4816, %v4909
      %5006 = vst.msk [vmem:[%s170 + $0x54] sm:$0xf] %vm4816, %v4910
      %5007 = vst.msk [vmem:[%s170 + $0x58] sm:$0xf] %vm4816, %v4911
      %5008 = vst.msk [vmem:[%s170 + $0x5c] sm:$0xf] %vm4816, %v4912
      %5009 = vst.msk [vmem:[%s170 + $0x60] sm:$0xf] %vm4816, %v4913
      %5010 = vst.msk [vmem:[%s170 + $0x64] sm:$0xf] %vm4816, %v4914
      %5011 = vst.msk [vmem:[%s170 + $0x68] sm:$0xf] %vm4816, %v4915
      %5012 = vst.msk [vmem:[%s170 + $0x6c] sm:$0xf] %vm4816, %v4916
      %5013 = vst.msk [vmem:[%s170 + $0x70] sm:$0xf] %vm4816, %v4917
      %5014 = vst.msk [vmem:[%s170 + $0x74] sm:$0xf] %vm4816, %v4918
      %5015 = vst.msk [vmem:[%s170 + $0x78] sm:$0xf] %vm4816, %v4919
      %5016 = vst.msk [vmem:[%s170 + $0x7c] sm:$0xf] %vm4816, %v4920
      %5017 = vst.msk [vmem:[%s170 + $0x80] sm:$0xf] %vm4816, %v4921
      %5018 = vst.msk [vmem:[%s170 + $0x84] sm:$0xf] %vm4816, %v4922
      %5019 = vst.msk [vmem:[%s170 + $0x88] sm:$0xf] %vm4816, %v4923
      %5020 = vst.msk [vmem:[%s170 + $0x8c] sm:$0xf] %vm4816, %v4924
      %5021 = vst.msk [vmem:[%s170 + $0x90] sm:$0xf] %vm4816, %v4925
      %5022 = vst.msk [vmem:[%s170 + $0x94] sm:$0xf] %vm4816, %v4926
      %5023 = vst.msk [vmem:[%s170 + $0x98] sm:$0xf] %vm4816, %v4927
      %5024 = vst.msk [vmem:[%s170 + $0x9c] sm:$0xf] %vm4816, %v4928
      %5025 = vst.msk [vmem:[%s170 + $0xa0] sm:$0xf] %vm4816, %v4929
      %5026 = vst.msk [vmem:[%s170 + $0xa4] sm:$0xf] %vm4816, %v4930
      %5027 = vst.msk [vmem:[%s170 + $0xa8] sm:$0xf] %vm4816, %v4931
      %5028 = vst.msk [vmem:[%s170 + $0xac] sm:$0xf] %vm4816, %v4932
      %5029 = vst.msk [vmem:[%s170 + $0xb0] sm:$0xf] %vm4816, %v4933
      %5030 = vst.msk [vmem:[%s170 + $0xb4] sm:$0xf] %vm4816, %v4934
      %5031 = vst.msk [vmem:[%s170 + $0xb8] sm:$0xf] %vm4816, %v4935
      %5032 = vst.msk [vmem:[%s170 + $0xbc] sm:$0xf] %vm4816, %v4936
      %5033 = vst.msk [vmem:[%s170 + $0xc0] sm:$0xf] %vm4816, %v4937
      %5034 = vst.msk [vmem:[%s170 + $0xc4] sm:$0xf] %vm4816, %v4938
      %5035 = vst.msk [vmem:[%s170 + $0xc8] sm:$0xf] %vm4816, %v4939
      %5036 = vst.msk [vmem:[%s170 + $0xcc] sm:$0xf] %vm4816, %v4940
      %5037 = vst.msk [vmem:[%s170 + $0xd0] sm:$0xf] %vm4816, 0
      %5038 = vst.msk [vmem:[%s170 + $0xd4] sm:$0xf] %vm4816, 0
      %5039 = vst.msk [vmem:[%s170 + $0xd8] sm:$0xf] %vm4816, 0
      %5040 = vst.msk [vmem:[%s170 + $0xdc] sm:$0xf] %vm4816, 0
      %p5041 = scmp.lt.s32.totalorder %s14, 1
      %s5042 = scalar_select %p5041, %s14, 1
      %s5043 = smul.addr %s5042, 56
      %s5044 = smul.addr %s5043, 4
      %s5045 = scalar_lea.vmem %s3, %s5044
      // Predicated region
      $region33: #{tpu_custom_call.1} parent=31 // pred_check
        %p5046 = pneg %p100
      $region34: #{tpu_custom_call.1} parent=31 // pred_check_branch
        %5048 = sbr.rel (%p5046) target = $region36
      $region35: #{tpu_custom_call.1} parent=31 // pred_region
        _
      $region36: #{tpu_custom_call.1} parent=31 // pred_fallthru
        _
    $region32: #{tpu_custom_call.1} parent=5 // pred_fallthru
      _
    %p5049 = scmp.le.s32.totalorder 2, %s9
    // Predicated region
    $region37: #{tpu_custom_call.1} parent=5 // pred_check
      %p5050 = pneg %p5049
    $region38: #{tpu_custom_call.1} parent=5 // pred_check_branch
      %5052 = sbr.rel (%p5050) target = $region40
    $region39: #{tpu_custom_call.1} parent=5 // pred_region
      %s5053 = ssub.s32 %s9, 2
      // Predicated region
      $region41: #{tpu_custom_call.1} parent=39 // pred_check
        %p5054 = pneg %p106
      $region42: #{tpu_custom_call.1} parent=39 // pred_check_branch
        %5056 = sbr.rel (%p5054) target = $region44
      $region43: #{tpu_custom_call.1} parent=39 // pred_region
        %p5057 = scmp.lt.s32.totalorder %s15, 1
        %s5058 = scalar_select %p5057, %s15, 1
        %s5059 = smul.addr %s5058, 56
        %s5060 = smul.addr %s5059, 4
        %s5061 = scalar_lea.vmem %s3, %s5060
      $region44: #{tpu_custom_call.1} parent=39 // pred_fallthru
        _
    $region40: #{tpu_custom_call.1} parent=5 // pred_fallthru
      _
  $region6: #{tpu_custom_call.1} parent=0 // loop_footer
    %s13 = sadd.s32 1, %s9
  $region7: #{tpu_custom_call.1} parent=0 // loop_footer_branch
    %8 = sbr.rel target = $region3
  $region8: #{tpu_custom_call.1} parent=0 // loop_exit
    _

</llo_original>
